<compile_context>
chip_gen: v6e
topology: v6e:2x2x1
jax: 0.10.0
libtpu: 0.0.40
codegen_flags: <defaults>
</compile_context>

<pallas_src>
import functools
import math

import jax
import jax.numpy as jnp
from jax import lax
from jax.experimental import pallas as pl
from jax.experimental.pallas import tpu as pltpu


def _round_up(v, m):
    return (v + m - 1) // m * m


def _choose_images_per_step(bn, tmax=8):
    """Largest divisor of bn that is <= tmax, preferring >= 2 grid steps (v7x has 2 TCs)."""
    divisors = [t for t in range(1, min(bn, tmax) + 1) if bn % t == 0]
    multi_step = [t for t in divisors if bn // t >= 2]
    return max(multi_step) if multi_step else max(divisors)


def _gated_update_kernel(x_ref, h_ref, w_ref, b_ref, out_ref, *, H, W, hd):
    """One grid step processes T images.

    x_ref  : (T, (H+2)*W, KC)  bf16  dx-augmented, row-padded input (KC = 3*Cin,
                                     channel index c' = dx*Cin + cin)
    h_ref  : (T*H*W, hd)       f32   previous hidden state (channels-last, flattened)
    w_ref  : (3, KC, Cout_p)   bf16  conv weight per dy tap, Cout padded to 128 lanes
    b_ref  : (1, Cout_p)       f32   conv bias (padded)
    out_ref: (T*H*W, hd)             new hidden state
    """
    T = x_ref.shape[0]
    KC = x_ref.shape[-1]
    Cout_p = w_ref.shape[-1]
    HW = H * W
    M = T * HW

    # Bias-initialized f32 accumulator (saves a separate bias add).
    acc = jnp.broadcast_to(b_ref[...], (M, Cout_p))

    # 3x3 conv == 3 MXU matmuls, one per vertical tap dy. Each LHS is an aligned
    # sublane window (dy*W is a multiple of 8) of the row-flattened padded input,
    # so no relayout copies are materialized.
    for dy in range(3):
        lhs = x_ref[:, dy * W:dy * W + HW, :].reshape(M, KC)
        acc = acc + jnp.dot(lhs, w_ref[dy], preferred_element_type=jnp.float32)

    forget_gate = jax.nn.sigmoid(acc[:, :hd])
    update_gate = jax.nn.sigmoid(acc[:, hd:2 * hd])
    new_value = jnp.tanh(acc[:, 2 * hd:3 * hd])

    h_prev = h_ref[...].astype(jnp.float32)
    new_h = forget_gate * h_prev * (1.0 - update_gate) + update_gate * new_value
    out_ref[...] = new_h.astype(out_ref.dtype)


def hidden_update_forward(g, h, weight, bias, hidden_dim, images_per_step=None):
    """g: [B, N, g_dim, H, W], h: [B, N, hidden, H, W] (PyTorch layout).

    weight: [3*hidden, g_dim+hidden, 3, 3] (PyTorch OIHW), bias: [3*hidden].
    Returns new_h: [B, N, hidden, H, W].
    """
    B, N, g_dim, H, W = g.shape
    hd = hidden_dim
    assert h.shape == (B, N, hd, H, W)
    assert W % 8 == 0, "W must be a multiple of 8 for the aligned-tap layout"

    Cin = g_dim + hd
    Cout = 3 * hd
    Cout_p = _round_up(Cout, 128)
    KC = 3 * Cin
    BN = B * N
    HW = H * W
    Hp = H + 2

    T = images_per_step or _choose_images_per_step(BN)
    assert BN % T == 0

    # ---- XLA-side layout prep (glue) ----
    # Channels-last, spatially padded input; fold the three dx taps into the channel
    # axis so every in-kernel tap is a tile-aligned window (no in-kernel relayouts).
    x = jnp.concatenate([g, h], axis=2).reshape(BN, Cin, H, W)
    x = jnp.pad(x, ((0, 0), (0, 0), (1, 1), (1, 1)))              # (BN, Cin, H+2, W+2)
    x = x.transpose(0, 2, 3, 1).astype(jnp.bfloat16)              # (BN, H+2, W+2, Cin)
    x_aug = jnp.concatenate([x[:, :, dx:dx + W, :] for dx in range(3)], axis=-1)
    x_aug = x_aug.reshape(BN, Hp * W, KC)                          # (BN, (H+2)*W, 3*Cin)

    # h in gating layout (channels-last, spatially flattened), kept f32.
    h_flat = h.reshape(BN, hd, HW).transpose(0, 2, 1).reshape(BN * HW, hd)

    # Weight: (Cout, Cin, 3, 3) -> (dy, dx*Cin+cin, Cout), Cout zero-padded to 128.
    w_aug = jnp.transpose(weight, (2, 3, 1, 0)).reshape(3, KC, Cout)
    w_aug = jnp.pad(w_aug, ((0, 0), (0, 0), (0, Cout_p - Cout))).astype(jnp.bfloat16)
    b2d = jnp.pad(bias, (0, Cout_p - Cout)).reshape(1, Cout_p).astype(jnp.float32)

    kernel = functools.partial(_gated_update_kernel, H=H, W=W, hd=hd)

    out = pl.pallas_call(
        kernel,
        out_shape=jax.ShapeDtypeStruct((BN * HW, hd), h.dtype),
        grid_spec=pltpu.PrefetchScalarGridSpec(
            num_scalar_prefetch=0,
            grid=(BN // T,),
            in_specs=[
                pl.BlockSpec((T, Hp * W, KC), lambda i: (i, 0, 0)),
                pl.BlockSpec((T * HW, hd), lambda i: (i, 0)),
                pl.BlockSpec((3, KC, Cout_p), lambda i: (0, 0, 0)),
                pl.BlockSpec((1, Cout_p), lambda i: (0, 0)),
            ],
            out_specs=pl.BlockSpec((T * HW, hd), lambda i: (i, 0)),
        ),
        compiler_params=pltpu.CompilerParams(
            dimension_semantics=("parallel",),
        ),
    )(x_aug, h_flat, w_aug, b2d)

    new_h = (out.reshape(BN, H, W, hd)
                .transpose(0, 3, 1, 2)
                .reshape(B, N, hd, H, W))
    return new_h


def _reference_forward(g, h, weight, bias, hidden_dim):
    """Pure-JAX reference mirroring the PyTorch module (bf16 conv / f32 gating)."""
    B, N, g_dim, H, W = g.shape
    Cin = g_dim + hidden_dim
    x = jnp.concatenate([g, h], axis=2).reshape(B * N, Cin, H, W)
    v = lax.conv_general_dilated(
        x.astype(jnp.bfloat16), weight.astype(jnp.bfloat16),
        window_strides=(1, 1), padding=((1, 1), (1, 1)),
        dimension_numbers=("NCHW", "OIHW", "NCHW"),
        preferred_element_type=jnp.float32,
    ) + bias.reshape(1, -1, 1, 1)
    v = v.reshape(B, N, 3 * hidden_dim, H, W)
    f = jax.nn.sigmoid(v[:, :, :hidden_dim])
    u = jax.nn.sigmoid(v[:, :, hidden_dim:2 * hidden_dim])
    n = jnp.tanh(v[:, :, 2 * hidden_dim:])
    return f * h * (1.0 - u) + u * n


if __name__ == "__main__":
    B, N = 2, 2
    g_dim, hidden_dim = 96, 32
    H = W = 16
    Cin = g_dim + hidden_dim
    Cout = 3 * hidden_dim

    key = jax.random.PRNGKey(0)
    kg, kh, kw, kb = jax.random.split(key, 4)

    g = jax.random.normal(kg, (B, N, g_dim, H, W), dtype=jnp.float32)
    h = jax.random.normal(kh, (B, N, hidden_dim, H, W), dtype=jnp.float32)

    # Deterministic parameter init mimicking the PyTorch module:
    #   xavier_normal_ on conv weight, default Conv2d bias init.
    fan_in = Cin * 3 * 3
    fan_out = Cout * 3 * 3
    xavier_std = math.sqrt(2.0 / (fan_in + fan_out))
    weight = xavier_std * jax.random.normal(kw, (Cout, Cin, 3, 3), dtype=jnp.float32)
    bias_bound = 1.0 / math.sqrt(fan_in)
    bias = jax.random.uniform(
        kb, (Cout,), minval=-bias_bound, maxval=bias_bound, dtype=jnp.float32
    )

    new_h = hidden_update_forward(g, h, weight, bias, hidden_dim)
    new_h = jax.block_until_ready(new_h)

    ref = _reference_forward(g, h, weight, bias, hidden_dim)
    assert new_h.shape == (B, N, hidden_dim, H, W)
    max_err = float(jnp.max(jnp.abs(new_h - ref)))
    # bf16 matmul inputs with f32 accumulation -> tolerance above f32-exact level.
    assert jnp.allclose(new_h, ref, rtol=2e-3, atol=2e-3), max_err

    print("KERNEL_OK")
</pallas_src>

<mosaic_0001>
module attributes {stable_mosaic.version = 11 : i64} {
  func.func @_gated_update_kernel(%arg0: i32, %arg1: memref<2x288x384xbf16, #tpu.memory_space<vmem>>, %arg2: memref<512x32xf32, #tpu.memory_space<vmem>>, %arg3: memref<3x384x128xbf16, #tpu.memory_space<vmem>>, %arg4: memref<1x128xf32, #tpu.memory_space<vmem>>, %arg5: memref<512x32xf32, #tpu.memory_space<vmem>>) attributes {dimension_semantics = [#tpu.dimension_semantics<parallel>], iteration_bounds = array<i64: 2>, scalar_prefetch = 0 : i64, scratch_operands = 0 : i64, tpu.core_type = #tpu.core_type<tc>, window_params = [{transform_indices = @transform_0, window_bounds = array<i64: 2, 288, 384>}, {transform_indices = @transform_1, window_bounds = array<i64: 512, 32>}, {pipeline_mode = #tpu.pipeline_mode<synchronous>, transform_indices = @transform_2, window_bounds = array<i64: 3, 384, 128>}, {pipeline_mode = #tpu.pipeline_mode<synchronous>, transform_indices = @transform_3, window_bounds = array<i64: 1, 128>}, {transform_indices = @transform_4, window_bounds = array<i64: 512, 32>}]} {
    %c0 = arith.constant 0 : index
    %c0_0 = arith.constant 0 : index
    %0 = vector.load %arg4[%c0, %c0_0] : memref<1x128xf32, #tpu.memory_space<vmem>>, vector<1x128xf32>
    %1 = vector.shape_cast %0 : vector<1x128xf32> to vector<1x128xf32>
    %2 = vector.broadcast %1 : vector<1x128xf32> to vector<512x128xf32>
    %c0_1 = arith.constant 0 : index
    %c0_2 = arith.constant 0 : index
    %c0_3 = arith.constant 0 : index
    %3 = vector.load %arg1[%c0_1, %c0_2, %c0_3] : memref<2x288x384xbf16, #tpu.memory_space<vmem>>, vector<2x256x384xbf16>
    %4 = vector.shape_cast %3 : vector<2x256x384xbf16> to vector<512x384xbf16>
    %c0_4 = arith.constant 0 : index
    %c0_5 = arith.constant 0 : index
    %c0_6 = arith.constant 0 : index
    %5 = vector.load %arg3[%c0_4, %c0_5, %c0_6] : memref<3x384x128xbf16, #tpu.memory_space<vmem>>, vector<1x384x128xbf16>
    %6 = vector.shape_cast %5 : vector<1x384x128xbf16> to vector<384x128xbf16>
    %cst = arith.constant dense<0.000000e+00> : vector<512x128xf32>
    %7 = tpu.matmul %4, %6, %cst {dimension_numbers = #tpu.dot_dimension_numbers<[1], [0], [0], [1], [0, 0, 1, 1], [], []>} : vector<512x384xbf16>, vector<384x128xbf16>, vector<512x128xf32> -> vector<512x128xf32>
    %8 = arith.addf %2, %7 : vector<512x128xf32>
    %c0_7 = arith.constant 0 : index
    %c16 = arith.constant 16 : index
    %c0_8 = arith.constant 0 : index
    %9 = vector.load %arg1[%c0_7, %c16, %c0_8] : memref<2x288x384xbf16, #tpu.memory_space<vmem>>, vector<2x256x384xbf16>
    %10 = vector.shape_cast %9 : vector<2x256x384xbf16> to vector<512x384xbf16>
    %c1 = arith.constant 1 : index
    %c0_9 = arith.constant 0 : index
    %c0_10 = arith.constant 0 : index
    %11 = vector.load %arg3[%c1, %c0_9, %c0_10] : memref<3x384x128xbf16, #tpu.memory_space<vmem>>, vector<1x384x128xbf16>
    %12 = vector.shape_cast %11 : vector<1x384x128xbf16> to vector<384x128xbf16>
    %cst_11 = arith.constant dense<0.000000e+00> : vector<512x128xf32>
    %13 = tpu.matmul %10, %12, %cst_11 {dimension_numbers = #tpu.dot_dimension_numbers<[1], [0], [0], [1], [0, 0, 1, 1], [], []>} : vector<512x384xbf16>, vector<384x128xbf16>, vector<512x128xf32> -> vector<512x128xf32>
    %14 = arith.addf %8, %13 : vector<512x128xf32>
    %c0_12 = arith.constant 0 : index
    %c32 = arith.constant 32 : index
    %c0_13 = arith.constant 0 : index
    %15 = vector.load %arg1[%c0_12, %c32, %c0_13] : memref<2x288x384xbf16, #tpu.memory_space<vmem>>, vector<2x256x384xbf16>
    %16 = vector.shape_cast %15 : vector<2x256x384xbf16> to vector<512x384xbf16>
    %c2 = arith.constant 2 : index
    %c0_14 = arith.constant 0 : index
    %c0_15 = arith.constant 0 : index
    %17 = vector.load %arg3[%c2, %c0_14, %c0_15] : memref<3x384x128xbf16, #tpu.memory_space<vmem>>, vector<1x384x128xbf16>
    %18 = vector.shape_cast %17 : vector<1x384x128xbf16> to vector<384x128xbf16>
    %cst_16 = arith.constant dense<0.000000e+00> : vector<512x128xf32>
    %19 = tpu.matmul %16, %18, %cst_16 {dimension_numbers = #tpu.dot_dimension_numbers<[1], [0], [0], [1], [0, 0, 1, 1], [], []>} : vector<512x384xbf16>, vector<384x128xbf16>, vector<512x128xf32> -> vector<512x128xf32>
    %20 = arith.addf %14, %19 : vector<512x128xf32>
    %21 = vector.extract_strided_slice %20 {offsets = [0, 0], sizes = [512, 32], strides = [1, 1]} : vector<512x128xf32> to vector<512x32xf32>
    %22 = arith.negf %21 : vector<512x32xf32>
    %23 = math.exp %22 : vector<512x32xf32>
    %cst_17 = arith.constant 1.000000e+00 : f32
    %24 = vector.broadcast %cst_17 : f32 to vector<512x32xf32>
    %25 = arith.addf %24, %23 : vector<512x32xf32>
    %26 = arith.divf %24, %25 : vector<512x32xf32>
    %27 = vector.extract_strided_slice %20 {offsets = [0, 32], sizes = [512, 32], strides = [1, 1]} : vector<512x128xf32> to vector<512x32xf32>
    %28 = arith.negf %27 : vector<512x32xf32>
    %29 = math.exp %28 : vector<512x32xf32>
    %cst_18 = arith.constant 1.000000e+00 : f32
    %30 = vector.broadcast %cst_18 : f32 to vector<512x32xf32>
    %31 = arith.addf %30, %29 : vector<512x32xf32>
    %32 = arith.divf %30, %31 : vector<512x32xf32>
    %33 = vector.extract_strided_slice %20 {offsets = [0, 64], sizes = [512, 32], strides = [1, 1]} : vector<512x128xf32> to vector<512x32xf32>
    %34 = math.tanh %33 : vector<512x32xf32>
    %c0_19 = arith.constant 0 : index
    %c0_20 = arith.constant 0 : index
    %35 = vector.load %arg2[%c0_19, %c0_20] : memref<512x32xf32, #tpu.memory_space<vmem>>, vector<512x32xf32>
    %36 = arith.mulf %26, %35 : vector<512x32xf32>
    %cst_21 = arith.constant 1.000000e+00 : f32
    %37 = vector.broadcast %cst_21 : f32 to vector<512x32xf32>
    %38 = arith.subf %37, %32 : vector<512x32xf32>
    %39 = arith.mulf %36, %38 : vector<512x32xf32>
    %40 = arith.mulf %32, %34 : vector<512x32xf32>
    %41 = arith.addf %39, %40 : vector<512x32xf32>
    %c0_22 = arith.constant 0 : index
    %c0_23 = arith.constant 0 : index
    %42 = vector.load %arg5[%c0_22, %c0_23] : memref<512x32xf32, #tpu.memory_space<vmem>>, vector<512x32xf32>
    tpu.vector_store %arg5[%c0_22, %c0_23], %41 {strides = array<i32>} : memref<512x32xf32, #tpu.memory_space<vmem>>, vector<512x32xf32>,
    return
  }
  func.func @transform_0(%arg0: i32) -> (i32, i32, i32) {
    %c0_i32 = arith.constant 0 : i32
    %c0_i32_0 = arith.constant 0 : i32
    %c0_i32_1 = arith.constant 0 : i32
    return %arg0, %c0_i32, %c0_i32_0 : i32, i32, i32
  }
  func.func @transform_1(%arg0: i32) -> (i32, i32) {
    %c0_i32 = arith.constant 0 : i32
    %c0_i32_0 = arith.constant 0 : i32
    return %arg0, %c0_i32 : i32, i32
  }
  func.func @transform_2(%arg0: i32) -> (i32, i32, i32) {
    %c0_i32 = arith.constant 0 : i32
    %c0_i32_0 = arith.constant 0 : i32
    %c0_i32_1 = arith.constant 0 : i32
    %c0_i32_2 = arith.constant 0 : i32
    return %c0_i32, %c0_i32_0, %c0_i32_1 : i32, i32, i32
  }
  func.func @transform_3(%arg0: i32) -> (i32, i32) {
    %c0_i32 = arith.constant 0 : i32
    %c0_i32_0 = arith.constant 0 : i32
    %c0_i32_1 = arith.constant 0 : i32
    return %c0_i32, %c0_i32_0 : i32, i32
  }
  func.func @transform_4(%arg0: i32) -> (i32, i32) {
    %c0_i32 = arith.constant 0 : i32
    %c0_i32_0 = arith.constant 0 : i32
    return %arg0, %c0_i32 : i32, i32
  }
}

</mosaic_0001>

<llo_original>
// kernel: tpu_custom_call.1
$region0: #{tpu_custom_call.1}
  #allocation0 [shape = 'u32[]', space=smem, size = 0x4, offset = 0x4, fixed_abs, tag = 'smem constant byte address 0x4 - core index']
  #allocation1 [shape = 'u32[144,128]{1,0:T(1,128)}', space=vmem, size = 0x12000, scoped, tag = 'internal scratch']
  %s0 = inlined_call_operand.hbm [shape: bf16[4,288,384], index: 0, kind: input, shape index: {}]
  %s1 = inlined_call_operand.vmem [shape: f32[1024,32], index: 1, kind: input, shape index: {}]
  %s2 = inlined_call_operand.vmem [shape: bf16[3,384,128], index: 2, kind: input, shape index: {}]
  %s3 = inlined_call_operand.vmem [shape: f32[1,128], index: 3, kind: input, shape index: {}]
  %s4 = inlined_call_operand.vmem [shape: f32[1024,32], index: 4, kind: output, shape index: {}]
  %s5 = sld [smem:[#allocation0]]
  $region53: #{tpu_custom_call.1} parent=0
    _
  %s7 = ssub.s32 1, %s5
  %s8 = scalar_select 0, %s7, %s5
  $region1: #{tpu_custom_call.1} parent=0
    #allocation2 [shape = 'u8[884736]{0}', space=vmem, size = 0xd8000, scoped, tag = 'input window, operand 0']
    #allocation3 [shape = 's32[2]{0}', space=sflag, size = 0x8, scoped, tag = 'scoped memory for tpu_custom_call.1']
    %9 = vsyncpa [#allocation3], 0
    %s10 = scalar_lea.sflag [#allocation3], 1
    %11 = vsyncpa %s10, 0
    loop: start=0, step=1, limit=4
    $region2: #{tpu_custom_call.1} parent=1 // loop_pre_header
      _
    $region3: #{tpu_custom_call.1} parent=1 // loop_header
      %s13 = sphi 0, %s17
      %p14 = scmp.ge.s32.totalorder %s13, 4
      %s23 = sphi 0, %s25
      %s26 = sphi 0, %s23
      %s27 = sphi 0, %s26
      %s43 = sphi 0, %s27
      %s49 = sphi 0, %s51
      %s52 = sphi 0, %s49
      %s53 = sphi 0, %s52
      %s69 = sphi 0, %s53
      %s73 = sphi 0, %s73
      %s75 = sphi 0, %s73
      %s76 = sphi 0, %s75
      %s90 = sphi 0, %s76
      %s94 = sphi 0, %s94
      %s96 = sphi 0, %s94
      %s97 = sphi 0, %s96
      %s111 = sphi 0, %s97
      %s117 = sphi 0, %s119
      %s120 = sphi 0, %s117
      %s121 = sphi 0, %s120
      %s137 = sphi 0, %s121
    $region4: #{tpu_custom_call.1} parent=1 // loop_header_branch
      %16 = sbr.rel (%p14) target = $region8
    $region5: #{tpu_custom_call.1} parent=1 // loop_body
      %s18 = ssub.s32 %s13, 1
      %s19 = ssub.s32 %s13, 2
      %s20 = sadd.s32 %s13, 1
      %s21 = ssub.s32 %s13, %s20
      %p22 = scmp.eq.s32.totalorder %s21, 0
      %s24 = sadd.s32 %s23, 1
      %s25 = scalar_select %p22, %s23, %s24
      %p28 = pneg %p22
      %p29 = scmp.eq.s32.totalorder %s13, 1
      %p30 = por %p28, %p29
      %p31 = scmp.ne.s32.totalorder %s23, %s26
      %p32 = scmp.eq.s32.totalorder %s13, 0
      %p33 = por %p31, %p32
      %p34 = scmp.ne.s32.totalorder %s23, %s26
      %p35 = scmp.eq.s32.totalorder %s18, 1
      %p36 = por %p34, %p35
      %p37 = scmp.ne.s32.totalorder %s26, %s27
      %p38 = scmp.eq.s32.totalorder %s18, 0
      %p39 = por %p37, %p38
      %p40 = scmp.ne.s32.totalorder %s26, %s27
      %p41 = scmp.eq.s32.totalorder %s19, 1
      %p42 = por %p40, %p41
      %p44 = scmp.ne.s32.totalorder %s27, %s43
      %p45 = scmp.eq.s32.totalorder %s19, 0
      %p46 = por %p44, %p45
      %s47 = ssub.s32 %s13, %s20
      %p48 = scmp.eq.s32.totalorder %s47, 0
      %s50 = sadd.s32 %s49, 1
      %s51 = scalar_select %p48, %s49, %s50
      %p54 = pneg %p48
      %p55 = scmp.eq.s32.totalorder %s13, 1
      %p56 = por %p54, %p55
      %p57 = scmp.ne.s32.totalorder %s49, %s52
      %p58 = scmp.eq.s32.totalorder %s13, 0
      %p59 = por %p57, %p58
      %p60 = scmp.ne.s32.totalorder %s49, %s52
      %p61 = scmp.eq.s32.totalorder %s18, 1
      %p62 = por %p60, %p61
      %p63 = scmp.ne.s32.totalorder %s52, %s53
      %p64 = scmp.eq.s32.totalorder %s18, 0
      %p65 = por %p63, %p64
      %p66 = scmp.ne.s32.totalorder %s52, %s53
      %p67 = scmp.eq.s32.totalorder %s19, 1
      %p68 = por %p66, %p67
      %p70 = scmp.ne.s32.totalorder %s53, %s69
      %p71 = scmp.eq.s32.totalorder %s19, 0
      %p72 = por %p70, %p71
      %s74 = sadd.s32 %s73, 1
      %p77 = scmp.eq.s32.totalorder %s13, 1
      %p78 = scmp.ne.s32.totalorder %s73, %s75
      %p79 = scmp.eq.s32.totalorder %s13, 0
      %p80 = por %p78, %p79
      %p81 = scmp.ne.s32.totalorder %s73, %s75
      %p82 = scmp.eq.s32.totalorder %s18, 1
      %p83 = por %p81, %p82
      %p84 = scmp.ne.s32.totalorder %s75, %s76
      %p85 = scmp.eq.s32.totalorder %s18, 0
      %p86 = por %p84, %p85
      %p87 = scmp.ne.s32.totalorder %s75, %s76
      %p88 = scmp.eq.s32.totalorder %s19, 1
      %p89 = por %p87, %p88
      %p91 = scmp.ne.s32.totalorder %s76, %s90
      %p92 = scmp.eq.s32.totalorder %s19, 0
      %p93 = por %p91, %p92
      %s95 = sadd.s32 %s94, 1
      %p98 = scmp.eq.s32.totalorder %s13, 1
      %p99 = scmp.ne.s32.totalorder %s94, %s96
      %p100 = scmp.eq.s32.totalorder %s13, 0
      %p101 = por %p99, %p100
      %p102 = scmp.ne.s32.totalorder %s94, %s96
      %p103 = scmp.eq.s32.totalorder %s18, 1
      %p104 = por %p102, %p103
      %p105 = scmp.ne.s32.totalorder %s96, %s97
      %p106 = scmp.eq.s32.totalorder %s18, 0
      %p107 = por %p105, %p106
      %p108 = scmp.ne.s32.totalorder %s96, %s97
      %p109 = scmp.eq.s32.totalorder %s19, 1
      %p110 = por %p108, %p109
      %p112 = scmp.ne.s32.totalorder %s97, %s111
      %p113 = scmp.eq.s32.totalorder %s19, 0
      %p114 = por %p112, %p113
      %s115 = ssub.s32 %s13, %s20
      %p116 = scmp.eq.s32.totalorder %s115, 0
      %s118 = sadd.s32 %s117, 1
      %s119 = scalar_select %p116, %s117, %s118
      %p122 = pneg %p116
      %p123 = scmp.eq.s32.totalorder %s13, 1
      %p124 = por %p122, %p123
      %p125 = scmp.ne.s32.totalorder %s117, %s120
      %p126 = scmp.eq.s32.totalorder %s13, 0
      %p127 = por %p125, %p126
      %p128 = scmp.ne.s32.totalorder %s117, %s120
      %p129 = scmp.eq.s32.totalorder %s18, 1
      %p130 = por %p128, %p129
      %p131 = scmp.ne.s32.totalorder %s120, %s121
      %p132 = scmp.eq.s32.totalorder %s18, 0
      %p133 = por %p131, %p132
      %p134 = scmp.ne.s32.totalorder %s120, %s121
      %p135 = scmp.eq.s32.totalorder %s19, 1
      %p136 = por %p134, %p135
      %p138 = scmp.ne.s32.totalorder %s121, %s137
      %p139 = scmp.eq.s32.totalorder %s19, 0
      %p140 = por %p138, %p139
      %p141 = scmp.le.s32.totalorder 1, %s13
      %p142 = scmp.lt.s32.totalorder %s13, 3
      %p143 = pnand %p141, %p142
      %p144 = pneg %p143
      // Predicated region
      $region9: #{tpu_custom_call.1} parent=5 // pred_check
        _
      $region10: #{tpu_custom_call.1} parent=5 // pred_check_branch
        %146 = sbr.rel (%p143) target = $region12
      $region11: #{tpu_custom_call.1} parent=5 // pred_region
        %s147 = ssub.s32 %s13, 1
        // Predicated region
        $region13: #{tpu_custom_call.1} parent=11 // pred_check
          %p148 = pneg %p86
        $region14: #{tpu_custom_call.1} parent=11 // pred_check_branch
          %150 = sbr.rel (%p148) target = $region16
        $region15: #{tpu_custom_call.1} parent=11 // pred_region
          _
        $region16: #{tpu_custom_call.1} parent=11 // pred_fallthru
          _
        // Predicated region
        $region17: #{tpu_custom_call.1} parent=11 // pred_check
          %p151 = pneg %p107
        $region18: #{tpu_custom_call.1} parent=11 // pred_check_branch
          %153 = sbr.rel (%p151) target = $region20
        $region19: #{tpu_custom_call.1} parent=11 // pred_region
          _
        $region20: #{tpu_custom_call.1} parent=11 // pred_fallthru
          _
      $region12: #{tpu_custom_call.1} parent=5 // pred_fallthru
        _
      %p154 = scmp.lt.s32.totalorder %s13, 2
      // Predicated region
      $region21: #{tpu_custom_call.1} parent=5 // pred_check
        %p155 = pneg %p154
      $region22: #{tpu_custom_call.1} parent=5 // pred_check_branch
        %157 = sbr.rel (%p155) target = $region24
      $region23: #{tpu_custom_call.1} parent=5 // pred_region
        // Predicated region
        $region25: #{tpu_custom_call.1} parent=23 // pred_check
          %p158 = pneg %p33
        $region26: #{tpu_custom_call.1} parent=23 // pred_check_branch
          %160 = sbr.rel (%p158) target = $region28
        $region27: #{tpu_custom_call.1} parent=23 // pred_region
          %s161 = sand.u32 %s23, 1
          %s162 = scalar_lea.sflag [#allocation3], %s161
          %s163 = sand.u32 %s23, 1
          %s164 = smul.addr %s163, 864
          %s165 = scalar_lea.vmem [#allocation2], %s164
          %s166 = smul.u32 2, %s13
          %s168 = ssub.s32 13824, 13824
          %169 = vsyncadd %s162, %s168
          %s170 = smul.addr %s166, 108
          %s171 = smul.addr %s170, 64
          %s172 = scalar_lea.hbm %s0, %s171
          %s173 = sshll.u32 %s165, 4
          %s174 = int_to_ptr.vmem [resolvable:$true] %s173
          %179 = dma.hbm_to_vmem [thread:$0]  %s172, 13824, %s174, %s162, 192, 192, 12
        $region28: #{tpu_custom_call.1} parent=23 // pred_fallthru
          _
        // Predicated region
        $region29: #{tpu_custom_call.1} parent=23 // pred_check
          %p180 = pneg %p59
        $region30: #{tpu_custom_call.1} parent=23 // pred_check_branch
          %182 = sbr.rel (%p180) target = $region32
        $region31: #{tpu_custom_call.1} parent=23 // pred_region
          %s183 = smul.u32 64, %s13
          %p184 = scmp.lt.s32.totalorder %s183, 127
          %s185 = scalar_select %p184, %s183, 127
          %s186 = smul.addr %s185, 8
          %s187 = scalar_lea.vmem %s1, %s186
          %s188 = smul.u32 64, %s13
        $region32: #{tpu_custom_call.1} parent=23 // pred_fallthru
          _
      $region24: #{tpu_custom_call.1} parent=5 // pred_fallthru
        _
      %p189 = scmp.le.s32.totalorder 1, %s13
      %p190 = scmp.lt.s32.totalorder %s13, 3
      %p191 = pnand %p189, %p190
      %p192 = pneg %p191
      // Predicated region
      $region33: #{tpu_custom_call.1} parent=5 // pred_check
        _
      $region34: #{tpu_custom_call.1} parent=5 // pred_check_branch
        %194 = sbr.rel (%p191) target = $region36
      $region35: #{tpu_custom_call.1} parent=5 // pred_region
        %s195 = ssub.s32 %s13, 1
        %s196 = sand.u32 %s26, 1
        %s197 = scalar_lea.sflag [#allocation3], %s196
        %s198 = sand.u32 %s26, 1
        %s199 = smul.addr %s198, 864
        %s200 = scalar_lea.vmem [#allocation2], %s199
        // Predicated region
        $region37: #{tpu_custom_call.1} parent=35 // pred_check
          %p201 = pneg %p39
        $region38: #{tpu_custom_call.1} parent=35 // pred_check_branch
          %203 = sbr.rel (%p201) target = $region40
        $region39: #{tpu_custom_call.1} parent=35 // pred_region
          %204 = dma.done %s197, 13824
        $region40: #{tpu_custom_call.1} parent=35 // pred_fallthru
          _
        %s205 = sand.u32 %s26, 1
        %s206 = scalar_lea.sflag [#allocation3], %s205
        %s207 = sand.u32 %s26, 1
        %s208 = smul.addr %s207, 864
        %s209 = scalar_lea.vmem [#allocation2], %s208
        %p210 = pneg %p39
        %p211 = pneg %p36
        %s212 = smul.u32 64, %s18
        %p213 = scmp.lt.s32.totalorder %s212, 127
        %s214 = scalar_select %p213, %s212, 127
        %s215 = smul.addr %s214, 8
        %s216 = scalar_lea.vmem %s1, %s215
        %p217 = pneg %p65
        %p218 = pneg %p62
        %p219 = pneg %p86
        %p220 = pneg %p83
        %p221 = pneg %p107
        %p222 = pneg %p104
        %p223 = pneg %p133
        %p224 = pneg %p130
        %s225 = smul.u32 64, %s18
        %p226 = scmp.lt.s32.totalorder %s225, 127
        %s227 = scalar_select %p226, %s225, 127
        %s228 = smul.addr %s227, 8
        %s229 = scalar_lea.vmem %s4, %s228
        %s230 = smul.u32 2, %s18
        %s231 = smul.u32 64, %s18
        %p232 = scmp.lt.s32.totalorder %s231, 127
        %s233 = scalar_select %p232, %s231, 127
        %s234 = smul.addr %s233, 8
        %s235 = scalar_lea.vmem %s1, %s234
        %s236 = smul.u32 64, %s18
        %s237 = smul.u32 64, %s18
        %p238 = scmp.lt.s32.totalorder %s237, 127
        %s239 = scalar_select %p238, %s237, 127
        %s240 = smul.addr %s239, 8
        %s241 = scalar_lea.vmem %s4, %s240
        %s242 = smul.u32 64, %s18
        %v244 = vld [vmem:[%s3] sm:$0x1]
        %v246 = vlaneseq
        %v247 = vshrl.u32 %v246, 7
        %v248 = vsub.s32 0, %v247
        %v249 = vrot.slane %v244, %v248
        %v251 = vld [vmem:[%s200] sm:$0xff]
        %v252 = vld [vmem:[%s200 + $0x8] sm:$0xf]
        %v253 = vld [vmem:[%s200 + $0xc] sm:$0xff]
        %v254 = vld [vmem:[%s200 + $0x14] sm:$0xf]
        %v255 = vld [vmem:[%s200 + $0x18] sm:$0xff]
        %v256 = vld [vmem:[%s200 + $0x20] sm:$0xf]
        %v257 = vld [vmem:[%s200 + $0x24] sm:$0xff]
        %v258 = vld [vmem:[%s200 + $0x2c] sm:$0xf]
        %v259 = vld [vmem:[%s200 + $0x30] sm:$0xff]
        %v260 = vld [vmem:[%s200 + $0x38] sm:$0xf]
        %v261 = vld [vmem:[%s200 + $0x3c] sm:$0xff]
        %v262 = vld [vmem:[%s200 + $0x44] sm:$0xf]
        %v263 = vld [vmem:[%s200 + $0x48] sm:$0xff]
        %v264 = vld [vmem:[%s200 + $0x50] sm:$0xf]
        %v265 = vld [vmem:[%s200 + $0x54] sm:$0xff]
        %v266 = vld [vmem:[%s200 + $0x5c] sm:$0xf]
        %v267 = vld [vmem:[%s200 + $0x60] sm:$0xff]
        %v268 = vld [vmem:[%s200 + $0x68] sm:$0xf]
        %v269 = vld [vmem:[%s200 + $0x6c] sm:$0xff]
        %v270 = vld [vmem:[%s200 + $0x74] sm:$0xf]
        %v271 = vld [vmem:[%s200 + $0x78] sm:$0xff]
        %v272 = vld [vmem:[%s200 + $0x80] sm:$0xf]
        %v273 = vld [vmem:[%s200 + $0x84] sm:$0xff]
        %v274 = vld [vmem:[%s200 + $0x8c] sm:$0xf]
        %v275 = vld [vmem:[%s200 + $0x90] sm:$0xff]
        %v276 = vld [vmem:[%s200 + $0x98] sm:$0xf]
        %v277 = vld [vmem:[%s200 + $0x9c] sm:$0xff]
        %v278 = vld [vmem:[%s200 + $0xa4] sm:$0xf]
        %v279 = vld [vmem:[%s200 + $0xa8] sm:$0xff]
        %v280 = vld [vmem:[%s200 + $0xb0] sm:$0xf]
        %v281 = vld [vmem:[%s200 + $0xb4] sm:$0xff]
        %v282 = vld [vmem:[%s200 + $0xbc] sm:$0xf]
        %v283 = vld [vmem:[%s200 + $0xc0] sm:$0xff]
        %v284 = vld [vmem:[%s200 + $0xc8] sm:$0xf]
        %v285 = vld [vmem:[%s200 + $0xcc] sm:$0xff]
        %v286 = vld [vmem:[%s200 + $0xd4] sm:$0xf]
        %v287 = vld [vmem:[%s200 + $0xd8] sm:$0xff]
        %v288 = vld [vmem:[%s200 + $0xe0] sm:$0xf]
        %v289 = vld [vmem:[%s200 + $0xe4] sm:$0xff]
        %v290 = vld [vmem:[%s200 + $0xec] sm:$0xf]
        %v291 = vld [vmem:[%s200 + $0xf0] sm:$0xff]
        %v292 = vld [vmem:[%s200 + $0xf8] sm:$0xf]
        %v293 = vld [vmem:[%s200 + $0xfc] sm:$0xff]
        %v294 = vld [vmem:[%s200 + $0x104] sm:$0xf]
        %v295 = vld [vmem:[%s200 + $0x108] sm:$0xff]
        %v296 = vld [vmem:[%s200 + $0x110] sm:$0xf]
        %v297 = vld [vmem:[%s200 + $0x114] sm:$0xff]
        %v298 = vld [vmem:[%s200 + $0x11c] sm:$0xf]
        %v299 = vld [vmem:[%s200 + $0x120] sm:$0xff]
        %v300 = vld [vmem:[%s200 + $0x128] sm:$0xf]
        %v301 = vld [vmem:[%s200 + $0x12c] sm:$0xff]
        %v302 = vld [vmem:[%s200 + $0x134] sm:$0xf]
        %v303 = vld [vmem:[%s200 + $0x138] sm:$0xff]
        %v304 = vld [vmem:[%s200 + $0x140] sm:$0xf]
        %v305 = vld [vmem:[%s200 + $0x144] sm:$0xff]
        %v306 = vld [vmem:[%s200 + $0x14c] sm:$0xf]
        %v307 = vld [vmem:[%s200 + $0x150] sm:$0xff]
        %v308 = vld [vmem:[%s200 + $0x158] sm:$0xf]
        %v309 = vld [vmem:[%s200 + $0x15c] sm:$0xff]
        %v310 = vld [vmem:[%s200 + $0x164] sm:$0xf]
        %v311 = vld [vmem:[%s200 + $0x168] sm:$0xff]
        %v312 = vld [vmem:[%s200 + $0x170] sm:$0xf]
        %v313 = vld [vmem:[%s200 + $0x174] sm:$0xff]
        %v314 = vld [vmem:[%s200 + $0x17c] sm:$0xf]
        %v315 = vld [vmem:[%s200 + $0x1b0] sm:$0xff]
        %v316 = vld [vmem:[%s200 + $0x1b8] sm:$0xf]
        %v317 = vld [vmem:[%s200 + $0x1bc] sm:$0xff]
        %v318 = vld [vmem:[%s200 + $0x1c4] sm:$0xf]
        %v319 = vld [vmem:[%s200 + $0x1c8] sm:$0xff]
        %v320 = vld [vmem:[%s200 + $0x1d0] sm:$0xf]
        %v321 = vld [vmem:[%s200 + $0x1d4] sm:$0xff]
        %v322 = vld [vmem:[%s200 + $0x1dc] sm:$0xf]
        %v323 = vld [vmem:[%s200 + $0x1e0] sm:$0xff]
        %v324 = vld [vmem:[%s200 + $0x1e8] sm:$0xf]
        %v325 = vld [vmem:[%s200 + $0x1ec] sm:$0xff]
        %v326 = vld [vmem:[%s200 + $0x1f4] sm:$0xf]
        %v327 = vld [vmem:[%s200 + $0x1f8] sm:$0xff]
        %v328 = vld [vmem:[%s200 + $0x200] sm:$0xf]
        %v329 = vld [vmem:[%s200 + $0x204] sm:$0xff]
        %v330 = vld [vmem:[%s200 + $0x20c] sm:$0xf]
        %v331 = vld [vmem:[%s200 + $0x210] sm:$0xff]
        %v332 = vld [vmem:[%s200 + $0x218] sm:$0xf]
        %v333 = vld [vmem:[%s200 + $0x21c] sm:$0xff]
        %v334 = vld [vmem:[%s200 + $0x224] sm:$0xf]
        %v335 = vld [vmem:[%s200 + $0x228] sm:$0xff]
        %v336 = vld [vmem:[%s200 + $0x230] sm:$0xf]
        %v337 = vld [vmem:[%s200 + $0x234] sm:$0xff]
        %v338 = vld [vmem:[%s200 + $0x23c] sm:$0xf]
        %v339 = vld [vmem:[%s200 + $0x240] sm:$0xff]
        %v340 = vld [vmem:[%s200 + $0x248] sm:$0xf]
        %v341 = vld [vmem:[%s200 + $0x24c] sm:$0xff]
        %v342 = vld [vmem:[%s200 + $0x254] sm:$0xf]
        %v343 = vld [vmem:[%s200 + $0x258] sm:$0xff]
        %v344 = vld [vmem:[%s200 + $0x260] sm:$0xf]
        %v345 = vld [vmem:[%s200 + $0x264] sm:$0xff]
        %v346 = vld [vmem:[%s200 + $0x26c] sm:$0xf]
        %v347 = vld [vmem:[%s200 + $0x270] sm:$0xff]
        %v348 = vld [vmem:[%s200 + $0x278] sm:$0xf]
        %v349 = vld [vmem:[%s200 + $0x27c] sm:$0xff]
        %v350 = vld [vmem:[%s200 + $0x284] sm:$0xf]
        %v351 = vld [vmem:[%s200 + $0x288] sm:$0xff]
        %v352 = vld [vmem:[%s200 + $0x290] sm:$0xf]
        %v353 = vld [vmem:[%s200 + $0x294] sm:$0xff]
        %v354 = vld [vmem:[%s200 + $0x29c] sm:$0xf]
        %v355 = vld [vmem:[%s200 + $0x2a0] sm:$0xff]
        %v356 = vld [vmem:[%s200 + $0x2a8] sm:$0xf]
        %v357 = vld [vmem:[%s200 + $0x2ac] sm:$0xff]
        %v358 = vld [vmem:[%s200 + $0x2b4] sm:$0xf]
        %v359 = vld [vmem:[%s200 + $0x2b8] sm:$0xff]
        %v360 = vld [vmem:[%s200 + $0x2c0] sm:$0xf]
        %v361 = vld [vmem:[%s200 + $0x2c4] sm:$0xff]
        %v362 = vld [vmem:[%s200 + $0x2cc] sm:$0xf]
        %v363 = vld [vmem:[%s200 + $0x2d0] sm:$0xff]
        %v364 = vld [vmem:[%s200 + $0x2d8] sm:$0xf]
        %v365 = vld [vmem:[%s200 + $0x2dc] sm:$0xff]
        %v366 = vld [vmem:[%s200 + $0x2e4] sm:$0xf]
        %v367 = vld [vmem:[%s200 + $0x2e8] sm:$0xff]
        %v368 = vld [vmem:[%s200 + $0x2f0] sm:$0xf]
        %v369 = vld [vmem:[%s200 + $0x2f4] sm:$0xff]
        %v370 = vld [vmem:[%s200 + $0x2fc] sm:$0xf]
        %v371 = vld [vmem:[%s200 + $0x300] sm:$0xff]
        %v372 = vld [vmem:[%s200 + $0x308] sm:$0xf]
        %v373 = vld [vmem:[%s200 + $0x30c] sm:$0xff]
        %v374 = vld [vmem:[%s200 + $0x314] sm:$0xf]
        %v375 = vld [vmem:[%s200 + $0x318] sm:$0xff]
        %v376 = vld [vmem:[%s200 + $0x320] sm:$0xf]
        %v377 = vld [vmem:[%s200 + $0x324] sm:$0xff]
        %v378 = vld [vmem:[%s200 + $0x32c] sm:$0xf]
        %v379 = vld [vmem:[%s2] sm:$0xf]
        %v380 = vld [vmem:[%s2 + $0x4] sm:$0xf]
        %v381 = vld [vmem:[%s2 + $0x8] sm:$0xf]
        %v382 = vld [vmem:[%s2 + $0xc] sm:$0xf]
        %v383 = vld [vmem:[%s2 + $0x10] sm:$0xf]
        %v384 = vld [vmem:[%s2 + $0x14] sm:$0xf]
        %v385 = vld [vmem:[%s2 + $0x18] sm:$0xf]
        %v386 = vld [vmem:[%s2 + $0x1c] sm:$0xf]
        %v387 = vld [vmem:[%s2 + $0x20] sm:$0xf]
        %v388 = vld [vmem:[%s2 + $0x24] sm:$0xf]
        %v389 = vld [vmem:[%s2 + $0x28] sm:$0xf]
        %v390 = vld [vmem:[%s2 + $0x2c] sm:$0xf]
        %v391 = vld [vmem:[%s2 + $0x30] sm:$0xf]
        %v392 = vld [vmem:[%s2 + $0x34] sm:$0xf]
        %v393 = vld [vmem:[%s2 + $0x38] sm:$0xf]
        %v394 = vld [vmem:[%s2 + $0x3c] sm:$0xf]
        %v395 = vld [vmem:[%s2 + $0x40] sm:$0xf]
        %v396 = vld [vmem:[%s2 + $0x44] sm:$0xf]
        %v397 = vld [vmem:[%s2 + $0x48] sm:$0xf]
        %v398 = vld [vmem:[%s2 + $0x4c] sm:$0xf]
        %v399 = vld [vmem:[%s2 + $0x50] sm:$0xf]
        %v400 = vld [vmem:[%s2 + $0x54] sm:$0xf]
        %v401 = vld [vmem:[%s2 + $0x58] sm:$0xf]
        %v402 = vld [vmem:[%s2 + $0x5c] sm:$0xf]
        %v403 = vld [vmem:[%s2 + $0x60] sm:$0xf]
        %v404 = vld [vmem:[%s2 + $0x64] sm:$0xf]
        %v405 = vld [vmem:[%s2 + $0x68] sm:$0xf]
        %v406 = vld [vmem:[%s2 + $0x6c] sm:$0xf]
        %v407 = vld [vmem:[%s2 + $0x70] sm:$0xf]
        %v408 = vld [vmem:[%s2 + $0x74] sm:$0xf]
        %v409 = vld [vmem:[%s2 + $0x78] sm:$0xf]
        %v410 = vld [vmem:[%s2 + $0x7c] sm:$0xf]
        %v411 = vld [vmem:[%s2 + $0x80] sm:$0xf]
        %v412 = vld [vmem:[%s2 + $0x84] sm:$0xf]
        %v413 = vld [vmem:[%s2 + $0x88] sm:$0xf]
        %v414 = vld [vmem:[%s2 + $0x8c] sm:$0xf]
        %v415 = vld [vmem:[%s2 + $0x90] sm:$0xf]
        %v416 = vld [vmem:[%s2 + $0x94] sm:$0xf]
        %v417 = vld [vmem:[%s2 + $0x98] sm:$0xf]
        %v418 = vld [vmem:[%s2 + $0x9c] sm:$0xf]
        %v419 = vld [vmem:[%s2 + $0xa0] sm:$0xf]
        %v420 = vld [vmem:[%s2 + $0xa4] sm:$0xf]
        %v421 = vld [vmem:[%s2 + $0xa8] sm:$0xf]
        %v422 = vld [vmem:[%s2 + $0xac] sm:$0xf]
        %v423 = vld [vmem:[%s2 + $0xb0] sm:$0xf]
        %v424 = vld [vmem:[%s2 + $0xb4] sm:$0xf]
        %v425 = vld [vmem:[%s2 + $0xb8] sm:$0xf]
        %v426 = vld [vmem:[%s2 + $0xbc] sm:$0xf]
        %v555 = vunpack.c.l.b16 %v251
        %v556 = vunpack.c.h.b16 %v251
        %v557 = vunpack.c.l.b16 %v252
        %v558 = vunpack.c.l.b16 %v253
        %v559 = vunpack.c.h.b16 %v253
        %v560 = vunpack.c.l.b16 %v254
        %v561 = vunpack.c.l.b16 %v255
        %v562 = vunpack.c.h.b16 %v255
        %v563 = vunpack.c.l.b16 %v256
        %v564 = vunpack.c.l.b16 %v257
        %v565 = vunpack.c.h.b16 %v257
        %v566 = vunpack.c.l.b16 %v258
        %v567 = vunpack.c.l.b16 %v259
        %v568 = vunpack.c.h.b16 %v259
        %v569 = vunpack.c.l.b16 %v260
        %v570 = vunpack.c.l.b16 %v261
        %v571 = vunpack.c.h.b16 %v261
        %v572 = vunpack.c.l.b16 %v262
        %v573 = vunpack.c.l.b16 %v263
        %v574 = vunpack.c.h.b16 %v263
        %v575 = vunpack.c.l.b16 %v264
        %v576 = vunpack.c.l.b16 %v265
        %v577 = vunpack.c.h.b16 %v265
        %v578 = vunpack.c.l.b16 %v266
        %v579 = vunpack.c.l.b16 %v267
        %v580 = vunpack.c.h.b16 %v267
        %v581 = vunpack.c.l.b16 %v268
        %v582 = vunpack.c.l.b16 %v269
        %v583 = vunpack.c.h.b16 %v269
        %v584 = vunpack.c.l.b16 %v270
        %v585 = vunpack.c.l.b16 %v271
        %v586 = vunpack.c.h.b16 %v271
        %v587 = vunpack.c.l.b16 %v272
        %v588 = vunpack.c.l.b16 %v273
        %v589 = vunpack.c.h.b16 %v273
        %v590 = vunpack.c.l.b16 %v274
        %v591 = vunpack.c.l.b16 %v275
        %v592 = vunpack.c.h.b16 %v275
        %v593 = vunpack.c.l.b16 %v276
        %v594 = vunpack.c.l.b16 %v277
        %v595 = vunpack.c.h.b16 %v277
        %v596 = vunpack.c.l.b16 %v278
        %v597 = vunpack.c.l.b16 %v279
        %v598 = vunpack.c.h.b16 %v279
        %v599 = vunpack.c.l.b16 %v280
        %v600 = vunpack.c.l.b16 %v281
        %v601 = vunpack.c.h.b16 %v281
        %v602 = vunpack.c.l.b16 %v282
        %v603 = vunpack.c.l.b16 %v283
        %v604 = vunpack.c.h.b16 %v283
        %v605 = vunpack.c.l.b16 %v284
        %v606 = vunpack.c.l.b16 %v285
        %v607 = vunpack.c.h.b16 %v285
        %v608 = vunpack.c.l.b16 %v286
        %v609 = vunpack.c.l.b16 %v287
        %v610 = vunpack.c.h.b16 %v287
        %v611 = vunpack.c.l.b16 %v288
        %v612 = vunpack.c.l.b16 %v289
        %v613 = vunpack.c.h.b16 %v289
        %v614 = vunpack.c.l.b16 %v290
        %v615 = vunpack.c.l.b16 %v291
        %v616 = vunpack.c.h.b16 %v291
        %v617 = vunpack.c.l.b16 %v292
        %v618 = vunpack.c.l.b16 %v293
        %v619 = vunpack.c.h.b16 %v293
        %v620 = vunpack.c.l.b16 %v294
        %v621 = vunpack.c.l.b16 %v295
        %v622 = vunpack.c.h.b16 %v295
        %v623 = vunpack.c.l.b16 %v296
        %v624 = vunpack.c.l.b16 %v297
        %v625 = vunpack.c.h.b16 %v297
        %v626 = vunpack.c.l.b16 %v298
        %v627 = vunpack.c.l.b16 %v299
        %v628 = vunpack.c.h.b16 %v299
        %v629 = vunpack.c.l.b16 %v300
        %v630 = vunpack.c.l.b16 %v301
        %v631 = vunpack.c.h.b16 %v301
        %v632 = vunpack.c.l.b16 %v302
        %v633 = vunpack.c.l.b16 %v303
        %v634 = vunpack.c.h.b16 %v303
        %v635 = vunpack.c.l.b16 %v304
        %v636 = vunpack.c.l.b16 %v305
        %v637 = vunpack.c.h.b16 %v305
        %v638 = vunpack.c.l.b16 %v306
        %v639 = vunpack.c.l.b16 %v307
        %v640 = vunpack.c.h.b16 %v307
        %v641 = vunpack.c.l.b16 %v308
        %v642 = vunpack.c.l.b16 %v309
        %v643 = vunpack.c.h.b16 %v309
        %v644 = vunpack.c.l.b16 %v310
        %v645 = vunpack.c.l.b16 %v311
        %v646 = vunpack.c.h.b16 %v311
        %v647 = vunpack.c.l.b16 %v312
        %v648 = vunpack.c.l.b16 %v313
        %v649 = vunpack.c.h.b16 %v313
        %v650 = vunpack.c.l.b16 %v314
        %v651 = vunpack.c.l.b16 %v315
        %v652 = vunpack.c.h.b16 %v315
        %v653 = vunpack.c.l.b16 %v316
        %v654 = vunpack.c.l.b16 %v317
        %v655 = vunpack.c.h.b16 %v317
        %v656 = vunpack.c.l.b16 %v318
        %v657 = vunpack.c.l.b16 %v319
        %v658 = vunpack.c.h.b16 %v319
        %v659 = vunpack.c.l.b16 %v320
        %v660 = vunpack.c.l.b16 %v321
        %v661 = vunpack.c.h.b16 %v321
        %v662 = vunpack.c.l.b16 %v322
        %v663 = vunpack.c.l.b16 %v323
        %v664 = vunpack.c.h.b16 %v323
        %v665 = vunpack.c.l.b16 %v324
        %v666 = vunpack.c.l.b16 %v325
        %v667 = vunpack.c.h.b16 %v325
        %v668 = vunpack.c.l.b16 %v326
        %v669 = vunpack.c.l.b16 %v327
        %v670 = vunpack.c.h.b16 %v327
        %v671 = vunpack.c.l.b16 %v328
        %v672 = vunpack.c.l.b16 %v329
        %v673 = vunpack.c.h.b16 %v329
        %v674 = vunpack.c.l.b16 %v330
        %v675 = vunpack.c.l.b16 %v331
        %v676 = vunpack.c.h.b16 %v331
        %v677 = vunpack.c.l.b16 %v332
        %v678 = vunpack.c.l.b16 %v333
        %v679 = vunpack.c.h.b16 %v333
        %v680 = vunpack.c.l.b16 %v334
        %v681 = vunpack.c.l.b16 %v335
        %v682 = vunpack.c.h.b16 %v335
        %v683 = vunpack.c.l.b16 %v336
        %v684 = vunpack.c.l.b16 %v337
        %v685 = vunpack.c.h.b16 %v337
        %v686 = vunpack.c.l.b16 %v338
        %v687 = vunpack.c.l.b16 %v339
        %v688 = vunpack.c.h.b16 %v339
        %v689 = vunpack.c.l.b16 %v340
        %v690 = vunpack.c.l.b16 %v341
        %v691 = vunpack.c.h.b16 %v341
        %v692 = vunpack.c.l.b16 %v342
        %v693 = vunpack.c.l.b16 %v343
        %v694 = vunpack.c.h.b16 %v343
        %v695 = vunpack.c.l.b16 %v344
        %v696 = vunpack.c.l.b16 %v345
        %v697 = vunpack.c.h.b16 %v345
        %v698 = vunpack.c.l.b16 %v346
        %v699 = vunpack.c.l.b16 %v347
        %v700 = vunpack.c.h.b16 %v347
        %v701 = vunpack.c.l.b16 %v348
        %v702 = vunpack.c.l.b16 %v349
        %v703 = vunpack.c.h.b16 %v349
        %v704 = vunpack.c.l.b16 %v350
        %v705 = vunpack.c.l.b16 %v351
        %v706 = vunpack.c.h.b16 %v351
        %v707 = vunpack.c.l.b16 %v352
        %v708 = vunpack.c.l.b16 %v353
        %v709 = vunpack.c.h.b16 %v353
        %v710 = vunpack.c.l.b16 %v354
        %v711 = vunpack.c.l.b16 %v355
        %v712 = vunpack.c.h.b16 %v355
        %v713 = vunpack.c.l.b16 %v356
        %v714 = vunpack.c.l.b16 %v357
        %v715 = vunpack.c.h.b16 %v357
        %v716 = vunpack.c.l.b16 %v358
        %v717 = vunpack.c.l.b16 %v359
        %v718 = vunpack.c.h.b16 %v359
        %v719 = vunpack.c.l.b16 %v360
        %v720 = vunpack.c.l.b16 %v361
        %v721 = vunpack.c.h.b16 %v361
        %v722 = vunpack.c.l.b16 %v362
        %v723 = vunpack.c.l.b16 %v363
        %v724 = vunpack.c.h.b16 %v363
        %v725 = vunpack.c.l.b16 %v364
        %v726 = vunpack.c.l.b16 %v365
        %v727 = vunpack.c.h.b16 %v365
        %v728 = vunpack.c.l.b16 %v366
        %v729 = vunpack.c.l.b16 %v367
        %v730 = vunpack.c.h.b16 %v367
        %v731 = vunpack.c.l.b16 %v368
        %v732 = vunpack.c.l.b16 %v369
        %v733 = vunpack.c.h.b16 %v369
        %v734 = vunpack.c.l.b16 %v370
        %v735 = vunpack.c.l.b16 %v371
        %v736 = vunpack.c.h.b16 %v371
        %v737 = vunpack.c.l.b16 %v372
        %v738 = vunpack.c.l.b16 %v373
        %v739 = vunpack.c.h.b16 %v373
        %v740 = vunpack.c.l.b16 %v374
        %v741 = vunpack.c.l.b16 %v375
        %v742 = vunpack.c.h.b16 %v375
        %v743 = vunpack.c.l.b16 %v376
        %v744 = vunpack.c.l.b16 %v377
        %v745 = vunpack.c.h.b16 %v377
        %v746 = vunpack.c.l.b16 %v378
        %v747 = vpack.c.b16 %v558, %v555
        %v748 = vpack.c.b16 %v559, %v556
        %v749 = vpack.c.b16 %v560, %v557
        %v750 = vpack.c.b16 %v564, %v561
        %v751 = vpack.c.b16 %v565, %v562
        %v752 = vpack.c.b16 %v566, %v563
        %v753 = vpack.c.b16 %v570, %v567
        %v754 = vpack.c.b16 %v571, %v568
        %v755 = vpack.c.b16 %v572, %v569
        %v756 = vpack.c.b16 %v576, %v573
        %v757 = vpack.c.b16 %v577, %v574
        %v758 = vpack.c.b16 %v578, %v575
        %v759 = vpack.c.b16 %v582, %v579
        %v760 = vpack.c.b16 %v583, %v580
        %v761 = vpack.c.b16 %v584, %v581
        %v762 = vpack.c.b16 %v588, %v585
        %v763 = vpack.c.b16 %v589, %v586
        %v764 = vpack.c.b16 %v590, %v587
        %v765 = vpack.c.b16 %v594, %v591
        %v766 = vpack.c.b16 %v595, %v592
        %v767 = vpack.c.b16 %v596, %v593
        %v768 = vpack.c.b16 %v600, %v597
        %v769 = vpack.c.b16 %v601, %v598
        %v770 = vpack.c.b16 %v602, %v599
        %v771 = vpack.c.b16 %v606, %v603
        %v772 = vpack.c.b16 %v607, %v604
        %v773 = vpack.c.b16 %v608, %v605
        %v774 = vpack.c.b16 %v612, %v609
        %v775 = vpack.c.b16 %v613, %v610
        %v776 = vpack.c.b16 %v614, %v611
        %v777 = vpack.c.b16 %v618, %v615
        %v778 = vpack.c.b16 %v619, %v616
        %v779 = vpack.c.b16 %v620, %v617
        %v780 = vpack.c.b16 %v624, %v621
        %v781 = vpack.c.b16 %v625, %v622
        %v782 = vpack.c.b16 %v626, %v623
        %v783 = vpack.c.b16 %v630, %v627
        %v784 = vpack.c.b16 %v631, %v628
        %v785 = vpack.c.b16 %v632, %v629
        %v786 = vpack.c.b16 %v636, %v633
        %v787 = vpack.c.b16 %v637, %v634
        %v788 = vpack.c.b16 %v638, %v635
        %v789 = vpack.c.b16 %v642, %v639
        %v790 = vpack.c.b16 %v643, %v640
        %v791 = vpack.c.b16 %v644, %v641
        %v792 = vpack.c.b16 %v648, %v645
        %v793 = vpack.c.b16 %v649, %v646
        %v794 = vpack.c.b16 %v650, %v647
        %v795 = vpack.c.b16 %v654, %v651
        %v796 = vpack.c.b16 %v655, %v652
        %v797 = vpack.c.b16 %v656, %v653
        %v798 = vpack.c.b16 %v660, %v657
        %v799 = vpack.c.b16 %v661, %v658
        %v800 = vpack.c.b16 %v662, %v659
        %v801 = vpack.c.b16 %v666, %v663
        %v802 = vpack.c.b16 %v667, %v664
        %v803 = vpack.c.b16 %v668, %v665
        %v804 = vpack.c.b16 %v672, %v669
        %v805 = vpack.c.b16 %v673, %v670
        %v806 = vpack.c.b16 %v674, %v671
        %v807 = vpack.c.b16 %v678, %v675
        %v808 = vpack.c.b16 %v679, %v676
        %v809 = vpack.c.b16 %v680, %v677
        %v810 = vpack.c.b16 %v684, %v681
        %v811 = vpack.c.b16 %v685, %v682
        %v812 = vpack.c.b16 %v686, %v683
        %v813 = vpack.c.b16 %v690, %v687
        %v814 = vpack.c.b16 %v691, %v688
        %v815 = vpack.c.b16 %v692, %v689
        %v816 = vpack.c.b16 %v696, %v693
        %v817 = vpack.c.b16 %v697, %v694
        %v818 = vpack.c.b16 %v698, %v695
        %v819 = vpack.c.b16 %v702, %v699
        %v820 = vpack.c.b16 %v703, %v700
        %v821 = vpack.c.b16 %v704, %v701
        %v822 = vpack.c.b16 %v708, %v705
        %v823 = vpack.c.b16 %v709, %v706
        %v824 = vpack.c.b16 %v710, %v707
        %v825 = vpack.c.b16 %v714, %v711
        %v826 = vpack.c.b16 %v715, %v712
        %v827 = vpack.c.b16 %v716, %v713
        %v828 = vpack.c.b16 %v720, %v717
        %v829 = vpack.c.b16 %v721, %v718
        %v830 = vpack.c.b16 %v722, %v719
        %v831 = vpack.c.b16 %v726, %v723
        %v832 = vpack.c.b16 %v727, %v724
        %v833 = vpack.c.b16 %v728, %v725
        %v834 = vpack.c.b16 %v732, %v729
        %v835 = vpack.c.b16 %v733, %v730
        %v836 = vpack.c.b16 %v734, %v731
        %v837 = vpack.c.b16 %v738, %v735
        %v838 = vpack.c.b16 %v739, %v736
        %v839 = vpack.c.b16 %v740, %v737
        %v840 = vpack.c.b16 %v744, %v741
        %v841 = vpack.c.b16 %v745, %v742
        %v842 = vpack.c.b16 %v746, %v743
        %v987 = vunpack.c.l.b16 %v379
        %v988 = vunpack.c.l.b16 %v380
        %v989 = vunpack.c.l.b16 %v381
        %v990 = vunpack.c.l.b16 %v382
        %v991 = vunpack.c.l.b16 %v383
        %v992 = vunpack.c.l.b16 %v384
        %v993 = vunpack.c.l.b16 %v385
        %v994 = vunpack.c.l.b16 %v386
        %v995 = vunpack.c.l.b16 %v387
        %v996 = vunpack.c.l.b16 %v388
        %v997 = vunpack.c.l.b16 %v389
        %v998 = vunpack.c.l.b16 %v390
        %v999 = vunpack.c.l.b16 %v391
        %v1000 = vunpack.c.l.b16 %v392
        %v1001 = vunpack.c.l.b16 %v393
        %v1002 = vunpack.c.l.b16 %v394
        %v1003 = vunpack.c.l.b16 %v395
        %v1004 = vunpack.c.l.b16 %v396
        %v1005 = vunpack.c.l.b16 %v397
        %v1006 = vunpack.c.l.b16 %v398
        %v1007 = vunpack.c.l.b16 %v399
        %v1008 = vunpack.c.l.b16 %v400
        %v1009 = vunpack.c.l.b16 %v401
        %v1010 = vunpack.c.l.b16 %v402
        %v1011 = vunpack.c.l.b16 %v403
        %v1012 = vunpack.c.l.b16 %v404
        %v1013 = vunpack.c.l.b16 %v405
        %v1014 = vunpack.c.l.b16 %v406
        %v1015 = vunpack.c.l.b16 %v407
        %v1016 = vunpack.c.l.b16 %v408
        %v1017 = vunpack.c.l.b16 %v409
        %v1018 = vunpack.c.l.b16 %v410
        %v1019 = vunpack.c.l.b16 %v411
        %v1020 = vunpack.c.l.b16 %v412
        %v1021 = vunpack.c.l.b16 %v413
        %v1022 = vunpack.c.l.b16 %v414
        %v1023 = vunpack.c.l.b16 %v415
        %v1024 = vunpack.c.l.b16 %v416
        %v1025 = vunpack.c.l.b16 %v417
        %v1026 = vunpack.c.l.b16 %v418
        %v1027 = vunpack.c.l.b16 %v419
        %v1028 = vunpack.c.l.b16 %v420
        %v1029 = vunpack.c.l.b16 %v421
        %v1030 = vunpack.c.l.b16 %v422
        %v1031 = vunpack.c.l.b16 %v423
        %v1032 = vunpack.c.l.b16 %v424
        %v1033 = vunpack.c.l.b16 %v425
        %v1034 = vunpack.c.l.b16 %v426
        %v1035 = vpack.c.b16 %v988, %v987
        %v1036 = vpack.c.b16 %v990, %v989
        %v1037 = vpack.c.b16 %v992, %v991
        %v1038 = vpack.c.b16 %v994, %v993
        %v1039 = vpack.c.b16 %v996, %v995
        %v1040 = vpack.c.b16 %v998, %v997
        %v1041 = vpack.c.b16 %v1000, %v999
        %v1042 = vpack.c.b16 %v1002, %v1001
        %v1043 = vpack.c.b16 %v1004, %v1003
        %v1044 = vpack.c.b16 %v1006, %v1005
        %v1045 = vpack.c.b16 %v1008, %v1007
        %v1046 = vpack.c.b16 %v1010, %v1009
        %v1047 = vpack.c.b16 %v1012, %v1011
        %v1048 = vpack.c.b16 %v1014, %v1013
        %v1049 = vpack.c.b16 %v1016, %v1015
        %v1050 = vpack.c.b16 %v1018, %v1017
        %v1051 = vpack.c.b16 %v1020, %v1019
        %v1052 = vpack.c.b16 %v1022, %v1021
        %v1053 = vpack.c.b16 %v1024, %v1023
        %v1054 = vpack.c.b16 %v1026, %v1025
        %v1055 = vpack.c.b16 %v1028, %v1027
        %v1056 = vpack.c.b16 %v1030, %v1029
        %v1057 = vpack.c.b16 %v1032, %v1031
        %v1058 = vpack.c.b16 %v1034, %v1033
        %1083 = vmatprep.subr.bf16.mxu0 0
        %1084 = vmatpush1.bf16.msra.mxu0 %v1042
        %1085 = vmatprep.subr.bf16.mxu0 0
        %1086 = vmatpush1.bf16.msra.mxu0 %v1041
        %1087 = vmatprep.subr.bf16.mxu0 0
        %1088 = vmatpush1.bf16.msra.mxu0 %v1040
        %1089 = vmatprep.subr.bf16.mxu0 0
        %1090 = vmatpush1.bf16.msra.mxu0 %v1039
        %1091 = vmatprep.subr.bf16.mxu0 0
        %1092 = vmatpush1.bf16.msra.mxu0 %v1038
        %1093 = vmatprep.subr.bf16.mxu0 0
        %1094 = vmatpush1.bf16.msra.mxu0 %v1037
        %1095 = vmatprep.subr.bf16.mxu0 0
        %1096 = vmatpush1.bf16.msra.mxu0 %v1036
        %1097 = vmatprep.subr.bf16.mxu0 0
        %1098 = vmatpush1.bf16.msra.mxu0 %v1035
        %1099 = vmatprep.subr.bf16.mxu0 0
        %1100 = vmatpush2.bf16.msra.mxu0 %v1050
        %1101 = vmatprep.subr.bf16.mxu0 0
        %1102 = vmatpush2.bf16.msra.mxu0 %v1049
        %1103 = vmatprep.subr.bf16.mxu0 0
        %1104 = vmatpush2.bf16.msra.mxu0 %v1048
        %1105 = vmatprep.subr.bf16.mxu0 0
        %1106 = vmatpush2.bf16.msra.mxu0 %v1047
        %1107 = vmatprep.subr.bf16.mxu0 0
        %1108 = vmatpush2.bf16.msra.mxu0 %v1046
        %1109 = vmatprep.subr.bf16.mxu0 0
        %1110 = vmatpush2.bf16.msra.mxu0 %v1045
        %1111 = vmatprep.subr.bf16.mxu0 0
        %1112 = vmatpush2.bf16.msra.mxu0 %v1044
        %1113 = vmatprep.subr.bf16.mxu0 0
        %1114 = vmatpush2.bf16.msra.mxu0 %v1043
        %1115 = vmatprep.mubr.bf16.mxu0 %v748
        %1116 = vmatmul.mubr.bf16.gmra.mxu0 %v747
        %v1117 = vpop.f32.mrf.mxu0
        %v1118 = vadd.f32 0.0, %v1117
        %v1119 = vpop.f32.mrf.mxu0
        %v1120 = vpop.f32.mrf.mxu0
        %v1121 = vadd.f32 0.0, %v1120
        %v1122 = vpop.f32.mrf.mxu0
        %1123 = vmatprep.mubr.bf16.mxu0 %v751
        %1124 = vmatmul.mubr.bf16.gmra.mxu0 %v750
        %v1125 = vpop.f32.mrf.mxu0
        %v1126 = vadd.f32 0.0, %v1125
        %v1127 = vpop.f32.mrf.mxu0
        %v1128 = vpop.f32.mrf.mxu0
        %v1129 = vadd.f32 0.0, %v1128
        %v1130 = vpop.f32.mrf.mxu0
        %1131 = vmatprep.mubr.bf16.mxu0 %v754
        %1132 = vmatmul.mubr.bf16.gmra.mxu0 %v753
        %v1133 = vpop.f32.mrf.mxu0
        %v1134 = vadd.f32 0.0, %v1133
        %v1135 = vpop.f32.mrf.mxu0
        %v1136 = vpop.f32.mrf.mxu0
        %v1137 = vadd.f32 0.0, %v1136
        %v1138 = vpop.f32.mrf.mxu0
        %1139 = vmatprep.mubr.bf16.mxu0 %v757
        %1140 = vmatmul.mubr.bf16.gmra.mxu0 %v756
        %v1141 = vpop.f32.mrf.mxu0
        %v1142 = vadd.f32 0.0, %v1141
        %v1143 = vpop.f32.mrf.mxu0
        %v1144 = vpop.f32.mrf.mxu0
        %v1145 = vadd.f32 0.0, %v1144
        %v1146 = vpop.f32.mrf.mxu0
        %1147 = vmatprep.mubr.bf16.mxu0 %v760
        %1148 = vmatmul.mubr.bf16.gmra.mxu0 %v759
        %v1149 = vpop.f32.mrf.mxu0
        %v1150 = vadd.f32 0.0, %v1149
        %v1151 = vpop.f32.mrf.mxu0
        %v1152 = vpop.f32.mrf.mxu0
        %v1153 = vadd.f32 0.0, %v1152
        %v1154 = vpop.f32.mrf.mxu0
        %1155 = vmatprep.mubr.bf16.mxu0 %v763
        %1156 = vmatmul.mubr.bf16.gmra.mxu0 %v762
        %v1157 = vpop.f32.mrf.mxu0
        %v1158 = vadd.f32 0.0, %v1157
        %v1159 = vpop.f32.mrf.mxu0
        %v1160 = vpop.f32.mrf.mxu0
        %v1161 = vadd.f32 0.0, %v1160
        %v1162 = vpop.f32.mrf.mxu0
        %1163 = vmatprep.mubr.bf16.mxu0 %v766
        %1164 = vmatmul.mubr.bf16.gmra.mxu0 %v765
        %v1165 = vpop.f32.mrf.mxu0
        %v1166 = vadd.f32 0.0, %v1165
        %v1167 = vpop.f32.mrf.mxu0
        %v1168 = vpop.f32.mrf.mxu0
        %v1169 = vadd.f32 0.0, %v1168
        %v1170 = vpop.f32.mrf.mxu0
        %1171 = vmatprep.mubr.bf16.mxu0 %v769
        %1172 = vmatmul.mubr.bf16.gmra.mxu0 %v768
        %v1173 = vpop.f32.mrf.mxu0
        %v1174 = vadd.f32 0.0, %v1173
        %v1175 = vpop.f32.mrf.mxu0
        %v1176 = vpop.f32.mrf.mxu0
        %v1177 = vadd.f32 0.0, %v1176
        %v1178 = vpop.f32.mrf.mxu0
        %1179 = vmatprep.mubr.bf16.mxu0 %v772
        %1180 = vmatmul.mubr.bf16.gmra.mxu0 %v771
        %v1181 = vpop.f32.mrf.mxu0
        %v1182 = vadd.f32 0.0, %v1181
        %v1183 = vpop.f32.mrf.mxu0
        %v1184 = vpop.f32.mrf.mxu0
        %v1185 = vadd.f32 0.0, %v1184
        %v1186 = vpop.f32.mrf.mxu0
        %1187 = vmatprep.mubr.bf16.mxu0 %v775
        %1188 = vmatmul.mubr.bf16.gmra.mxu0 %v774
        %v1189 = vpop.f32.mrf.mxu0
        %v1190 = vadd.f32 0.0, %v1189
        %v1191 = vpop.f32.mrf.mxu0
        %v1192 = vpop.f32.mrf.mxu0
        %v1193 = vadd.f32 0.0, %v1192
        %v1194 = vpop.f32.mrf.mxu0
        %1195 = vmatprep.mubr.bf16.mxu0 %v778
        %1196 = vmatmul.mubr.bf16.gmra.mxu0 %v777
        %v1197 = vpop.f32.mrf.mxu0
        %v1198 = vadd.f32 0.0, %v1197
        %v1199 = vpop.f32.mrf.mxu0
        %v1200 = vpop.f32.mrf.mxu0
        %v1201 = vadd.f32 0.0, %v1200
        %v1202 = vpop.f32.mrf.mxu0
        %1203 = vmatprep.mubr.bf16.mxu0 %v781
        %1204 = vmatmul.mubr.bf16.gmra.mxu0 %v780
        %v1205 = vpop.f32.mrf.mxu0
        %v1206 = vadd.f32 0.0, %v1205
        %v1207 = vpop.f32.mrf.mxu0
        %v1208 = vpop.f32.mrf.mxu0
        %v1209 = vadd.f32 0.0, %v1208
        %v1210 = vpop.f32.mrf.mxu0
        %1211 = vmatprep.mubr.bf16.mxu0 %v784
        %1212 = vmatmul.mubr.bf16.gmra.mxu0 %v783
        %v1213 = vpop.f32.mrf.mxu0
        %v1214 = vadd.f32 0.0, %v1213
        %v1215 = vpop.f32.mrf.mxu0
        %v1216 = vpop.f32.mrf.mxu0
        %v1217 = vadd.f32 0.0, %v1216
        %v1218 = vpop.f32.mrf.mxu0
        %1219 = vmatprep.mubr.bf16.mxu0 %v787
        %1220 = vmatmul.mubr.bf16.gmra.mxu0 %v786
        %v1221 = vpop.f32.mrf.mxu0
        %v1222 = vadd.f32 0.0, %v1221
        %v1223 = vpop.f32.mrf.mxu0
        %v1224 = vpop.f32.mrf.mxu0
        %v1225 = vadd.f32 0.0, %v1224
        %v1226 = vpop.f32.mrf.mxu0
        %1227 = vmatprep.mubr.bf16.mxu0 %v790
        %1228 = vmatmul.mubr.bf16.gmra.mxu0 %v789
        %v1229 = vpop.f32.mrf.mxu0
        %v1230 = vadd.f32 0.0, %v1229
        %v1231 = vpop.f32.mrf.mxu0
        %v1232 = vpop.f32.mrf.mxu0
        %v1233 = vadd.f32 0.0, %v1232
        %v1234 = vpop.f32.mrf.mxu0
        %1235 = vmatprep.mubr.bf16.mxu0 %v793
        %1236 = vmatmul.mubr.bf16.gmra.mxu0 %v792
        %v1237 = vpop.f32.mrf.mxu0
        %v1238 = vadd.f32 0.0, %v1237
        %v1239 = vpop.f32.mrf.mxu0
        %v1240 = vpop.f32.mrf.mxu0
        %v1241 = vadd.f32 0.0, %v1240
        %v1242 = vpop.f32.mrf.mxu0
        %1243 = vmatprep.mubr.bf16.mxu0 %v796
        %1244 = vmatmul.mubr.bf16.gmra.mxu0 %v795
        %v1245 = vpop.f32.mrf.mxu0
        %v1246 = vadd.f32 0.0, %v1245
        %v1247 = vpop.f32.mrf.mxu0
        %v1248 = vpop.f32.mrf.mxu0
        %v1249 = vadd.f32 0.0, %v1248
        %v1250 = vpop.f32.mrf.mxu0
        %1251 = vmatprep.mubr.bf16.mxu0 %v799
        %1252 = vmatmul.mubr.bf16.gmra.mxu0 %v798
        %v1253 = vpop.f32.mrf.mxu0
        %v1254 = vadd.f32 0.0, %v1253
        %v1255 = vpop.f32.mrf.mxu0
        %v1256 = vpop.f32.mrf.mxu0
        %v1257 = vadd.f32 0.0, %v1256
        %v1258 = vpop.f32.mrf.mxu0
        %1259 = vmatprep.mubr.bf16.mxu0 %v802
        %1260 = vmatmul.mubr.bf16.gmra.mxu0 %v801
        %v1261 = vpop.f32.mrf.mxu0
        %v1262 = vadd.f32 0.0, %v1261
        %v1263 = vpop.f32.mrf.mxu0
        %v1264 = vpop.f32.mrf.mxu0
        %v1265 = vadd.f32 0.0, %v1264
        %v1266 = vpop.f32.mrf.mxu0
        %1267 = vmatprep.mubr.bf16.mxu0 %v805
        %1268 = vmatmul.mubr.bf16.gmra.mxu0 %v804
        %v1269 = vpop.f32.mrf.mxu0
        %v1270 = vadd.f32 0.0, %v1269
        %v1271 = vpop.f32.mrf.mxu0
        %v1272 = vpop.f32.mrf.mxu0
        %v1273 = vadd.f32 0.0, %v1272
        %v1274 = vpop.f32.mrf.mxu0
        %1275 = vmatprep.mubr.bf16.mxu0 %v808
        %1276 = vmatmul.mubr.bf16.gmra.mxu0 %v807
        %v1277 = vpop.f32.mrf.mxu0
        %v1278 = vadd.f32 0.0, %v1277
        %v1279 = vpop.f32.mrf.mxu0
        %v1280 = vpop.f32.mrf.mxu0
        %v1281 = vadd.f32 0.0, %v1280
        %v1282 = vpop.f32.mrf.mxu0
        %1283 = vmatprep.mubr.bf16.mxu0 %v811
        %1284 = vmatmul.mubr.bf16.gmra.mxu0 %v810
        %v1285 = vpop.f32.mrf.mxu0
        %v1286 = vadd.f32 0.0, %v1285
        %v1287 = vpop.f32.mrf.mxu0
        %v1288 = vpop.f32.mrf.mxu0
        %v1289 = vadd.f32 0.0, %v1288
        %v1290 = vpop.f32.mrf.mxu0
        %1291 = vmatprep.mubr.bf16.mxu0 %v814
        %1292 = vmatmul.mubr.bf16.gmra.mxu0 %v813
        %v1293 = vpop.f32.mrf.mxu0
        %v1294 = vadd.f32 0.0, %v1293
        %v1295 = vpop.f32.mrf.mxu0
        %v1296 = vpop.f32.mrf.mxu0
        %v1297 = vadd.f32 0.0, %v1296
        %v1298 = vpop.f32.mrf.mxu0
        %1299 = vmatprep.mubr.bf16.mxu0 %v817
        %1300 = vmatmul.mubr.bf16.gmra.mxu0 %v816
        %v1301 = vpop.f32.mrf.mxu0
        %v1302 = vadd.f32 0.0, %v1301
        %v1303 = vpop.f32.mrf.mxu0
        %v1304 = vpop.f32.mrf.mxu0
        %v1305 = vadd.f32 0.0, %v1304
        %v1306 = vpop.f32.mrf.mxu0
        %1307 = vmatprep.mubr.bf16.mxu0 %v820
        %1308 = vmatmul.mubr.bf16.gmra.mxu0 %v819
        %v1309 = vpop.f32.mrf.mxu0
        %v1310 = vadd.f32 0.0, %v1309
        %v1311 = vpop.f32.mrf.mxu0
        %v1312 = vpop.f32.mrf.mxu0
        %v1313 = vadd.f32 0.0, %v1312
        %v1314 = vpop.f32.mrf.mxu0
        %1315 = vmatprep.mubr.bf16.mxu0 %v823
        %1316 = vmatmul.mubr.bf16.gmra.mxu0 %v822
        %v1317 = vpop.f32.mrf.mxu0
        %v1318 = vadd.f32 0.0, %v1317
        %v1319 = vpop.f32.mrf.mxu0
        %v1320 = vpop.f32.mrf.mxu0
        %v1321 = vadd.f32 0.0, %v1320
        %v1322 = vpop.f32.mrf.mxu0
        %1323 = vmatprep.mubr.bf16.mxu0 %v826
        %1324 = vmatmul.mubr.bf16.gmra.mxu0 %v825
        %v1325 = vpop.f32.mrf.mxu0
        %v1326 = vadd.f32 0.0, %v1325
        %v1327 = vpop.f32.mrf.mxu0
        %v1328 = vpop.f32.mrf.mxu0
        %v1329 = vadd.f32 0.0, %v1328
        %v1330 = vpop.f32.mrf.mxu0
        %1331 = vmatprep.mubr.bf16.mxu0 %v829
        %1332 = vmatmul.mubr.bf16.gmra.mxu0 %v828
        %v1333 = vpop.f32.mrf.mxu0
        %v1334 = vadd.f32 0.0, %v1333
        %v1335 = vpop.f32.mrf.mxu0
        %v1336 = vpop.f32.mrf.mxu0
        %v1337 = vadd.f32 0.0, %v1336
        %v1338 = vpop.f32.mrf.mxu0
        %1339 = vmatprep.mubr.bf16.mxu0 %v832
        %1340 = vmatmul.mubr.bf16.gmra.mxu0 %v831
        %v1341 = vpop.f32.mrf.mxu0
        %v1342 = vadd.f32 0.0, %v1341
        %v1343 = vpop.f32.mrf.mxu0
        %v1344 = vpop.f32.mrf.mxu0
        %v1345 = vadd.f32 0.0, %v1344
        %v1346 = vpop.f32.mrf.mxu0
        %1347 = vmatprep.mubr.bf16.mxu0 %v835
        %1348 = vmatmul.mubr.bf16.gmra.mxu0 %v834
        %v1349 = vpop.f32.mrf.mxu0
        %v1350 = vadd.f32 0.0, %v1349
        %v1351 = vpop.f32.mrf.mxu0
        %v1352 = vpop.f32.mrf.mxu0
        %v1353 = vadd.f32 0.0, %v1352
        %v1354 = vpop.f32.mrf.mxu0
        %1355 = vmatprep.mubr.bf16.mxu0 %v838
        %1356 = vmatmul.mubr.bf16.gmra.mxu0 %v837
        %v1357 = vpop.f32.mrf.mxu0
        %v1358 = vadd.f32 0.0, %v1357
        %v1359 = vpop.f32.mrf.mxu0
        %v1360 = vpop.f32.mrf.mxu0
        %v1361 = vadd.f32 0.0, %v1360
        %v1362 = vpop.f32.mrf.mxu0
        %1363 = vmatprep.mubr.bf16.mxu0 %v841
        %1364 = vmatmul.mubr.bf16.gmra.mxu0 %v840
        %v1365 = vpop.f32.mrf.mxu0
        %v1366 = vadd.f32 0.0, %v1365
        %v1367 = vpop.f32.mrf.mxu0
        %v1368 = vpop.f32.mrf.mxu0
        %v1369 = vadd.f32 0.0, %v1368
        %v1370 = vpop.f32.mrf.mxu0
        %1371 = vdwg.mxu0
        %1372 = vmatprep.subr.bf16.mxu0 0
        %1373 = vmatpush1.bf16.msra.mxu0 %v1058
        %1374 = vmatprep.subr.bf16.mxu0 0
        %1375 = vmatpush1.bf16.msra.mxu0 %v1057
        %1376 = vmatprep.subr.bf16.mxu0 0
        %1377 = vmatpush1.bf16.msra.mxu0 %v1056
        %1378 = vmatprep.subr.bf16.mxu0 0
        %1379 = vmatpush1.bf16.msra.mxu0 %v1055
        %1380 = vmatprep.subr.bf16.mxu0 0
        %1381 = vmatpush1.bf16.msra.mxu0 %v1054
        %1382 = vmatprep.subr.bf16.mxu0 0
        %1383 = vmatpush1.bf16.msra.mxu0 %v1053
        %1384 = vmatprep.subr.bf16.mxu0 0
        %1385 = vmatpush1.bf16.msra.mxu0 %v1052
        %1386 = vmatprep.subr.bf16.mxu0 0
        %1387 = vmatpush1.bf16.msra.mxu0 %v1051
        %1388 = vmatprep.subr.bf16.mxu0 0
        %1389 = vmatpush2.bf16.msra.mxu0 0
        %1390 = vmatprep.subr.bf16.mxu0 0
        %1391 = vmatpush2.bf16.msra.mxu0 0
        %1392 = vmatprep.subr.bf16.mxu0 0
        %1393 = vmatpush2.bf16.msra.mxu0 0
        %1394 = vmatprep.subr.bf16.mxu0 0
        %1395 = vmatpush2.bf16.msra.mxu0 0
        %1396 = vmatprep.subr.bf16.mxu0 0
        %1397 = vmatpush2.bf16.msra.mxu0 0
        %1398 = vmatprep.subr.bf16.mxu0 0
        %1399 = vmatpush2.bf16.msra.mxu0 0
        %1400 = vmatprep.subr.bf16.mxu0 0
        %1401 = vmatpush2.bf16.msra.mxu0 0
        %1402 = vmatprep.subr.bf16.mxu0 0
        %1403 = vmatpush2.bf16.msra.mxu0 0
        %1404 = vmatprep.mubr.bf16.mxu0 0
        %1405 = vmatmul.mubr.bf16.gmra.mxu0 %v749
        %v1406 = vpop.f32.mrf.mxu0
        %v1407 = vadd.f32 %v1118, %v1406
        %v1408 = vpop.f32.mrf.mxu0
        %v1409 = vpop.f32.mrf.mxu0
        %v1410 = vadd.f32 %v1121, %v1409
        %v1411 = vpop.f32.mrf.mxu0
        %1412 = vmatprep.mubr.bf16.mxu0 0
        %1413 = vmatmul.mubr.bf16.gmra.mxu0 %v752
        %v1414 = vpop.f32.mrf.mxu0
        %v1415 = vadd.f32 %v1126, %v1414
        %v1416 = vpop.f32.mrf.mxu0
        %v1417 = vpop.f32.mrf.mxu0
        %v1418 = vadd.f32 %v1129, %v1417
        %v1419 = vpop.f32.mrf.mxu0
        %1420 = vmatprep.mubr.bf16.mxu0 0
        %1421 = vmatmul.mubr.bf16.gmra.mxu0 %v755
        %v1422 = vpop.f32.mrf.mxu0
        %v1423 = vadd.f32 %v1134, %v1422
        %v1424 = vpop.f32.mrf.mxu0
        %v1425 = vpop.f32.mrf.mxu0
        %v1426 = vadd.f32 %v1137, %v1425
        %v1427 = vpop.f32.mrf.mxu0
        %1428 = vmatprep.mubr.bf16.mxu0 0
        %1429 = vmatmul.mubr.bf16.gmra.mxu0 %v758
        %v1430 = vpop.f32.mrf.mxu0
        %v1431 = vadd.f32 %v1142, %v1430
        %v1432 = vpop.f32.mrf.mxu0
        %v1433 = vpop.f32.mrf.mxu0
        %v1434 = vadd.f32 %v1145, %v1433
        %v1435 = vpop.f32.mrf.mxu0
        %1436 = vmatprep.mubr.bf16.mxu0 0
        %1437 = vmatmul.mubr.bf16.gmra.mxu0 %v761
        %v1438 = vpop.f32.mrf.mxu0
        %v1439 = vadd.f32 %v1150, %v1438
        %v1440 = vpop.f32.mrf.mxu0
        %v1441 = vpop.f32.mrf.mxu0
        %v1442 = vadd.f32 %v1153, %v1441
        %v1443 = vpop.f32.mrf.mxu0
        %1444 = vmatprep.mubr.bf16.mxu0 0
        %1445 = vmatmul.mubr.bf16.gmra.mxu0 %v764
        %v1446 = vpop.f32.mrf.mxu0
        %v1447 = vadd.f32 %v1158, %v1446
        %v1448 = vpop.f32.mrf.mxu0
        %v1449 = vpop.f32.mrf.mxu0
        %v1450 = vadd.f32 %v1161, %v1449
        %v1451 = vpop.f32.mrf.mxu0
        %1452 = vmatprep.mubr.bf16.mxu0 0
        %1453 = vmatmul.mubr.bf16.gmra.mxu0 %v767
        %v1454 = vpop.f32.mrf.mxu0
        %v1455 = vadd.f32 %v1166, %v1454
        %v1456 = vpop.f32.mrf.mxu0
        %v1457 = vpop.f32.mrf.mxu0
        %v1458 = vadd.f32 %v1169, %v1457
        %v1459 = vpop.f32.mrf.mxu0
        %1460 = vmatprep.mubr.bf16.mxu0 0
        %1461 = vmatmul.mubr.bf16.gmra.mxu0 %v770
        %v1462 = vpop.f32.mrf.mxu0
        %v1463 = vadd.f32 %v1174, %v1462
        %v1464 = vpop.f32.mrf.mxu0
        %v1465 = vpop.f32.mrf.mxu0
        %v1466 = vadd.f32 %v1177, %v1465
        %v1467 = vpop.f32.mrf.mxu0
        %1468 = vmatprep.mubr.bf16.mxu0 0
        %1469 = vmatmul.mubr.bf16.gmra.mxu0 %v773
        %v1470 = vpop.f32.mrf.mxu0
        %v1471 = vadd.f32 %v1182, %v1470
        %v1472 = vpop.f32.mrf.mxu0
        %v1473 = vpop.f32.mrf.mxu0
        %v1474 = vadd.f32 %v1185, %v1473
        %v1475 = vpop.f32.mrf.mxu0
        %1476 = vmatprep.mubr.bf16.mxu0 0
        %1477 = vmatmul.mubr.bf16.gmra.mxu0 %v776
        %v1478 = vpop.f32.mrf.mxu0
        %v1479 = vadd.f32 %v1190, %v1478
        %v1480 = vpop.f32.mrf.mxu0
        %v1481 = vpop.f32.mrf.mxu0
        %v1482 = vadd.f32 %v1193, %v1481
        %v1483 = vpop.f32.mrf.mxu0
        %1484 = vmatprep.mubr.bf16.mxu0 0
        %1485 = vmatmul.mubr.bf16.gmra.mxu0 %v779
        %v1486 = vpop.f32.mrf.mxu0
        %v1487 = vadd.f32 %v1198, %v1486
        %v1488 = vpop.f32.mrf.mxu0
        %v1489 = vpop.f32.mrf.mxu0
        %v1490 = vadd.f32 %v1201, %v1489
        %v1491 = vpop.f32.mrf.mxu0
        %1492 = vmatprep.mubr.bf16.mxu0 0
        %1493 = vmatmul.mubr.bf16.gmra.mxu0 %v782
        %v1494 = vpop.f32.mrf.mxu0
        %v1495 = vadd.f32 %v1206, %v1494
        %v1496 = vpop.f32.mrf.mxu0
        %v1497 = vpop.f32.mrf.mxu0
        %v1498 = vadd.f32 %v1209, %v1497
        %v1499 = vpop.f32.mrf.mxu0
        %1500 = vmatprep.mubr.bf16.mxu0 0
        %1501 = vmatmul.mubr.bf16.gmra.mxu0 %v785
        %v1502 = vpop.f32.mrf.mxu0
        %v1503 = vadd.f32 %v1214, %v1502
        %v1504 = vpop.f32.mrf.mxu0
        %v1505 = vpop.f32.mrf.mxu0
        %v1506 = vadd.f32 %v1217, %v1505
        %v1507 = vpop.f32.mrf.mxu0
        %1508 = vmatprep.mubr.bf16.mxu0 0
        %1509 = vmatmul.mubr.bf16.gmra.mxu0 %v788
        %v1510 = vpop.f32.mrf.mxu0
        %v1511 = vadd.f32 %v1222, %v1510
        %v1512 = vpop.f32.mrf.mxu0
        %v1513 = vpop.f32.mrf.mxu0
        %v1514 = vadd.f32 %v1225, %v1513
        %v1515 = vpop.f32.mrf.mxu0
        %1516 = vmatprep.mubr.bf16.mxu0 0
        %1517 = vmatmul.mubr.bf16.gmra.mxu0 %v791
        %v1518 = vpop.f32.mrf.mxu0
        %v1519 = vadd.f32 %v1230, %v1518
        %v1520 = vpop.f32.mrf.mxu0
        %v1521 = vpop.f32.mrf.mxu0
        %v1522 = vadd.f32 %v1233, %v1521
        %v1523 = vpop.f32.mrf.mxu0
        %1524 = vmatprep.mubr.bf16.mxu0 0
        %1525 = vmatmul.mubr.bf16.gmra.mxu0 %v794
        %v1526 = vpop.f32.mrf.mxu0
        %v1527 = vadd.f32 %v1238, %v1526
        %v1528 = vpop.f32.mrf.mxu0
        %v1529 = vpop.f32.mrf.mxu0
        %v1530 = vadd.f32 %v1241, %v1529
        %v1531 = vpop.f32.mrf.mxu0
        %1532 = vmatprep.mubr.bf16.mxu0 0
        %1533 = vmatmul.mubr.bf16.gmra.mxu0 %v797
        %v1534 = vpop.f32.mrf.mxu0
        %v1535 = vadd.f32 %v1246, %v1534
        %v1536 = vpop.f32.mrf.mxu0
        %v1537 = vpop.f32.mrf.mxu0
        %v1538 = vadd.f32 %v1249, %v1537
        %v1539 = vpop.f32.mrf.mxu0
        %1540 = vmatprep.mubr.bf16.mxu0 0
        %1541 = vmatmul.mubr.bf16.gmra.mxu0 %v800
        %v1542 = vpop.f32.mrf.mxu0
        %v1543 = vadd.f32 %v1254, %v1542
        %v1544 = vpop.f32.mrf.mxu0
        %v1545 = vpop.f32.mrf.mxu0
        %v1546 = vadd.f32 %v1257, %v1545
        %v1547 = vpop.f32.mrf.mxu0
        %1548 = vmatprep.mubr.bf16.mxu0 0
        %1549 = vmatmul.mubr.bf16.gmra.mxu0 %v803
        %v1550 = vpop.f32.mrf.mxu0
        %v1551 = vadd.f32 %v1262, %v1550
        %v1552 = vpop.f32.mrf.mxu0
        %v1553 = vpop.f32.mrf.mxu0
        %v1554 = vadd.f32 %v1265, %v1553
        %v1555 = vpop.f32.mrf.mxu0
        %1556 = vmatprep.mubr.bf16.mxu0 0
        %1557 = vmatmul.mubr.bf16.gmra.mxu0 %v806
        %v1558 = vpop.f32.mrf.mxu0
        %v1559 = vadd.f32 %v1270, %v1558
        %v1560 = vpop.f32.mrf.mxu0
        %v1561 = vpop.f32.mrf.mxu0
        %v1562 = vadd.f32 %v1273, %v1561
        %v1563 = vpop.f32.mrf.mxu0
        %1564 = vmatprep.mubr.bf16.mxu0 0
        %1565 = vmatmul.mubr.bf16.gmra.mxu0 %v809
        %v1566 = vpop.f32.mrf.mxu0
        %v1567 = vadd.f32 %v1278, %v1566
        %v1568 = vpop.f32.mrf.mxu0
        %v1569 = vpop.f32.mrf.mxu0
        %v1570 = vadd.f32 %v1281, %v1569
        %v1571 = vpop.f32.mrf.mxu0
        %1572 = vmatprep.mubr.bf16.mxu0 0
        %1573 = vmatmul.mubr.bf16.gmra.mxu0 %v812
        %v1574 = vpop.f32.mrf.mxu0
        %v1575 = vadd.f32 %v1286, %v1574
        %v1576 = vpop.f32.mrf.mxu0
        %v1577 = vpop.f32.mrf.mxu0
        %v1578 = vadd.f32 %v1289, %v1577
        %v1579 = vpop.f32.mrf.mxu0
        %1580 = vmatprep.mubr.bf16.mxu0 0
        %1581 = vmatmul.mubr.bf16.gmra.mxu0 %v815
        %v1582 = vpop.f32.mrf.mxu0
        %v1583 = vadd.f32 %v1294, %v1582
        %v1584 = vpop.f32.mrf.mxu0
        %v1585 = vpop.f32.mrf.mxu0
        %v1586 = vadd.f32 %v1297, %v1585
        %v1587 = vpop.f32.mrf.mxu0
        %1588 = vmatprep.mubr.bf16.mxu0 0
        %1589 = vmatmul.mubr.bf16.gmra.mxu0 %v818
        %v1590 = vpop.f32.mrf.mxu0
        %v1591 = vadd.f32 %v1302, %v1590
        %v1592 = vpop.f32.mrf.mxu0
        %v1593 = vpop.f32.mrf.mxu0
        %v1594 = vadd.f32 %v1305, %v1593
        %v1595 = vpop.f32.mrf.mxu0
        %1596 = vmatprep.mubr.bf16.mxu0 0
        %1597 = vmatmul.mubr.bf16.gmra.mxu0 %v821
        %v1598 = vpop.f32.mrf.mxu0
        %v1599 = vadd.f32 %v1310, %v1598
        %v1600 = vpop.f32.mrf.mxu0
        %v1601 = vpop.f32.mrf.mxu0
        %v1602 = vadd.f32 %v1313, %v1601
        %v1603 = vpop.f32.mrf.mxu0
        %1604 = vmatprep.mubr.bf16.mxu0 0
        %1605 = vmatmul.mubr.bf16.gmra.mxu0 %v824
        %v1606 = vpop.f32.mrf.mxu0
        %v1607 = vadd.f32 %v1318, %v1606
        %v1608 = vpop.f32.mrf.mxu0
        %v1609 = vpop.f32.mrf.mxu0
        %v1610 = vadd.f32 %v1321, %v1609
        %v1611 = vpop.f32.mrf.mxu0
        %1612 = vmatprep.mubr.bf16.mxu0 0
        %1613 = vmatmul.mubr.bf16.gmra.mxu0 %v827
        %v1614 = vpop.f32.mrf.mxu0
        %v1615 = vadd.f32 %v1326, %v1614
        %v1616 = vpop.f32.mrf.mxu0
        %v1617 = vpop.f32.mrf.mxu0
        %v1618 = vadd.f32 %v1329, %v1617
        %v1619 = vpop.f32.mrf.mxu0
        %1620 = vmatprep.mubr.bf16.mxu0 0
        %1621 = vmatmul.mubr.bf16.gmra.mxu0 %v830
        %v1622 = vpop.f32.mrf.mxu0
        %v1623 = vadd.f32 %v1334, %v1622
        %v1624 = vpop.f32.mrf.mxu0
        %v1625 = vpop.f32.mrf.mxu0
        %v1626 = vadd.f32 %v1337, %v1625
        %v1627 = vpop.f32.mrf.mxu0
        %1628 = vmatprep.mubr.bf16.mxu0 0
        %1629 = vmatmul.mubr.bf16.gmra.mxu0 %v833
        %v1630 = vpop.f32.mrf.mxu0
        %v1631 = vadd.f32 %v1342, %v1630
        %v1632 = vpop.f32.mrf.mxu0
        %v1633 = vpop.f32.mrf.mxu0
        %v1634 = vadd.f32 %v1345, %v1633
        %v1635 = vpop.f32.mrf.mxu0
        %1636 = vmatprep.mubr.bf16.mxu0 0
        %1637 = vmatmul.mubr.bf16.gmra.mxu0 %v836
        %v1638 = vpop.f32.mrf.mxu0
        %v1639 = vadd.f32 %v1350, %v1638
        %v1640 = vpop.f32.mrf.mxu0
        %v1641 = vpop.f32.mrf.mxu0
        %v1642 = vadd.f32 %v1353, %v1641
        %v1643 = vpop.f32.mrf.mxu0
        %1644 = vmatprep.mubr.bf16.mxu0 0
        %1645 = vmatmul.mubr.bf16.gmra.mxu0 %v839
        %v1646 = vpop.f32.mrf.mxu0
        %v1647 = vadd.f32 %v1358, %v1646
        %v1648 = vpop.f32.mrf.mxu0
        %v1649 = vpop.f32.mrf.mxu0
        %v1650 = vadd.f32 %v1361, %v1649
        %v1651 = vpop.f32.mrf.mxu0
        %1652 = vmatprep.mubr.bf16.mxu0 0
        %1653 = vmatmul.mubr.bf16.gmra.mxu0 %v842
        %v1654 = vpop.f32.mrf.mxu0
        %v1655 = vadd.f32 %v1366, %v1654
        %v1656 = vpop.f32.mrf.mxu0
        %v1657 = vpop.f32.mrf.mxu0
        %v1658 = vadd.f32 %v1369, %v1657
        %v1659 = vpop.f32.mrf.mxu0
        %1660 = vdwg.mxu0
        %v1661 = vadd.f32 %v249, %v1407
        %v1662 = vadd.f32 %v249, %v1410
        %v1663 = vadd.f32 %v249, %v1415
        %v1664 = vadd.f32 %v249, %v1418
        %v1665 = vadd.f32 %v249, %v1423
        %v1666 = vadd.f32 %v249, %v1426
        %v1667 = vadd.f32 %v249, %v1431
        %v1668 = vadd.f32 %v249, %v1434
        %v1669 = vadd.f32 %v249, %v1439
        %v1670 = vadd.f32 %v249, %v1442
        %v1671 = vadd.f32 %v249, %v1447
        %v1672 = vadd.f32 %v249, %v1450
        %v1673 = vadd.f32 %v249, %v1455
        %v1674 = vadd.f32 %v249, %v1458
        %v1675 = vadd.f32 %v249, %v1463
        %v1676 = vadd.f32 %v249, %v1466
        %v1677 = vadd.f32 %v249, %v1471
        %v1678 = vadd.f32 %v249, %v1474
        %v1679 = vadd.f32 %v249, %v1479
        %v1680 = vadd.f32 %v249, %v1482
        %v1681 = vadd.f32 %v249, %v1487
        %v1682 = vadd.f32 %v249, %v1490
        %v1683 = vadd.f32 %v249, %v1495
        %v1684 = vadd.f32 %v249, %v1498
        %v1685 = vadd.f32 %v249, %v1503
        %v1686 = vadd.f32 %v249, %v1506
        %v1687 = vadd.f32 %v249, %v1511
        %v1688 = vadd.f32 %v249, %v1514
        %v1689 = vadd.f32 %v249, %v1519
        %v1690 = vadd.f32 %v249, %v1522
        %v1691 = vadd.f32 %v249, %v1527
        %v1692 = vadd.f32 %v249, %v1530
        %v1693 = vadd.f32 %v249, %v1535
        %v1694 = vadd.f32 %v249, %v1538
        %v1695 = vadd.f32 %v249, %v1543
        %v1696 = vadd.f32 %v249, %v1546
        %v1697 = vadd.f32 %v249, %v1551
        %v1698 = vadd.f32 %v249, %v1554
        %v1699 = vadd.f32 %v249, %v1559
        %v1700 = vadd.f32 %v249, %v1562
        %v1701 = vadd.f32 %v249, %v1567
        %v1702 = vadd.f32 %v249, %v1570
        %v1703 = vadd.f32 %v249, %v1575
        %v1704 = vadd.f32 %v249, %v1578
        %v1705 = vadd.f32 %v249, %v1583
        %v1706 = vadd.f32 %v249, %v1586
        %v1707 = vadd.f32 %v249, %v1591
        %v1708 = vadd.f32 %v249, %v1594
        %v1709 = vadd.f32 %v249, %v1599
        %v1710 = vadd.f32 %v249, %v1602
        %v1711 = vadd.f32 %v249, %v1607
        %v1712 = vadd.f32 %v249, %v1610
        %v1713 = vadd.f32 %v249, %v1615
        %v1714 = vadd.f32 %v249, %v1618
        %v1715 = vadd.f32 %v249, %v1623
        %v1716 = vadd.f32 %v249, %v1626
        %v1717 = vadd.f32 %v249, %v1631
        %v1718 = vadd.f32 %v249, %v1634
        %v1719 = vadd.f32 %v249, %v1639
        %v1720 = vadd.f32 %v249, %v1642
        %v1721 = vadd.f32 %v249, %v1647
        %v1722 = vadd.f32 %v249, %v1650
        %v1723 = vadd.f32 %v249, %v1655
        %v1724 = vadd.f32 %v249, %v1658
        %v1725 = vld [vmem:[%s200 + $0x18] sm:$0xff]
        %v1726 = vld [vmem:[%s200 + $0x20] sm:$0xf]
        %v1727 = vld [vmem:[%s200 + $0x24] sm:$0xff]
        %v1728 = vld [vmem:[%s200 + $0x2c] sm:$0xf]
        %v1729 = vld [vmem:[%s200 + $0x30] sm:$0xff]
        %v1730 = vld [vmem:[%s200 + $0x38] sm:$0xf]
        %v1731 = vld [vmem:[%s200 + $0x3c] sm:$0xff]
        %v1732 = vld [vmem:[%s200 + $0x44] sm:$0xf]
        %v1733 = vld [vmem:[%s200 + $0x48] sm:$0xff]
        %v1734 = vld [vmem:[%s200 + $0x50] sm:$0xf]
        %v1735 = vld [vmem:[%s200 + $0x54] sm:$0xff]
        %v1736 = vld [vmem:[%s200 + $0x5c] sm:$0xf]
        %v1737 = vld [vmem:[%s200 + $0x60] sm:$0xff]
        %v1738 = vld [vmem:[%s200 + $0x68] sm:$0xf]
        %v1739 = vld [vmem:[%s200 + $0x6c] sm:$0xff]
        %v1740 = vld [vmem:[%s200 + $0x74] sm:$0xf]
        %v1741 = vld [vmem:[%s200 + $0x78] sm:$0xff]
        %v1742 = vld [vmem:[%s200 + $0x80] sm:$0xf]
        %v1743 = vld [vmem:[%s200 + $0x84] sm:$0xff]
        %v1744 = vld [vmem:[%s200 + $0x8c] sm:$0xf]
        %v1745 = vld [vmem:[%s200 + $0x90] sm:$0xff]
        %v1746 = vld [vmem:[%s200 + $0x98] sm:$0xf]
        %v1747 = vld [vmem:[%s200 + $0x9c] sm:$0xff]
        %v1748 = vld [vmem:[%s200 + $0xa4] sm:$0xf]
        %v1749 = vld [vmem:[%s200 + $0xa8] sm:$0xff]
        %v1750 = vld [vmem:[%s200 + $0xb0] sm:$0xf]
        %v1751 = vld [vmem:[%s200 + $0xb4] sm:$0xff]
        %v1752 = vld [vmem:[%s200 + $0xbc] sm:$0xf]
        %v1753 = vld [vmem:[%s200 + $0xc0] sm:$0xff]
        %v1754 = vld [vmem:[%s200 + $0xc8] sm:$0xf]
        %v1755 = vld [vmem:[%s200 + $0xcc] sm:$0xff]
        %v1756 = vld [vmem:[%s200 + $0xd4] sm:$0xf]
        %v1757 = vld [vmem:[%s200 + $0xd8] sm:$0xff]
        %v1758 = vld [vmem:[%s200 + $0xe0] sm:$0xf]
        %v1759 = vld [vmem:[%s200 + $0xe4] sm:$0xff]
        %v1760 = vld [vmem:[%s200 + $0xec] sm:$0xf]
        %v1761 = vld [vmem:[%s200 + $0xf0] sm:$0xff]
        %v1762 = vld [vmem:[%s200 + $0xf8] sm:$0xf]
        %v1763 = vld [vmem:[%s200 + $0xfc] sm:$0xff]
        %v1764 = vld [vmem:[%s200 + $0x104] sm:$0xf]
        %v1765 = vld [vmem:[%s200 + $0x108] sm:$0xff]
        %v1766 = vld [vmem:[%s200 + $0x110] sm:$0xf]
        %v1767 = vld [vmem:[%s200 + $0x114] sm:$0xff]
        %v1768 = vld [vmem:[%s200 + $0x11c] sm:$0xf]
        %v1769 = vld [vmem:[%s200 + $0x120] sm:$0xff]
        %v1770 = vld [vmem:[%s200 + $0x128] sm:$0xf]
        %v1771 = vld [vmem:[%s200 + $0x12c] sm:$0xff]
        %v1772 = vld [vmem:[%s200 + $0x134] sm:$0xf]
        %v1773 = vld [vmem:[%s200 + $0x138] sm:$0xff]
        %v1774 = vld [vmem:[%s200 + $0x140] sm:$0xf]
        %v1775 = vld [vmem:[%s200 + $0x144] sm:$0xff]
        %v1776 = vld [vmem:[%s200 + $0x14c] sm:$0xf]
        %v1777 = vld [vmem:[%s200 + $0x150] sm:$0xff]
        %v1778 = vld [vmem:[%s200 + $0x158] sm:$0xf]
        %v1779 = vld [vmem:[%s200 + $0x15c] sm:$0xff]
        %v1780 = vld [vmem:[%s200 + $0x164] sm:$0xf]
        %v1781 = vld [vmem:[%s200 + $0x168] sm:$0xff]
        %v1782 = vld [vmem:[%s200 + $0x170] sm:$0xf]
        %v1783 = vld [vmem:[%s200 + $0x174] sm:$0xff]
        %v1784 = vld [vmem:[%s200 + $0x17c] sm:$0xf]
        %v1785 = vld [vmem:[%s200 + $0x180] sm:$0xff]
        %v1786 = vld [vmem:[%s200 + $0x188] sm:$0xf]
        %v1787 = vld [vmem:[%s200 + $0x18c] sm:$0xff]
        %v1788 = vld [vmem:[%s200 + $0x194] sm:$0xf]
        %v1789 = vld [vmem:[%s200 + $0x1c8] sm:$0xff]
        %v1790 = vld [vmem:[%s200 + $0x1d0] sm:$0xf]
        %v1791 = vld [vmem:[%s200 + $0x1d4] sm:$0xff]
        %v1792 = vld [vmem:[%s200 + $0x1dc] sm:$0xf]
        %v1793 = vld [vmem:[%s200 + $0x1e0] sm:$0xff]
        %v1794 = vld [vmem:[%s200 + $0x1e8] sm:$0xf]
        %v1795 = vld [vmem:[%s200 + $0x1ec] sm:$0xff]
        %v1796 = vld [vmem:[%s200 + $0x1f4] sm:$0xf]
        %v1797 = vld [vmem:[%s200 + $0x1f8] sm:$0xff]
        %v1798 = vld [vmem:[%s200 + $0x200] sm:$0xf]
        %v1799 = vld [vmem:[%s200 + $0x204] sm:$0xff]
        %v1800 = vld [vmem:[%s200 + $0x20c] sm:$0xf]
        %v1801 = vld [vmem:[%s200 + $0x210] sm:$0xff]
        %v1802 = vld [vmem:[%s200 + $0x218] sm:$0xf]
        %v1803 = vld [vmem:[%s200 + $0x21c] sm:$0xff]
        %v1804 = vld [vmem:[%s200 + $0x224] sm:$0xf]
        %v1805 = vld [vmem:[%s200 + $0x228] sm:$0xff]
        %v1806 = vld [vmem:[%s200 + $0x230] sm:$0xf]
        %v1807 = vld [vmem:[%s200 + $0x234] sm:$0xff]
        %v1808 = vld [vmem:[%s200 + $0x23c] sm:$0xf]
        %v1809 = vld [vmem:[%s200 + $0x240] sm:$0xff]
        %v1810 = vld [vmem:[%s200 + $0x248] sm:$0xf]
        %v1811 = vld [vmem:[%s200 + $0x24c] sm:$0xff]
        %v1812 = vld [vmem:[%s200 + $0x254] sm:$0xf]
        %v1813 = vld [vmem:[%s200 + $0x258] sm:$0xff]
        %v1814 = vld [vmem:[%s200 + $0x260] sm:$0xf]
        %v1815 = vld [vmem:[%s200 + $0x264] sm:$0xff]
        %v1816 = vld [vmem:[%s200 + $0x26c] sm:$0xf]
        %v1817 = vld [vmem:[%s200 + $0x270] sm:$0xff]
        %v1818 = vld [vmem:[%s200 + $0x278] sm:$0xf]
        %v1819 = vld [vmem:[%s200 + $0x27c] sm:$0xff]
        %v1820 = vld [vmem:[%s200 + $0x284] sm:$0xf]
        %v1821 = vld [vmem:[%s200 + $0x288] sm:$0xff]
        %v1822 = vld [vmem:[%s200 + $0x290] sm:$0xf]
        %v1823 = vld [vmem:[%s200 + $0x294] sm:$0xff]
        %v1824 = vld [vmem:[%s200 + $0x29c] sm:$0xf]
        %v1825 = vld [vmem:[%s200 + $0x2a0] sm:$0xff]
        %v1826 = vld [vmem:[%s200 + $0x2a8] sm:$0xf]
        %v1827 = vld [vmem:[%s200 + $0x2ac] sm:$0xff]
        %v1828 = vld [vmem:[%s200 + $0x2b4] sm:$0xf]
        %v1829 = vld [vmem:[%s200 + $0x2b8] sm:$0xff]
        %v1830 = vld [vmem:[%s200 + $0x2c0] sm:$0xf]
        %v1831 = vld [vmem:[%s200 + $0x2c4] sm:$0xff]
        %v1832 = vld [vmem:[%s200 + $0x2cc] sm:$0xf]
        %v1833 = vld [vmem:[%s200 + $0x2d0] sm:$0xff]
        %v1834 = vld [vmem:[%s200 + $0x2d8] sm:$0xf]
        %v1835 = vld [vmem:[%s200 + $0x2dc] sm:$0xff]
        %v1836 = vld [vmem:[%s200 + $0x2e4] sm:$0xf]
        %v1837 = vld [vmem:[%s200 + $0x2e8] sm:$0xff]
        %v1838 = vld [vmem:[%s200 + $0x2f0] sm:$0xf]
        %v1839 = vld [vmem:[%s200 + $0x2f4] sm:$0xff]
        %v1840 = vld [vmem:[%s200 + $0x2fc] sm:$0xf]
        %v1841 = vld [vmem:[%s200 + $0x300] sm:$0xff]
        %v1842 = vld [vmem:[%s200 + $0x308] sm:$0xf]
        %v1843 = vld [vmem:[%s200 + $0x30c] sm:$0xff]
        %v1844 = vld [vmem:[%s200 + $0x314] sm:$0xf]
        %v1845 = vld [vmem:[%s200 + $0x318] sm:$0xff]
        %v1846 = vld [vmem:[%s200 + $0x320] sm:$0xf]
        %v1847 = vld [vmem:[%s200 + $0x324] sm:$0xff]
        %v1848 = vld [vmem:[%s200 + $0x32c] sm:$0xf]
        %v1849 = vld [vmem:[%s200 + $0x330] sm:$0xff]
        %v1850 = vld [vmem:[%s200 + $0x338] sm:$0xf]
        %v1851 = vld [vmem:[%s200 + $0x33c] sm:$0xff]
        %v1852 = vld [vmem:[%s200 + $0x344] sm:$0xf]
        %s1853 = scalar_lea.vmem %s2, 192
        %v1854 = vld [vmem:[%s1853] sm:$0xf]
        %v1855 = vld [vmem:[%s1853 + $0x4] sm:$0xf]
        %v1856 = vld [vmem:[%s1853 + $0x8] sm:$0xf]
        %v1857 = vld [vmem:[%s1853 + $0xc] sm:$0xf]
        %v1858 = vld [vmem:[%s1853 + $0x10] sm:$0xf]
        %v1859 = vld [vmem:[%s1853 + $0x14] sm:$0xf]
        %v1860 = vld [vmem:[%s1853 + $0x18] sm:$0xf]
        %v1861 = vld [vmem:[%s1853 + $0x1c] sm:$0xf]
        %v1862 = vld [vmem:[%s1853 + $0x20] sm:$0xf]
        %v1863 = vld [vmem:[%s1853 + $0x24] sm:$0xf]
        %v1864 = vld [vmem:[%s1853 + $0x28] sm:$0xf]
        %v1865 = vld [vmem:[%s1853 + $0x2c] sm:$0xf]
        %v1866 = vld [vmem:[%s1853 + $0x30] sm:$0xf]
        %v1867 = vld [vmem:[%s1853 + $0x34] sm:$0xf]
        %v1868 = vld [vmem:[%s1853 + $0x38] sm:$0xf]
        %v1869 = vld [vmem:[%s1853 + $0x3c] sm:$0xf]
        %v1870 = vld [vmem:[%s1853 + $0x40] sm:$0xf]
        %v1871 = vld [vmem:[%s1853 + $0x44] sm:$0xf]
        %v1872 = vld [vmem:[%s1853 + $0x48] sm:$0xf]
        %v1873 = vld [vmem:[%s1853 + $0x4c] sm:$0xf]
        %v1874 = vld [vmem:[%s1853 + $0x50] sm:$0xf]
        %v1875 = vld [vmem:[%s1853 + $0x54] sm:$0xf]
        %v1876 = vld [vmem:[%s1853 + $0x58] sm:$0xf]
        %v1877 = vld [vmem:[%s1853 + $0x5c] sm:$0xf]
        %v1878 = vld [vmem:[%s1853 + $0x60] sm:$0xf]
        %v1879 = vld [vmem:[%s1853 + $0x64] sm:$0xf]
        %v1880 = vld [vmem:[%s1853 + $0x68] sm:$0xf]
        %v1881 = vld [vmem:[%s1853 + $0x6c] sm:$0xf]
        %v1882 = vld [vmem:[%s1853 + $0x70] sm:$0xf]
        %v1883 = vld [vmem:[%s1853 + $0x74] sm:$0xf]
        %v1884 = vld [vmem:[%s1853 + $0x78] sm:$0xf]
        %v1885 = vld [vmem:[%s1853 + $0x7c] sm:$0xf]
        %v1886 = vld [vmem:[%s1853 + $0x80] sm:$0xf]
        %v1887 = vld [vmem:[%s1853 + $0x84] sm:$0xf]
        %v1888 = vld [vmem:[%s1853 + $0x88] sm:$0xf]
        %v1889 = vld [vmem:[%s1853 + $0x8c] sm:$0xf]
        %v1890 = vld [vmem:[%s1853 + $0x90] sm:$0xf]
        %v1891 = vld [vmem:[%s1853 + $0x94] sm:$0xf]
        %v1892 = vld [vmem:[%s1853 + $0x98] sm:$0xf]
        %v1893 = vld [vmem:[%s1853 + $0x9c] sm:$0xf]
        %v1894 = vld [vmem:[%s1853 + $0xa0] sm:$0xf]
        %v1895 = vld [vmem:[%s1853 + $0xa4] sm:$0xf]
        %v1896 = vld [vmem:[%s1853 + $0xa8] sm:$0xf]
        %v1897 = vld [vmem:[%s1853 + $0xac] sm:$0xf]
        %v1898 = vld [vmem:[%s1853 + $0xb0] sm:$0xf]
        %v1899 = vld [vmem:[%s1853 + $0xb4] sm:$0xf]
        %v1900 = vld [vmem:[%s1853 + $0xb8] sm:$0xf]
        %v1901 = vld [vmem:[%s1853 + $0xbc] sm:$0xf]
        %v2030 = vunpack.c.l.b16 %v1725
        %v2031 = vunpack.c.h.b16 %v1725
        %v2032 = vunpack.c.l.b16 %v1726
        %v2033 = vunpack.c.l.b16 %v1727
        %v2034 = vunpack.c.h.b16 %v1727
        %v2035 = vunpack.c.l.b16 %v1728
        %v2036 = vunpack.c.l.b16 %v1729
        %v2037 = vunpack.c.h.b16 %v1729
        %v2038 = vunpack.c.l.b16 %v1730
        %v2039 = vunpack.c.l.b16 %v1731
        %v2040 = vunpack.c.h.b16 %v1731
        %v2041 = vunpack.c.l.b16 %v1732
        %v2042 = vunpack.c.l.b16 %v1733
        %v2043 = vunpack.c.h.b16 %v1733
        %v2044 = vunpack.c.l.b16 %v1734
        %v2045 = vunpack.c.l.b16 %v1735
        %v2046 = vunpack.c.h.b16 %v1735
        %v2047 = vunpack.c.l.b16 %v1736
        %v2048 = vunpack.c.l.b16 %v1737
        %v2049 = vunpack.c.h.b16 %v1737
        %v2050 = vunpack.c.l.b16 %v1738
        %v2051 = vunpack.c.l.b16 %v1739
        %v2052 = vunpack.c.h.b16 %v1739
        %v2053 = vunpack.c.l.b16 %v1740
        %v2054 = vunpack.c.l.b16 %v1741
        %v2055 = vunpack.c.h.b16 %v1741
        %v2056 = vunpack.c.l.b16 %v1742
        %v2057 = vunpack.c.l.b16 %v1743
        %v2058 = vunpack.c.h.b16 %v1743
        %v2059 = vunpack.c.l.b16 %v1744
        %v2060 = vunpack.c.l.b16 %v1745
        %v2061 = vunpack.c.h.b16 %v1745
        %v2062 = vunpack.c.l.b16 %v1746
        %v2063 = vunpack.c.l.b16 %v1747
        %v2064 = vunpack.c.h.b16 %v1747
        %v2065 = vunpack.c.l.b16 %v1748
        %v2066 = vunpack.c.l.b16 %v1749
        %v2067 = vunpack.c.h.b16 %v1749
        %v2068 = vunpack.c.l.b16 %v1750
        %v2069 = vunpack.c.l.b16 %v1751
        %v2070 = vunpack.c.h.b16 %v1751
        %v2071 = vunpack.c.l.b16 %v1752
        %v2072 = vunpack.c.l.b16 %v1753
        %v2073 = vunpack.c.h.b16 %v1753
        %v2074 = vunpack.c.l.b16 %v1754
        %v2075 = vunpack.c.l.b16 %v1755
        %v2076 = vunpack.c.h.b16 %v1755
        %v2077 = vunpack.c.l.b16 %v1756
        %v2078 = vunpack.c.l.b16 %v1757
        %v2079 = vunpack.c.h.b16 %v1757
        %v2080 = vunpack.c.l.b16 %v1758
        %v2081 = vunpack.c.l.b16 %v1759
        %v2082 = vunpack.c.h.b16 %v1759
        %v2083 = vunpack.c.l.b16 %v1760
        %v2084 = vunpack.c.l.b16 %v1761
        %v2085 = vunpack.c.h.b16 %v1761
        %v2086 = vunpack.c.l.b16 %v1762
        %v2087 = vunpack.c.l.b16 %v1763
        %v2088 = vunpack.c.h.b16 %v1763
        %v2089 = vunpack.c.l.b16 %v1764
        %v2090 = vunpack.c.l.b16 %v1765
        %v2091 = vunpack.c.h.b16 %v1765
        %v2092 = vunpack.c.l.b16 %v1766
        %v2093 = vunpack.c.l.b16 %v1767
        %v2094 = vunpack.c.h.b16 %v1767
        %v2095 = vunpack.c.l.b16 %v1768
        %v2096 = vunpack.c.l.b16 %v1769
        %v2097 = vunpack.c.h.b16 %v1769
        %v2098 = vunpack.c.l.b16 %v1770
        %v2099 = vunpack.c.l.b16 %v1771
        %v2100 = vunpack.c.h.b16 %v1771
        %v2101 = vunpack.c.l.b16 %v1772
        %v2102 = vunpack.c.l.b16 %v1773
        %v2103 = vunpack.c.h.b16 %v1773
        %v2104 = vunpack.c.l.b16 %v1774
        %v2105 = vunpack.c.l.b16 %v1775
        %v2106 = vunpack.c.h.b16 %v1775
        %v2107 = vunpack.c.l.b16 %v1776
        %v2108 = vunpack.c.l.b16 %v1777
        %v2109 = vunpack.c.h.b16 %v1777
        %v2110 = vunpack.c.l.b16 %v1778
        %v2111 = vunpack.c.l.b16 %v1779
        %v2112 = vunpack.c.h.b16 %v1779
        %v2113 = vunpack.c.l.b16 %v1780
        %v2114 = vunpack.c.l.b16 %v1781
        %v2115 = vunpack.c.h.b16 %v1781
        %v2116 = vunpack.c.l.b16 %v1782
        %v2117 = vunpack.c.l.b16 %v1783
        %v2118 = vunpack.c.h.b16 %v1783
        %v2119 = vunpack.c.l.b16 %v1784
        %v2120 = vunpack.c.l.b16 %v1785
        %v2121 = vunpack.c.h.b16 %v1785
        %v2122 = vunpack.c.l.b16 %v1786
        %v2123 = vunpack.c.l.b16 %v1787
        %v2124 = vunpack.c.h.b16 %v1787
        %v2125 = vunpack.c.l.b16 %v1788
        %v2126 = vunpack.c.l.b16 %v1789
        %v2127 = vunpack.c.h.b16 %v1789
        %v2128 = vunpack.c.l.b16 %v1790
        %v2129 = vunpack.c.l.b16 %v1791
        %v2130 = vunpack.c.h.b16 %v1791
        %v2131 = vunpack.c.l.b16 %v1792
        %v2132 = vunpack.c.l.b16 %v1793
        %v2133 = vunpack.c.h.b16 %v1793
        %v2134 = vunpack.c.l.b16 %v1794
        %v2135 = vunpack.c.l.b16 %v1795
        %v2136 = vunpack.c.h.b16 %v1795
        %v2137 = vunpack.c.l.b16 %v1796
        %v2138 = vunpack.c.l.b16 %v1797
        %v2139 = vunpack.c.h.b16 %v1797
        %v2140 = vunpack.c.l.b16 %v1798
        %v2141 = vunpack.c.l.b16 %v1799
        %v2142 = vunpack.c.h.b16 %v1799
        %v2143 = vunpack.c.l.b16 %v1800
        %v2144 = vunpack.c.l.b16 %v1801
        %v2145 = vunpack.c.h.b16 %v1801
        %v2146 = vunpack.c.l.b16 %v1802
        %v2147 = vunpack.c.l.b16 %v1803
        %v2148 = vunpack.c.h.b16 %v1803
        %v2149 = vunpack.c.l.b16 %v1804
        %v2150 = vunpack.c.l.b16 %v1805
        %v2151 = vunpack.c.h.b16 %v1805
        %v2152 = vunpack.c.l.b16 %v1806
        %v2153 = vunpack.c.l.b16 %v1807
        %v2154 = vunpack.c.h.b16 %v1807
        %v2155 = vunpack.c.l.b16 %v1808
        %v2156 = vunpack.c.l.b16 %v1809
        %v2157 = vunpack.c.h.b16 %v1809
        %v2158 = vunpack.c.l.b16 %v1810
        %v2159 = vunpack.c.l.b16 %v1811
        %v2160 = vunpack.c.h.b16 %v1811
        %v2161 = vunpack.c.l.b16 %v1812
        %v2162 = vunpack.c.l.b16 %v1813
        %v2163 = vunpack.c.h.b16 %v1813
        %v2164 = vunpack.c.l.b16 %v1814
        %v2165 = vunpack.c.l.b16 %v1815
        %v2166 = vunpack.c.h.b16 %v1815
        %v2167 = vunpack.c.l.b16 %v1816
        %v2168 = vunpack.c.l.b16 %v1817
        %v2169 = vunpack.c.h.b16 %v1817
        %v2170 = vunpack.c.l.b16 %v1818
        %v2171 = vunpack.c.l.b16 %v1819
        %v2172 = vunpack.c.h.b16 %v1819
        %v2173 = vunpack.c.l.b16 %v1820
        %v2174 = vunpack.c.l.b16 %v1821
        %v2175 = vunpack.c.h.b16 %v1821
        %v2176 = vunpack.c.l.b16 %v1822
        %v2177 = vunpack.c.l.b16 %v1823
        %v2178 = vunpack.c.h.b16 %v1823
        %v2179 = vunpack.c.l.b16 %v1824
        %v2180 = vunpack.c.l.b16 %v1825
        %v2181 = vunpack.c.h.b16 %v1825
        %v2182 = vunpack.c.l.b16 %v1826
        %v2183 = vunpack.c.l.b16 %v1827
        %v2184 = vunpack.c.h.b16 %v1827
        %v2185 = vunpack.c.l.b16 %v1828
        %v2186 = vunpack.c.l.b16 %v1829
        %v2187 = vunpack.c.h.b16 %v1829
        %v2188 = vunpack.c.l.b16 %v1830
        %v2189 = vunpack.c.l.b16 %v1831
        %v2190 = vunpack.c.h.b16 %v1831
        %v2191 = vunpack.c.l.b16 %v1832
        %v2192 = vunpack.c.l.b16 %v1833
        %v2193 = vunpack.c.h.b16 %v1833
        %v2194 = vunpack.c.l.b16 %v1834
        %v2195 = vunpack.c.l.b16 %v1835
        %v2196 = vunpack.c.h.b16 %v1835
        %v2197 = vunpack.c.l.b16 %v1836
        %v2198 = vunpack.c.l.b16 %v1837
        %v2199 = vunpack.c.h.b16 %v1837
        %v2200 = vunpack.c.l.b16 %v1838
        %v2201 = vunpack.c.l.b16 %v1839
        %v2202 = vunpack.c.h.b16 %v1839
        %v2203 = vunpack.c.l.b16 %v1840
        %v2204 = vunpack.c.l.b16 %v1841
        %v2205 = vunpack.c.h.b16 %v1841
        %v2206 = vunpack.c.l.b16 %v1842
        %v2207 = vunpack.c.l.b16 %v1843
        %v2208 = vunpack.c.h.b16 %v1843
        %v2209 = vunpack.c.l.b16 %v1844
        %v2210 = vunpack.c.l.b16 %v1845
        %v2211 = vunpack.c.h.b16 %v1845
        %v2212 = vunpack.c.l.b16 %v1846
        %v2213 = vunpack.c.l.b16 %v1847
        %v2214 = vunpack.c.h.b16 %v1847
        %v2215 = vunpack.c.l.b16 %v1848
        %v2216 = vunpack.c.l.b16 %v1849
        %v2217 = vunpack.c.h.b16 %v1849
        %v2218 = vunpack.c.l.b16 %v1850
        %v2219 = vunpack.c.l.b16 %v1851
        %v2220 = vunpack.c.h.b16 %v1851
        %v2221 = vunpack.c.l.b16 %v1852
        %v2222 = vpack.c.b16 %v2033, %v2030
        %v2223 = vpack.c.b16 %v2034, %v2031
        %v2224 = vpack.c.b16 %v2035, %v2032
        %v2225 = vpack.c.b16 %v2039, %v2036
        %v2226 = vpack.c.b16 %v2040, %v2037
        %v2227 = vpack.c.b16 %v2041, %v2038
        %v2228 = vpack.c.b16 %v2045, %v2042
        %v2229 = vpack.c.b16 %v2046, %v2043
        %v2230 = vpack.c.b16 %v2047, %v2044
        %v2231 = vpack.c.b16 %v2051, %v2048
        %v2232 = vpack.c.b16 %v2052, %v2049
        %v2233 = vpack.c.b16 %v2053, %v2050
        %v2234 = vpack.c.b16 %v2057, %v2054
        %v2235 = vpack.c.b16 %v2058, %v2055
        %v2236 = vpack.c.b16 %v2059, %v2056
        %v2237 = vpack.c.b16 %v2063, %v2060
        %v2238 = vpack.c.b16 %v2064, %v2061
        %v2239 = vpack.c.b16 %v2065, %v2062
        %v2240 = vpack.c.b16 %v2069, %v2066
        %v2241 = vpack.c.b16 %v2070, %v2067
        %v2242 = vpack.c.b16 %v2071, %v2068
        %v2243 = vpack.c.b16 %v2075, %v2072
        %v2244 = vpack.c.b16 %v2076, %v2073
        %v2245 = vpack.c.b16 %v2077, %v2074
        %v2246 = vpack.c.b16 %v2081, %v2078
        %v2247 = vpack.c.b16 %v2082, %v2079
        %v2248 = vpack.c.b16 %v2083, %v2080
        %v2249 = vpack.c.b16 %v2087, %v2084
        %v2250 = vpack.c.b16 %v2088, %v2085
        %v2251 = vpack.c.b16 %v2089, %v2086
        %v2252 = vpack.c.b16 %v2093, %v2090
        %v2253 = vpack.c.b16 %v2094, %v2091
        %v2254 = vpack.c.b16 %v2095, %v2092
        %v2255 = vpack.c.b16 %v2099, %v2096
        %v2256 = vpack.c.b16 %v2100, %v2097
        %v2257 = vpack.c.b16 %v2101, %v2098
        %v2258 = vpack.c.b16 %v2105, %v2102
        %v2259 = vpack.c.b16 %v2106, %v2103
        %v2260 = vpack.c.b16 %v2107, %v2104
        %v2261 = vpack.c.b16 %v2111, %v2108
        %v2262 = vpack.c.b16 %v2112, %v2109
        %v2263 = vpack.c.b16 %v2113, %v2110
        %v2264 = vpack.c.b16 %v2117, %v2114
        %v2265 = vpack.c.b16 %v2118, %v2115
        %v2266 = vpack.c.b16 %v2119, %v2116
        %v2267 = vpack.c.b16 %v2123, %v2120
        %v2268 = vpack.c.b16 %v2124, %v2121
        %v2269 = vpack.c.b16 %v2125, %v2122
        %v2270 = vpack.c.b16 %v2129, %v2126
        %v2271 = vpack.c.b16 %v2130, %v2127
        %v2272 = vpack.c.b16 %v2131, %v2128
        %v2273 = vpack.c.b16 %v2135, %v2132
        %v2274 = vpack.c.b16 %v2136, %v2133
        %v2275 = vpack.c.b16 %v2137, %v2134
        %v2276 = vpack.c.b16 %v2141, %v2138
        %v2277 = vpack.c.b16 %v2142, %v2139
        %v2278 = vpack.c.b16 %v2143, %v2140
        %v2279 = vpack.c.b16 %v2147, %v2144
        %v2280 = vpack.c.b16 %v2148, %v2145
        %v2281 = vpack.c.b16 %v2149, %v2146
        %v2282 = vpack.c.b16 %v2153, %v2150
        %v2283 = vpack.c.b16 %v2154, %v2151
        %v2284 = vpack.c.b16 %v2155, %v2152
        %v2285 = vpack.c.b16 %v2159, %v2156
        %v2286 = vpack.c.b16 %v2160, %v2157
        %v2287 = vpack.c.b16 %v2161, %v2158
        %v2288 = vpack.c.b16 %v2165, %v2162
        %v2289 = vpack.c.b16 %v2166, %v2163
        %v2290 = vpack.c.b16 %v2167, %v2164
        %v2291 = vpack.c.b16 %v2171, %v2168
        %v2292 = vpack.c.b16 %v2172, %v2169
        %v2293 = vpack.c.b16 %v2173, %v2170
        %v2294 = vpack.c.b16 %v2177, %v2174
        %v2295 = vpack.c.b16 %v2178, %v2175
        %v2296 = vpack.c.b16 %v2179, %v2176
        %v2297 = vpack.c.b16 %v2183, %v2180
        %v2298 = vpack.c.b16 %v2184, %v2181
        %v2299 = vpack.c.b16 %v2185, %v2182
        %v2300 = vpack.c.b16 %v2189, %v2186
        %v2301 = vpack.c.b16 %v2190, %v2187
        %v2302 = vpack.c.b16 %v2191, %v2188
        %v2303 = vpack.c.b16 %v2195, %v2192
        %v2304 = vpack.c.b16 %v2196, %v2193
        %v2305 = vpack.c.b16 %v2197, %v2194
        %v2306 = vpack.c.b16 %v2201, %v2198
        %v2307 = vpack.c.b16 %v2202, %v2199
        %v2308 = vpack.c.b16 %v2203, %v2200
        %v2309 = vpack.c.b16 %v2207, %v2204
        %v2310 = vpack.c.b16 %v2208, %v2205
        %v2311 = vpack.c.b16 %v2209, %v2206
        %v2312 = vpack.c.b16 %v2213, %v2210
        %v2313 = vpack.c.b16 %v2214, %v2211
        %v2314 = vpack.c.b16 %v2215, %v2212
        %v2315 = vpack.c.b16 %v2219, %v2216
        %v2316 = vpack.c.b16 %v2220, %v2217
        %v2317 = vpack.c.b16 %v2221, %v2218
        %v2462 = vunpack.c.l.b16 %v1854
        %v2463 = vunpack.c.l.b16 %v1855
        %v2464 = vunpack.c.l.b16 %v1856
        %v2465 = vunpack.c.l.b16 %v1857
        %v2466 = vunpack.c.l.b16 %v1858
        %v2467 = vunpack.c.l.b16 %v1859
        %v2468 = vunpack.c.l.b16 %v1860
        %v2469 = vunpack.c.l.b16 %v1861
        %v2470 = vunpack.c.l.b16 %v1862
        %v2471 = vunpack.c.l.b16 %v1863
        %v2472 = vunpack.c.l.b16 %v1864
        %v2473 = vunpack.c.l.b16 %v1865
        %v2474 = vunpack.c.l.b16 %v1866
        %v2475 = vunpack.c.l.b16 %v1867
        %v2476 = vunpack.c.l.b16 %v1868
        %v2477 = vunpack.c.l.b16 %v1869
        %v2478 = vunpack.c.l.b16 %v1870
        %v2479 = vunpack.c.l.b16 %v1871
        %v2480 = vunpack.c.l.b16 %v1872
        %v2481 = vunpack.c.l.b16 %v1873
        %v2482 = vunpack.c.l.b16 %v1874
        %v2483 = vunpack.c.l.b16 %v1875
        %v2484 = vunpack.c.l.b16 %v1876
        %v2485 = vunpack.c.l.b16 %v1877
        %v2486 = vunpack.c.l.b16 %v1878
        %v2487 = vunpack.c.l.b16 %v1879
        %v2488 = vunpack.c.l.b16 %v1880
        %v2489 = vunpack.c.l.b16 %v1881
        %v2490 = vunpack.c.l.b16 %v1882
        %v2491 = vunpack.c.l.b16 %v1883
        %v2492 = vunpack.c.l.b16 %v1884
        %v2493 = vunpack.c.l.b16 %v1885
        %v2494 = vunpack.c.l.b16 %v1886
        %v2495 = vunpack.c.l.b16 %v1887
        %v2496 = vunpack.c.l.b16 %v1888
        %v2497 = vunpack.c.l.b16 %v1889
        %v2498 = vunpack.c.l.b16 %v1890
        %v2499 = vunpack.c.l.b16 %v1891
        %v2500 = vunpack.c.l.b16 %v1892
        %v2501 = vunpack.c.l.b16 %v1893
        %v2502 = vunpack.c.l.b16 %v1894
        %v2503 = vunpack.c.l.b16 %v1895
        %v2504 = vunpack.c.l.b16 %v1896
        %v2505 = vunpack.c.l.b16 %v1897
        %v2506 = vunpack.c.l.b16 %v1898
        %v2507 = vunpack.c.l.b16 %v1899
        %v2508 = vunpack.c.l.b16 %v1900
        %v2509 = vunpack.c.l.b16 %v1901
        %v2510 = vpack.c.b16 %v2463, %v2462
        %v2511 = vpack.c.b16 %v2465, %v2464
        %v2512 = vpack.c.b16 %v2467, %v2466
        %v2513 = vpack.c.b16 %v2469, %v2468
        %v2514 = vpack.c.b16 %v2471, %v2470
        %v2515 = vpack.c.b16 %v2473, %v2472
        %v2516 = vpack.c.b16 %v2475, %v2474
        %v2517 = vpack.c.b16 %v2477, %v2476
        %v2518 = vpack.c.b16 %v2479, %v2478
        %v2519 = vpack.c.b16 %v2481, %v2480
        %v2520 = vpack.c.b16 %v2483, %v2482
        %v2521 = vpack.c.b16 %v2485, %v2484
        %v2522 = vpack.c.b16 %v2487, %v2486
        %v2523 = vpack.c.b16 %v2489, %v2488
        %v2524 = vpack.c.b16 %v2491, %v2490
        %v2525 = vpack.c.b16 %v2493, %v2492
        %v2526 = vpack.c.b16 %v2495, %v2494
        %v2527 = vpack.c.b16 %v2497, %v2496
        %v2528 = vpack.c.b16 %v2499, %v2498
        %v2529 = vpack.c.b16 %v2501, %v2500
        %v2530 = vpack.c.b16 %v2503, %v2502
        %v2531 = vpack.c.b16 %v2505, %v2504
        %v2532 = vpack.c.b16 %v2507, %v2506
        %v2533 = vpack.c.b16 %v2509, %v2508
        %2558 = vmatprep.subr.bf16.mxu0 0
        %2559 = vmatpush1.bf16.msra.mxu0 %v2517
        %2560 = vmatprep.subr.bf16.mxu0 0
        %2561 = vmatpush1.bf16.msra.mxu0 %v2516
        %2562 = vmatprep.subr.bf16.mxu0 0
        %2563 = vmatpush1.bf16.msra.mxu0 %v2515
        %2564 = vmatprep.subr.bf16.mxu0 0
        %2565 = vmatpush1.bf16.msra.mxu0 %v2514
        %2566 = vmatprep.subr.bf16.mxu0 0
        %2567 = vmatpush1.bf16.msra.mxu0 %v2513
        %2568 = vmatprep.subr.bf16.mxu0 0
        %2569 = vmatpush1.bf16.msra.mxu0 %v2512
        %2570 = vmatprep.subr.bf16.mxu0 0
        %2571 = vmatpush1.bf16.msra.mxu0 %v2511
        %2572 = vmatprep.subr.bf16.mxu0 0
        %2573 = vmatpush1.bf16.msra.mxu0 %v2510
        %2574 = vmatprep.subr.bf16.mxu0 0
        %2575 = vmatpush2.bf16.msra.mxu0 %v2525
        %2576 = vmatprep.subr.bf16.mxu0 0
        %2577 = vmatpush2.bf16.msra.mxu0 %v2524
        %2578 = vmatprep.subr.bf16.mxu0 0
        %2579 = vmatpush2.bf16.msra.mxu0 %v2523
        %2580 = vmatprep.subr.bf16.mxu0 0
        %2581 = vmatpush2.bf16.msra.mxu0 %v2522
        %2582 = vmatprep.subr.bf16.mxu0 0
        %2583 = vmatpush2.bf16.msra.mxu0 %v2521
        %2584 = vmatprep.subr.bf16.mxu0 0
        %2585 = vmatpush2.bf16.msra.mxu0 %v2520
        %2586 = vmatprep.subr.bf16.mxu0 0
        %2587 = vmatpush2.bf16.msra.mxu0 %v2519
        %2588 = vmatprep.subr.bf16.mxu0 0
        %2589 = vmatpush2.bf16.msra.mxu0 %v2518
        %2590 = vmatprep.mubr.bf16.mxu0 %v2223
        %2591 = vmatmul.mubr.bf16.gmra.mxu0 %v2222
        %v2592 = vpop.f32.mrf.mxu0
        %v2593 = vadd.f32 0.0, %v2592
        %v2594 = vpop.f32.mrf.mxu0
        %v2595 = vpop.f32.mrf.mxu0
        %v2596 = vadd.f32 0.0, %v2595
        %v2597 = vpop.f32.mrf.mxu0
        %2598 = vmatprep.mubr.bf16.mxu0 %v2226
        %2599 = vmatmul.mubr.bf16.gmra.mxu0 %v2225
        %v2600 = vpop.f32.mrf.mxu0
        %v2601 = vadd.f32 0.0, %v2600
        %v2602 = vpop.f32.mrf.mxu0
        %v2603 = vpop.f32.mrf.mxu0
        %v2604 = vadd.f32 0.0, %v2603
        %v2605 = vpop.f32.mrf.mxu0
        %2606 = vmatprep.mubr.bf16.mxu0 %v2229
        %2607 = vmatmul.mubr.bf16.gmra.mxu0 %v2228
        %v2608 = vpop.f32.mrf.mxu0
        %v2609 = vadd.f32 0.0, %v2608
        %v2610 = vpop.f32.mrf.mxu0
        %v2611 = vpop.f32.mrf.mxu0
        %v2612 = vadd.f32 0.0, %v2611
        %v2613 = vpop.f32.mrf.mxu0
        %2614 = vmatprep.mubr.bf16.mxu0 %v2232
        %2615 = vmatmul.mubr.bf16.gmra.mxu0 %v2231
        %v2616 = vpop.f32.mrf.mxu0
        %v2617 = vadd.f32 0.0, %v2616
        %v2618 = vpop.f32.mrf.mxu0
        %v2619 = vpop.f32.mrf.mxu0
        %v2620 = vadd.f32 0.0, %v2619
        %v2621 = vpop.f32.mrf.mxu0
        %2622 = vmatprep.mubr.bf16.mxu0 %v2235
        %2623 = vmatmul.mubr.bf16.gmra.mxu0 %v2234
        %v2624 = vpop.f32.mrf.mxu0
        %v2625 = vadd.f32 0.0, %v2624
        %v2626 = vpop.f32.mrf.mxu0
        %v2627 = vpop.f32.mrf.mxu0
        %v2628 = vadd.f32 0.0, %v2627
        %v2629 = vpop.f32.mrf.mxu0
        %2630 = vmatprep.mubr.bf16.mxu0 %v2238
        %2631 = vmatmul.mubr.bf16.gmra.mxu0 %v2237
        %v2632 = vpop.f32.mrf.mxu0
        %v2633 = vadd.f32 0.0, %v2632
        %v2634 = vpop.f32.mrf.mxu0
        %v2635 = vpop.f32.mrf.mxu0
        %v2636 = vadd.f32 0.0, %v2635
        %v2637 = vpop.f32.mrf.mxu0
        %2638 = vmatprep.mubr.bf16.mxu0 %v2241
        %2639 = vmatmul.mubr.bf16.gmra.mxu0 %v2240
        %v2640 = vpop.f32.mrf.mxu0
        %v2641 = vadd.f32 0.0, %v2640
        %v2642 = vpop.f32.mrf.mxu0
        %v2643 = vpop.f32.mrf.mxu0
        %v2644 = vadd.f32 0.0, %v2643
        %v2645 = vpop.f32.mrf.mxu0
        %2646 = vmatprep.mubr.bf16.mxu0 %v2244
        %2647 = vmatmul.mubr.bf16.gmra.mxu0 %v2243
        %v2648 = vpop.f32.mrf.mxu0
        %v2649 = vadd.f32 0.0, %v2648
        %v2650 = vpop.f32.mrf.mxu0
        %v2651 = vpop.f32.mrf.mxu0
        %v2652 = vadd.f32 0.0, %v2651
        %v2653 = vpop.f32.mrf.mxu0
        %2654 = vmatprep.mubr.bf16.mxu0 %v2247
        %2655 = vmatmul.mubr.bf16.gmra.mxu0 %v2246
        %v2656 = vpop.f32.mrf.mxu0
        %v2657 = vadd.f32 0.0, %v2656
        %v2658 = vpop.f32.mrf.mxu0
        %v2659 = vpop.f32.mrf.mxu0
        %v2660 = vadd.f32 0.0, %v2659
        %v2661 = vpop.f32.mrf.mxu0
        %2662 = vmatprep.mubr.bf16.mxu0 %v2250
        %2663 = vmatmul.mubr.bf16.gmra.mxu0 %v2249
        %v2664 = vpop.f32.mrf.mxu0
        %v2665 = vadd.f32 0.0, %v2664
        %v2666 = vpop.f32.mrf.mxu0
        %v2667 = vpop.f32.mrf.mxu0
        %v2668 = vadd.f32 0.0, %v2667
        %v2669 = vpop.f32.mrf.mxu0
        %2670 = vmatprep.mubr.bf16.mxu0 %v2253
        %2671 = vmatmul.mubr.bf16.gmra.mxu0 %v2252
        %v2672 = vpop.f32.mrf.mxu0
        %v2673 = vadd.f32 0.0, %v2672
        %v2674 = vpop.f32.mrf.mxu0
        %v2675 = vpop.f32.mrf.mxu0
        %v2676 = vadd.f32 0.0, %v2675
        %v2677 = vpop.f32.mrf.mxu0
        %2678 = vmatprep.mubr.bf16.mxu0 %v2256
        %2679 = vmatmul.mubr.bf16.gmra.mxu0 %v2255
        %v2680 = vpop.f32.mrf.mxu0
        %v2681 = vadd.f32 0.0, %v2680
        %v2682 = vpop.f32.mrf.mxu0
        %v2683 = vpop.f32.mrf.mxu0
        %v2684 = vadd.f32 0.0, %v2683
        %v2685 = vpop.f32.mrf.mxu0
        %2686 = vmatprep.mubr.bf16.mxu0 %v2259
        %2687 = vmatmul.mubr.bf16.gmra.mxu0 %v2258
        %v2688 = vpop.f32.mrf.mxu0
        %v2689 = vadd.f32 0.0, %v2688
        %v2690 = vpop.f32.mrf.mxu0
        %v2691 = vpop.f32.mrf.mxu0
        %v2692 = vadd.f32 0.0, %v2691
        %v2693 = vpop.f32.mrf.mxu0
        %2694 = vmatprep.mubr.bf16.mxu0 %v2262
        %2695 = vmatmul.mubr.bf16.gmra.mxu0 %v2261
        %v2696 = vpop.f32.mrf.mxu0
        %v2697 = vadd.f32 0.0, %v2696
        %v2698 = vpop.f32.mrf.mxu0
        %v2699 = vpop.f32.mrf.mxu0
        %v2700 = vadd.f32 0.0, %v2699
        %v2701 = vpop.f32.mrf.mxu0
        %2702 = vmatprep.mubr.bf16.mxu0 %v2265
        %2703 = vmatmul.mubr.bf16.gmra.mxu0 %v2264
        %v2704 = vpop.f32.mrf.mxu0
        %v2705 = vadd.f32 0.0, %v2704
        %v2706 = vpop.f32.mrf.mxu0
        %v2707 = vpop.f32.mrf.mxu0
        %v2708 = vadd.f32 0.0, %v2707
        %v2709 = vpop.f32.mrf.mxu0
        %2710 = vmatprep.mubr.bf16.mxu0 %v2268
        %2711 = vmatmul.mubr.bf16.gmra.mxu0 %v2267
        %v2712 = vpop.f32.mrf.mxu0
        %v2713 = vadd.f32 0.0, %v2712
        %v2714 = vpop.f32.mrf.mxu0
        %v2715 = vpop.f32.mrf.mxu0
        %v2716 = vadd.f32 0.0, %v2715
        %v2717 = vpop.f32.mrf.mxu0
        %2718 = vmatprep.mubr.bf16.mxu0 %v2271
        %2719 = vmatmul.mubr.bf16.gmra.mxu0 %v2270
        %v2720 = vpop.f32.mrf.mxu0
        %v2721 = vadd.f32 0.0, %v2720
        %v2722 = vpop.f32.mrf.mxu0
        %v2723 = vpop.f32.mrf.mxu0
        %v2724 = vadd.f32 0.0, %v2723
        %v2725 = vpop.f32.mrf.mxu0
        %2726 = vmatprep.mubr.bf16.mxu0 %v2274
        %2727 = vmatmul.mubr.bf16.gmra.mxu0 %v2273
        %v2728 = vpop.f32.mrf.mxu0
        %v2729 = vadd.f32 0.0, %v2728
        %v2730 = vpop.f32.mrf.mxu0
        %v2731 = vpop.f32.mrf.mxu0
        %v2732 = vadd.f32 0.0, %v2731
        %v2733 = vpop.f32.mrf.mxu0
        %2734 = vmatprep.mubr.bf16.mxu0 %v2277
        %2735 = vmatmul.mubr.bf16.gmra.mxu0 %v2276
        %v2736 = vpop.f32.mrf.mxu0
        %v2737 = vadd.f32 0.0, %v2736
        %v2738 = vpop.f32.mrf.mxu0
        %v2739 = vpop.f32.mrf.mxu0
        %v2740 = vadd.f32 0.0, %v2739
        %v2741 = vpop.f32.mrf.mxu0
        %2742 = vmatprep.mubr.bf16.mxu0 %v2280
        %2743 = vmatmul.mubr.bf16.gmra.mxu0 %v2279
        %v2744 = vpop.f32.mrf.mxu0
        %v2745 = vadd.f32 0.0, %v2744
        %v2746 = vpop.f32.mrf.mxu0
        %v2747 = vpop.f32.mrf.mxu0
        %v2748 = vadd.f32 0.0, %v2747
        %v2749 = vpop.f32.mrf.mxu0
        %2750 = vmatprep.mubr.bf16.mxu0 %v2283
        %2751 = vmatmul.mubr.bf16.gmra.mxu0 %v2282
        %v2752 = vpop.f32.mrf.mxu0
        %v2753 = vadd.f32 0.0, %v2752
        %v2754 = vpop.f32.mrf.mxu0
        %v2755 = vpop.f32.mrf.mxu0
        %v2756 = vadd.f32 0.0, %v2755
        %v2757 = vpop.f32.mrf.mxu0
        %2758 = vmatprep.mubr.bf16.mxu0 %v2286
        %2759 = vmatmul.mubr.bf16.gmra.mxu0 %v2285
        %v2760 = vpop.f32.mrf.mxu0
        %v2761 = vadd.f32 0.0, %v2760
        %v2762 = vpop.f32.mrf.mxu0
        %v2763 = vpop.f32.mrf.mxu0
        %v2764 = vadd.f32 0.0, %v2763
        %v2765 = vpop.f32.mrf.mxu0
        %2766 = vmatprep.mubr.bf16.mxu0 %v2289
        %2767 = vmatmul.mubr.bf16.gmra.mxu0 %v2288
        %v2768 = vpop.f32.mrf.mxu0
        %v2769 = vadd.f32 0.0, %v2768
        %v2770 = vpop.f32.mrf.mxu0
        %v2771 = vpop.f32.mrf.mxu0
        %v2772 = vadd.f32 0.0, %v2771
        %v2773 = vpop.f32.mrf.mxu0
        %2774 = vmatprep.mubr.bf16.mxu0 %v2292
        %2775 = vmatmul.mubr.bf16.gmra.mxu0 %v2291
        %v2776 = vpop.f32.mrf.mxu0
        %v2777 = vadd.f32 0.0, %v2776
        %v2778 = vpop.f32.mrf.mxu0
        %v2779 = vpop.f32.mrf.mxu0
        %v2780 = vadd.f32 0.0, %v2779
        %v2781 = vpop.f32.mrf.mxu0
        %2782 = vmatprep.mubr.bf16.mxu0 %v2295
        %2783 = vmatmul.mubr.bf16.gmra.mxu0 %v2294
        %v2784 = vpop.f32.mrf.mxu0
        %v2785 = vadd.f32 0.0, %v2784
        %v2786 = vpop.f32.mrf.mxu0
        %v2787 = vpop.f32.mrf.mxu0
        %v2788 = vadd.f32 0.0, %v2787
        %v2789 = vpop.f32.mrf.mxu0
        %2790 = vmatprep.mubr.bf16.mxu0 %v2298
        %2791 = vmatmul.mubr.bf16.gmra.mxu0 %v2297
        %v2792 = vpop.f32.mrf.mxu0
        %v2793 = vadd.f32 0.0, %v2792
        %v2794 = vpop.f32.mrf.mxu0
        %v2795 = vpop.f32.mrf.mxu0
        %v2796 = vadd.f32 0.0, %v2795
        %v2797 = vpop.f32.mrf.mxu0
        %2798 = vmatprep.mubr.bf16.mxu0 %v2301
        %2799 = vmatmul.mubr.bf16.gmra.mxu0 %v2300
        %v2800 = vpop.f32.mrf.mxu0
        %v2801 = vadd.f32 0.0, %v2800
        %v2802 = vpop.f32.mrf.mxu0
        %v2803 = vpop.f32.mrf.mxu0
        %v2804 = vadd.f32 0.0, %v2803
        %v2805 = vpop.f32.mrf.mxu0
        %2806 = vmatprep.mubr.bf16.mxu0 %v2304
        %2807 = vmatmul.mubr.bf16.gmra.mxu0 %v2303
        %v2808 = vpop.f32.mrf.mxu0
        %v2809 = vadd.f32 0.0, %v2808
        %v2810 = vpop.f32.mrf.mxu0
        %v2811 = vpop.f32.mrf.mxu0
        %v2812 = vadd.f32 0.0, %v2811
        %v2813 = vpop.f32.mrf.mxu0
        %2814 = vmatprep.mubr.bf16.mxu0 %v2307
        %2815 = vmatmul.mubr.bf16.gmra.mxu0 %v2306
        %v2816 = vpop.f32.mrf.mxu0
        %v2817 = vadd.f32 0.0, %v2816
        %v2818 = vpop.f32.mrf.mxu0
        %v2819 = vpop.f32.mrf.mxu0
        %v2820 = vadd.f32 0.0, %v2819
        %v2821 = vpop.f32.mrf.mxu0
        %2822 = vmatprep.mubr.bf16.mxu0 %v2310
        %2823 = vmatmul.mubr.bf16.gmra.mxu0 %v2309
        %v2824 = vpop.f32.mrf.mxu0
        %v2825 = vadd.f32 0.0, %v2824
        %v2826 = vpop.f32.mrf.mxu0
        %v2827 = vpop.f32.mrf.mxu0
        %v2828 = vadd.f32 0.0, %v2827
        %v2829 = vpop.f32.mrf.mxu0
        %2830 = vmatprep.mubr.bf16.mxu0 %v2313
        %2831 = vmatmul.mubr.bf16.gmra.mxu0 %v2312
        %v2832 = vpop.f32.mrf.mxu0
        %v2833 = vadd.f32 0.0, %v2832
        %v2834 = vpop.f32.mrf.mxu0
        %v2835 = vpop.f32.mrf.mxu0
        %v2836 = vadd.f32 0.0, %v2835
        %v2837 = vpop.f32.mrf.mxu0
        %2838 = vmatprep.mubr.bf16.mxu0 %v2316
        %2839 = vmatmul.mubr.bf16.gmra.mxu0 %v2315
        %v2840 = vpop.f32.mrf.mxu0
        %v2841 = vadd.f32 0.0, %v2840
        %v2842 = vpop.f32.mrf.mxu0
        %v2843 = vpop.f32.mrf.mxu0
        %v2844 = vadd.f32 0.0, %v2843
        %v2845 = vpop.f32.mrf.mxu0
        %2846 = vdwg.mxu0
        %2847 = vmatprep.subr.bf16.mxu0 0
        %2848 = vmatpush1.bf16.msra.mxu0 %v2533
        %2849 = vmatprep.subr.bf16.mxu0 0
        %2850 = vmatpush1.bf16.msra.mxu0 %v2532
        %2851 = vmatprep.subr.bf16.mxu0 0
        %2852 = vmatpush1.bf16.msra.mxu0 %v2531
        %2853 = vmatprep.subr.bf16.mxu0 0
        %2854 = vmatpush1.bf16.msra.mxu0 %v2530
        %2855 = vmatprep.subr.bf16.mxu0 0
        %2856 = vmatpush1.bf16.msra.mxu0 %v2529
        %2857 = vmatprep.subr.bf16.mxu0 0
        %2858 = vmatpush1.bf16.msra.mxu0 %v2528
        %2859 = vmatprep.subr.bf16.mxu0 0
        %2860 = vmatpush1.bf16.msra.mxu0 %v2527
        %2861 = vmatprep.subr.bf16.mxu0 0
        %2862 = vmatpush1.bf16.msra.mxu0 %v2526
        %2863 = vmatprep.subr.bf16.mxu0 0
        %2864 = vmatpush2.bf16.msra.mxu0 0
        %2865 = vmatprep.subr.bf16.mxu0 0
        %2866 = vmatpush2.bf16.msra.mxu0 0
        %2867 = vmatprep.subr.bf16.mxu0 0
        %2868 = vmatpush2.bf16.msra.mxu0 0
        %2869 = vmatprep.subr.bf16.mxu0 0
        %2870 = vmatpush2.bf16.msra.mxu0 0
        %2871 = vmatprep.subr.bf16.mxu0 0
        %2872 = vmatpush2.bf16.msra.mxu0 0
        %2873 = vmatprep.subr.bf16.mxu0 0
        %2874 = vmatpush2.bf16.msra.mxu0 0
        %2875 = vmatprep.subr.bf16.mxu0 0
        %2876 = vmatpush2.bf16.msra.mxu0 0
        %2877 = vmatprep.subr.bf16.mxu0 0
        %2878 = vmatpush2.bf16.msra.mxu0 0
        %2879 = vmatprep.mubr.bf16.mxu0 0
        %2880 = vmatmul.mubr.bf16.gmra.mxu0 %v2224
        %v2881 = vpop.f32.mrf.mxu0
        %v2882 = vadd.f32 %v2593, %v2881
        %v2883 = vpop.f32.mrf.mxu0
        %v2884 = vpop.f32.mrf.mxu0
        %v2885 = vadd.f32 %v2596, %v2884
        %v2886 = vpop.f32.mrf.mxu0
        %2887 = vmatprep.mubr.bf16.mxu0 0
        %2888 = vmatmul.mubr.bf16.gmra.mxu0 %v2227
        %v2889 = vpop.f32.mrf.mxu0
        %v2890 = vadd.f32 %v2601, %v2889
        %v2891 = vpop.f32.mrf.mxu0
        %v2892 = vpop.f32.mrf.mxu0
        %v2893 = vadd.f32 %v2604, %v2892
        %v2894 = vpop.f32.mrf.mxu0
        %2895 = vmatprep.mubr.bf16.mxu0 0
        %2896 = vmatmul.mubr.bf16.gmra.mxu0 %v2230
        %v2897 = vpop.f32.mrf.mxu0
        %v2898 = vadd.f32 %v2609, %v2897
        %v2899 = vpop.f32.mrf.mxu0
        %v2900 = vpop.f32.mrf.mxu0
        %v2901 = vadd.f32 %v2612, %v2900
        %v2902 = vpop.f32.mrf.mxu0
        %2903 = vmatprep.mubr.bf16.mxu0 0
        %2904 = vmatmul.mubr.bf16.gmra.mxu0 %v2233
        %v2905 = vpop.f32.mrf.mxu0
        %v2906 = vadd.f32 %v2617, %v2905
        %v2907 = vpop.f32.mrf.mxu0
        %v2908 = vpop.f32.mrf.mxu0
        %v2909 = vadd.f32 %v2620, %v2908
        %v2910 = vpop.f32.mrf.mxu0
        %2911 = vmatprep.mubr.bf16.mxu0 0
        %2912 = vmatmul.mubr.bf16.gmra.mxu0 %v2236
        %v2913 = vpop.f32.mrf.mxu0
        %v2914 = vadd.f32 %v2625, %v2913
        %v2915 = vpop.f32.mrf.mxu0
        %v2916 = vpop.f32.mrf.mxu0
        %v2917 = vadd.f32 %v2628, %v2916
        %v2918 = vpop.f32.mrf.mxu0
        %2919 = vmatprep.mubr.bf16.mxu0 0
        %2920 = vmatmul.mubr.bf16.gmra.mxu0 %v2239
        %v2921 = vpop.f32.mrf.mxu0
        %v2922 = vadd.f32 %v2633, %v2921
        %v2923 = vpop.f32.mrf.mxu0
        %v2924 = vpop.f32.mrf.mxu0
        %v2925 = vadd.f32 %v2636, %v2924
        %v2926 = vpop.f32.mrf.mxu0
        %2927 = vmatprep.mubr.bf16.mxu0 0
        %2928 = vmatmul.mubr.bf16.gmra.mxu0 %v2242
        %v2929 = vpop.f32.mrf.mxu0
        %v2930 = vadd.f32 %v2641, %v2929
        %v2931 = vpop.f32.mrf.mxu0
        %v2932 = vpop.f32.mrf.mxu0
        %v2933 = vadd.f32 %v2644, %v2932
        %v2934 = vpop.f32.mrf.mxu0
        %2935 = vmatprep.mubr.bf16.mxu0 0
        %2936 = vmatmul.mubr.bf16.gmra.mxu0 %v2245
        %v2937 = vpop.f32.mrf.mxu0
        %v2938 = vadd.f32 %v2649, %v2937
        %v2939 = vpop.f32.mrf.mxu0
        %v2940 = vpop.f32.mrf.mxu0
        %v2941 = vadd.f32 %v2652, %v2940
        %v2942 = vpop.f32.mrf.mxu0
        %2943 = vmatprep.mubr.bf16.mxu0 0
        %2944 = vmatmul.mubr.bf16.gmra.mxu0 %v2248
        %v2945 = vpop.f32.mrf.mxu0
        %v2946 = vadd.f32 %v2657, %v2945
        %v2947 = vpop.f32.mrf.mxu0
        %v2948 = vpop.f32.mrf.mxu0
        %v2949 = vadd.f32 %v2660, %v2948
        %v2950 = vpop.f32.mrf.mxu0
        %2951 = vmatprep.mubr.bf16.mxu0 0
        %2952 = vmatmul.mubr.bf16.gmra.mxu0 %v2251
        %v2953 = vpop.f32.mrf.mxu0
        %v2954 = vadd.f32 %v2665, %v2953
        %v2955 = vpop.f32.mrf.mxu0
        %v2956 = vpop.f32.mrf.mxu0
        %v2957 = vadd.f32 %v2668, %v2956
        %v2958 = vpop.f32.mrf.mxu0
        %2959 = vmatprep.mubr.bf16.mxu0 0
        %2960 = vmatmul.mubr.bf16.gmra.mxu0 %v2254
        %v2961 = vpop.f32.mrf.mxu0
        %v2962 = vadd.f32 %v2673, %v2961
        %v2963 = vpop.f32.mrf.mxu0
        %v2964 = vpop.f32.mrf.mxu0
        %v2965 = vadd.f32 %v2676, %v2964
        %v2966 = vpop.f32.mrf.mxu0
        %2967 = vmatprep.mubr.bf16.mxu0 0
        %2968 = vmatmul.mubr.bf16.gmra.mxu0 %v2257
        %v2969 = vpop.f32.mrf.mxu0
        %v2970 = vadd.f32 %v2681, %v2969
        %v2971 = vpop.f32.mrf.mxu0
        %v2972 = vpop.f32.mrf.mxu0
        %v2973 = vadd.f32 %v2684, %v2972
        %v2974 = vpop.f32.mrf.mxu0
        %2975 = vmatprep.mubr.bf16.mxu0 0
        %2976 = vmatmul.mubr.bf16.gmra.mxu0 %v2260
        %v2977 = vpop.f32.mrf.mxu0
        %v2978 = vadd.f32 %v2689, %v2977
        %v2979 = vpop.f32.mrf.mxu0
        %v2980 = vpop.f32.mrf.mxu0
        %v2981 = vadd.f32 %v2692, %v2980
        %v2982 = vpop.f32.mrf.mxu0
        %2983 = vmatprep.mubr.bf16.mxu0 0
        %2984 = vmatmul.mubr.bf16.gmra.mxu0 %v2263
        %v2985 = vpop.f32.mrf.mxu0
        %v2986 = vadd.f32 %v2697, %v2985
        %v2987 = vpop.f32.mrf.mxu0
        %v2988 = vpop.f32.mrf.mxu0
        %v2989 = vadd.f32 %v2700, %v2988
        %v2990 = vpop.f32.mrf.mxu0
        %2991 = vmatprep.mubr.bf16.mxu0 0
        %2992 = vmatmul.mubr.bf16.gmra.mxu0 %v2266
        %v2993 = vpop.f32.mrf.mxu0
        %v2994 = vadd.f32 %v2705, %v2993
        %v2995 = vpop.f32.mrf.mxu0
        %v2996 = vpop.f32.mrf.mxu0
        %v2997 = vadd.f32 %v2708, %v2996
        %v2998 = vpop.f32.mrf.mxu0
        %2999 = vmatprep.mubr.bf16.mxu0 0
        %3000 = vmatmul.mubr.bf16.gmra.mxu0 %v2269
        %v3001 = vpop.f32.mrf.mxu0
        %v3002 = vadd.f32 %v2713, %v3001
        %v3003 = vpop.f32.mrf.mxu0
        %v3004 = vpop.f32.mrf.mxu0
        %v3005 = vadd.f32 %v2716, %v3004
        %v3006 = vpop.f32.mrf.mxu0
        %3007 = vmatprep.mubr.bf16.mxu0 0
        %3008 = vmatmul.mubr.bf16.gmra.mxu0 %v2272
        %v3009 = vpop.f32.mrf.mxu0
        %v3010 = vadd.f32 %v2721, %v3009
        %v3011 = vpop.f32.mrf.mxu0
        %v3012 = vpop.f32.mrf.mxu0
        %v3013 = vadd.f32 %v2724, %v3012
        %v3014 = vpop.f32.mrf.mxu0
        %3015 = vmatprep.mubr.bf16.mxu0 0
        %3016 = vmatmul.mubr.bf16.gmra.mxu0 %v2275
        %v3017 = vpop.f32.mrf.mxu0
        %v3018 = vadd.f32 %v2729, %v3017
        %v3019 = vpop.f32.mrf.mxu0
        %v3020 = vpop.f32.mrf.mxu0
        %v3021 = vadd.f32 %v2732, %v3020
        %v3022 = vpop.f32.mrf.mxu0
        %3023 = vmatprep.mubr.bf16.mxu0 0
        %3024 = vmatmul.mubr.bf16.gmra.mxu0 %v2278
        %v3025 = vpop.f32.mrf.mxu0
        %v3026 = vadd.f32 %v2737, %v3025
        %v3027 = vpop.f32.mrf.mxu0
        %v3028 = vpop.f32.mrf.mxu0
        %v3029 = vadd.f32 %v2740, %v3028
        %v3030 = vpop.f32.mrf.mxu0
        %3031 = vmatprep.mubr.bf16.mxu0 0
        %3032 = vmatmul.mubr.bf16.gmra.mxu0 %v2281
        %v3033 = vpop.f32.mrf.mxu0
        %v3034 = vadd.f32 %v2745, %v3033
        %v3035 = vpop.f32.mrf.mxu0
        %v3036 = vpop.f32.mrf.mxu0
        %v3037 = vadd.f32 %v2748, %v3036
        %v3038 = vpop.f32.mrf.mxu0
        %3039 = vmatprep.mubr.bf16.mxu0 0
        %3040 = vmatmul.mubr.bf16.gmra.mxu0 %v2284
        %v3041 = vpop.f32.mrf.mxu0
        %v3042 = vadd.f32 %v2753, %v3041
        %v3043 = vpop.f32.mrf.mxu0
        %v3044 = vpop.f32.mrf.mxu0
        %v3045 = vadd.f32 %v2756, %v3044
        %v3046 = vpop.f32.mrf.mxu0
        %3047 = vmatprep.mubr.bf16.mxu0 0
        %3048 = vmatmul.mubr.bf16.gmra.mxu0 %v2287
        %v3049 = vpop.f32.mrf.mxu0
        %v3050 = vadd.f32 %v2761, %v3049
        %v3051 = vpop.f32.mrf.mxu0
        %v3052 = vpop.f32.mrf.mxu0
        %v3053 = vadd.f32 %v2764, %v3052
        %v3054 = vpop.f32.mrf.mxu0
        %3055 = vmatprep.mubr.bf16.mxu0 0
        %3056 = vmatmul.mubr.bf16.gmra.mxu0 %v2290
        %v3057 = vpop.f32.mrf.mxu0
        %v3058 = vadd.f32 %v2769, %v3057
        %v3059 = vpop.f32.mrf.mxu0
        %v3060 = vpop.f32.mrf.mxu0
        %v3061 = vadd.f32 %v2772, %v3060
        %v3062 = vpop.f32.mrf.mxu0
        %3063 = vmatprep.mubr.bf16.mxu0 0
        %3064 = vmatmul.mubr.bf16.gmra.mxu0 %v2293
        %v3065 = vpop.f32.mrf.mxu0
        %v3066 = vadd.f32 %v2777, %v3065
        %v3067 = vpop.f32.mrf.mxu0
        %v3068 = vpop.f32.mrf.mxu0
        %v3069 = vadd.f32 %v2780, %v3068
        %v3070 = vpop.f32.mrf.mxu0
        %3071 = vmatprep.mubr.bf16.mxu0 0
        %3072 = vmatmul.mubr.bf16.gmra.mxu0 %v2296
        %v3073 = vpop.f32.mrf.mxu0
        %v3074 = vadd.f32 %v2785, %v3073
        %v3075 = vpop.f32.mrf.mxu0
        %v3076 = vpop.f32.mrf.mxu0
        %v3077 = vadd.f32 %v2788, %v3076
        %v3078 = vpop.f32.mrf.mxu0
        %3079 = vmatprep.mubr.bf16.mxu0 0
        %3080 = vmatmul.mubr.bf16.gmra.mxu0 %v2299
        %v3081 = vpop.f32.mrf.mxu0
        %v3082 = vadd.f32 %v2793, %v3081
        %v3083 = vpop.f32.mrf.mxu0
        %v3084 = vpop.f32.mrf.mxu0
        %v3085 = vadd.f32 %v2796, %v3084
        %v3086 = vpop.f32.mrf.mxu0
        %3087 = vmatprep.mubr.bf16.mxu0 0
        %3088 = vmatmul.mubr.bf16.gmra.mxu0 %v2302
        %v3089 = vpop.f32.mrf.mxu0
        %v3090 = vadd.f32 %v2801, %v3089
        %v3091 = vpop.f32.mrf.mxu0
        %v3092 = vpop.f32.mrf.mxu0
        %v3093 = vadd.f32 %v2804, %v3092
        %v3094 = vpop.f32.mrf.mxu0
        %3095 = vmatprep.mubr.bf16.mxu0 0
        %3096 = vmatmul.mubr.bf16.gmra.mxu0 %v2305
        %v3097 = vpop.f32.mrf.mxu0
        %v3098 = vadd.f32 %v2809, %v3097
        %v3099 = vpop.f32.mrf.mxu0
        %v3100 = vpop.f32.mrf.mxu0
        %v3101 = vadd.f32 %v2812, %v3100
        %v3102 = vpop.f32.mrf.mxu0
        %3103 = vmatprep.mubr.bf16.mxu0 0
        %3104 = vmatmul.mubr.bf16.gmra.mxu0 %v2308
        %v3105 = vpop.f32.mrf.mxu0
        %v3106 = vadd.f32 %v2817, %v3105
        %v3107 = vpop.f32.mrf.mxu0
        %v3108 = vpop.f32.mrf.mxu0
        %v3109 = vadd.f32 %v2820, %v3108
        %v3110 = vpop.f32.mrf.mxu0
        %3111 = vmatprep.mubr.bf16.mxu0 0
        %3112 = vmatmul.mubr.bf16.gmra.mxu0 %v2311
        %v3113 = vpop.f32.mrf.mxu0
        %v3114 = vadd.f32 %v2825, %v3113
        %v3115 = vpop.f32.mrf.mxu0
        %v3116 = vpop.f32.mrf.mxu0
        %v3117 = vadd.f32 %v2828, %v3116
        %v3118 = vpop.f32.mrf.mxu0
        %3119 = vmatprep.mubr.bf16.mxu0 0
        %3120 = vmatmul.mubr.bf16.gmra.mxu0 %v2314
        %v3121 = vpop.f32.mrf.mxu0
        %v3122 = vadd.f32 %v2833, %v3121
        %v3123 = vpop.f32.mrf.mxu0
        %v3124 = vpop.f32.mrf.mxu0
        %v3125 = vadd.f32 %v2836, %v3124
        %v3126 = vpop.f32.mrf.mxu0
        %3127 = vmatprep.mubr.bf16.mxu0 0
        %3128 = vmatmul.mubr.bf16.gmra.mxu0 %v2317
        %v3129 = vpop.f32.mrf.mxu0
        %v3130 = vadd.f32 %v2841, %v3129
        %v3131 = vpop.f32.mrf.mxu0
        %v3132 = vpop.f32.mrf.mxu0
        %v3133 = vadd.f32 %v2844, %v3132
        %v3134 = vpop.f32.mrf.mxu0
        %3135 = vdwg.mxu0
        %v3136 = vadd.f32 %v1661, %v2882
        %v3137 = vadd.f32 %v1662, %v2885
        %v3138 = vadd.f32 %v1663, %v2890
        %v3139 = vadd.f32 %v1664, %v2893
        %v3140 = vadd.f32 %v1665, %v2898
        %v3141 = vadd.f32 %v1666, %v2901
        %v3142 = vadd.f32 %v1667, %v2906
        %v3143 = vadd.f32 %v1668, %v2909
        %v3144 = vadd.f32 %v1669, %v2914
        %v3145 = vadd.f32 %v1670, %v2917
        %v3146 = vadd.f32 %v1671, %v2922
        %v3147 = vadd.f32 %v1672, %v2925
        %v3148 = vadd.f32 %v1673, %v2930
        %v3149 = vadd.f32 %v1674, %v2933
        %v3150 = vadd.f32 %v1675, %v2938
        %v3151 = vadd.f32 %v1676, %v2941
        %v3152 = vadd.f32 %v1677, %v2946
        %v3153 = vadd.f32 %v1678, %v2949
        %v3154 = vadd.f32 %v1679, %v2954
        %v3155 = vadd.f32 %v1680, %v2957
        %v3156 = vadd.f32 %v1681, %v2962
        %v3157 = vadd.f32 %v1682, %v2965
        %v3158 = vadd.f32 %v1683, %v2970
        %v3159 = vadd.f32 %v1684, %v2973
        %v3160 = vadd.f32 %v1685, %v2978
        %v3161 = vadd.f32 %v1686, %v2981
        %v3162 = vadd.f32 %v1687, %v2986
        %v3163 = vadd.f32 %v1688, %v2989
        %v3164 = vadd.f32 %v1689, %v2994
        %v3165 = vadd.f32 %v1690, %v2997
        %v3166 = vadd.f32 %v1691, %v3002
        %v3167 = vadd.f32 %v1692, %v3005
        %v3168 = vadd.f32 %v1693, %v3010
        %v3169 = vadd.f32 %v1694, %v3013
        %v3170 = vadd.f32 %v1695, %v3018
        %v3171 = vadd.f32 %v1696, %v3021
        %v3172 = vadd.f32 %v1697, %v3026
        %v3173 = vadd.f32 %v1698, %v3029
        %v3174 = vadd.f32 %v1699, %v3034
        %v3175 = vadd.f32 %v1700, %v3037
        %v3176 = vadd.f32 %v1701, %v3042
        %v3177 = vadd.f32 %v1702, %v3045
        %v3178 = vadd.f32 %v1703, %v3050
        %v3179 = vadd.f32 %v1704, %v3053
        %v3180 = vadd.f32 %v1705, %v3058
        %v3181 = vadd.f32 %v1706, %v3061
        %v3182 = vadd.f32 %v1707, %v3066
        %v3183 = vadd.f32 %v1708, %v3069
        %v3184 = vadd.f32 %v1709, %v3074
        %v3185 = vadd.f32 %v1710, %v3077
        %v3186 = vadd.f32 %v1711, %v3082
        %v3187 = vadd.f32 %v1712, %v3085
        %v3188 = vadd.f32 %v1713, %v3090
        %v3189 = vadd.f32 %v1714, %v3093
        %v3190 = vadd.f32 %v1715, %v3098
        %v3191 = vadd.f32 %v1716, %v3101
        %v3192 = vadd.f32 %v1717, %v3106
        %v3193 = vadd.f32 %v1718, %v3109
        %v3194 = vadd.f32 %v1719, %v3114
        %v3195 = vadd.f32 %v1720, %v3117
        %v3196 = vadd.f32 %v1721, %v3122
        %v3197 = vadd.f32 %v1722, %v3125
        %v3198 = vadd.f32 %v1723, %v3130
        %v3199 = vadd.f32 %v1724, %v3133
        %v3200 = vld [vmem:[%s200 + $0x30] sm:$0xff]
        %v3201 = vld [vmem:[%s200 + $0x38] sm:$0xf]
        %v3202 = vld [vmem:[%s200 + $0x3c] sm:$0xff]
        %v3203 = vld [vmem:[%s200 + $0x44] sm:$0xf]
        %v3204 = vld [vmem:[%s200 + $0x48] sm:$0xff]
        %v3205 = vld [vmem:[%s200 + $0x50] sm:$0xf]
        %v3206 = vld [vmem:[%s200 + $0x54] sm:$0xff]
        %v3207 = vld [vmem:[%s200 + $0x5c] sm:$0xf]
        %v3208 = vld [vmem:[%s200 + $0x60] sm:$0xff]
        %v3209 = vld [vmem:[%s200 + $0x68] sm:$0xf]
        %v3210 = vld [vmem:[%s200 + $0x6c] sm:$0xff]
        %v3211 = vld [vmem:[%s200 + $0x74] sm:$0xf]
        %v3212 = vld [vmem:[%s200 + $0x78] sm:$0xff]
        %v3213 = vld [vmem:[%s200 + $0x80] sm:$0xf]
        %v3214 = vld [vmem:[%s200 + $0x84] sm:$0xff]
        %v3215 = vld [vmem:[%s200 + $0x8c] sm:$0xf]
        %v3216 = vld [vmem:[%s200 + $0x90] sm:$0xff]
        %v3217 = vld [vmem:[%s200 + $0x98] sm:$0xf]
        %v3218 = vld [vmem:[%s200 + $0x9c] sm:$0xff]
        %v3219 = vld [vmem:[%s200 + $0xa4] sm:$0xf]
        %v3220 = vld [vmem:[%s200 + $0xa8] sm:$0xff]
        %v3221 = vld [vmem:[%s200 + $0xb0] sm:$0xf]
        %v3222 = vld [vmem:[%s200 + $0xb4] sm:$0xff]
        %v3223 = vld [vmem:[%s200 + $0xbc] sm:$0xf]
        %v3224 = vld [vmem:[%s200 + $0xc0] sm:$0xff]
        %v3225 = vld [vmem:[%s200 + $0xc8] sm:$0xf]
        %v3226 = vld [vmem:[%s200 + $0xcc] sm:$0xff]
        %v3227 = vld [vmem:[%s200 + $0xd4] sm:$0xf]
        %v3228 = vld [vmem:[%s200 + $0xd8] sm:$0xff]
        %v3229 = vld [vmem:[%s200 + $0xe0] sm:$0xf]
        %v3230 = vld [vmem:[%s200 + $0xe4] sm:$0xff]
        %v3231 = vld [vmem:[%s200 + $0xec] sm:$0xf]
        %v3232 = vld [vmem:[%s200 + $0xf0] sm:$0xff]
        %v3233 = vld [vmem:[%s200 + $0xf8] sm:$0xf]
        %v3234 = vld [vmem:[%s200 + $0xfc] sm:$0xff]
        %v3235 = vld [vmem:[%s200 + $0x104] sm:$0xf]
        %v3236 = vld [vmem:[%s200 + $0x108] sm:$0xff]
        %v3237 = vld [vmem:[%s200 + $0x110] sm:$0xf]
        %v3238 = vld [vmem:[%s200 + $0x114] sm:$0xff]
        %v3239 = vld [vmem:[%s200 + $0x11c] sm:$0xf]
        %v3240 = vld [vmem:[%s200 + $0x120] sm:$0xff]
        %v3241 = vld [vmem:[%s200 + $0x128] sm:$0xf]
        %v3242 = vld [vmem:[%s200 + $0x12c] sm:$0xff]
        %v3243 = vld [vmem:[%s200 + $0x134] sm:$0xf]
        %v3244 = vld [vmem:[%s200 + $0x138] sm:$0xff]
        %v3245 = vld [vmem:[%s200 + $0x140] sm:$0xf]
        %v3246 = vld [vmem:[%s200 + $0x144] sm:$0xff]
        %v3247 = vld [vmem:[%s200 + $0x14c] sm:$0xf]
        %v3248 = vld [vmem:[%s200 + $0x150] sm:$0xff]
        %v3249 = vld [vmem:[%s200 + $0x158] sm:$0xf]
        %v3250 = vld [vmem:[%s200 + $0x15c] sm:$0xff]
        %v3251 = vld [vmem:[%s200 + $0x164] sm:$0xf]
        %v3252 = vld [vmem:[%s200 + $0x168] sm:$0xff]
        %v3253 = vld [vmem:[%s200 + $0x170] sm:$0xf]
        %v3254 = vld [vmem:[%s200 + $0x174] sm:$0xff]
        %v3255 = vld [vmem:[%s200 + $0x17c] sm:$0xf]
        %v3256 = vld [vmem:[%s200 + $0x180] sm:$0xff]
        %v3257 = vld [vmem:[%s200 + $0x188] sm:$0xf]
        %v3258 = vld [vmem:[%s200 + $0x18c] sm:$0xff]
        %v3259 = vld [vmem:[%s200 + $0x194] sm:$0xf]
        %v3260 = vld [vmem:[%s200 + $0x198] sm:$0xff]
        %v3261 = vld [vmem:[%s200 + $0x1a0] sm:$0xf]
        %v3262 = vld [vmem:[%s200 + $0x1a4] sm:$0xff]
        %v3263 = vld [vmem:[%s200 + $0x1ac] sm:$0xf]
        %v3264 = vld [vmem:[%s200 + $0x1e0] sm:$0xff]
        %v3265 = vld [vmem:[%s200 + $0x1e8] sm:$0xf]
        %v3266 = vld [vmem:[%s200 + $0x1ec] sm:$0xff]
        %v3267 = vld [vmem:[%s200 + $0x1f4] sm:$0xf]
        %v3268 = vld [vmem:[%s200 + $0x1f8] sm:$0xff]
        %v3269 = vld [vmem:[%s200 + $0x200] sm:$0xf]
        %v3270 = vld [vmem:[%s200 + $0x204] sm:$0xff]
        %v3271 = vld [vmem:[%s200 + $0x20c] sm:$0xf]
        %v3272 = vld [vmem:[%s200 + $0x210] sm:$0xff]
        %v3273 = vld [vmem:[%s200 + $0x218] sm:$0xf]
        %v3274 = vld [vmem:[%s200 + $0x21c] sm:$0xff]
        %v3275 = vld [vmem:[%s200 + $0x224] sm:$0xf]
        %v3276 = vld [vmem:[%s200 + $0x228] sm:$0xff]
        %v3277 = vld [vmem:[%s200 + $0x230] sm:$0xf]
        %v3278 = vld [vmem:[%s200 + $0x234] sm:$0xff]
        %v3279 = vld [vmem:[%s200 + $0x23c] sm:$0xf]
        %v3280 = vld [vmem:[%s200 + $0x240] sm:$0xff]
        %v3281 = vld [vmem:[%s200 + $0x248] sm:$0xf]
        %v3282 = vld [vmem:[%s200 + $0x24c] sm:$0xff]
        %v3283 = vld [vmem:[%s200 + $0x254] sm:$0xf]
        %v3284 = vld [vmem:[%s200 + $0x258] sm:$0xff]
        %v3285 = vld [vmem:[%s200 + $0x260] sm:$0xf]
        %v3286 = vld [vmem:[%s200 + $0x264] sm:$0xff]
        %v3287 = vld [vmem:[%s200 + $0x26c] sm:$0xf]
        %v3288 = vld [vmem:[%s200 + $0x270] sm:$0xff]
        %v3289 = vld [vmem:[%s200 + $0x278] sm:$0xf]
        %v3290 = vld [vmem:[%s200 + $0x27c] sm:$0xff]
        %v3291 = vld [vmem:[%s200 + $0x284] sm:$0xf]
        %v3292 = vld [vmem:[%s200 + $0x288] sm:$0xff]
        %v3293 = vld [vmem:[%s200 + $0x290] sm:$0xf]
        %v3294 = vld [vmem:[%s200 + $0x294] sm:$0xff]
        %v3295 = vld [vmem:[%s200 + $0x29c] sm:$0xf]
        %v3296 = vld [vmem:[%s200 + $0x2a0] sm:$0xff]
        %v3297 = vld [vmem:[%s200 + $0x2a8] sm:$0xf]
        %v3298 = vld [vmem:[%s200 + $0x2ac] sm:$0xff]
        %v3299 = vld [vmem:[%s200 + $0x2b4] sm:$0xf]
        %v3300 = vld [vmem:[%s200 + $0x2b8] sm:$0xff]
        %v3301 = vld [vmem:[%s200 + $0x2c0] sm:$0xf]
        %v3302 = vld [vmem:[%s200 + $0x2c4] sm:$0xff]
        %v3303 = vld [vmem:[%s200 + $0x2cc] sm:$0xf]
        %v3304 = vld [vmem:[%s200 + $0x2d0] sm:$0xff]
        %v3305 = vld [vmem:[%s200 + $0x2d8] sm:$0xf]
        %v3306 = vld [vmem:[%s200 + $0x2dc] sm:$0xff]
        %v3307 = vld [vmem:[%s200 + $0x2e4] sm:$0xf]
        %v3308 = vld [vmem:[%s200 + $0x2e8] sm:$0xff]
        %v3309 = vld [vmem:[%s200 + $0x2f0] sm:$0xf]
        %v3310 = vld [vmem:[%s200 + $0x2f4] sm:$0xff]
        %v3311 = vld [vmem:[%s200 + $0x2fc] sm:$0xf]
        %v3312 = vld [vmem:[%s200 + $0x300] sm:$0xff]
        %v3313 = vld [vmem:[%s200 + $0x308] sm:$0xf]
        %v3314 = vld [vmem:[%s200 + $0x30c] sm:$0xff]
        %v3315 = vld [vmem:[%s200 + $0x314] sm:$0xf]
        %v3316 = vld [vmem:[%s200 + $0x318] sm:$0xff]
        %v3317 = vld [vmem:[%s200 + $0x320] sm:$0xf]
        %v3318 = vld [vmem:[%s200 + $0x324] sm:$0xff]
        %v3319 = vld [vmem:[%s200 + $0x32c] sm:$0xf]
        %v3320 = vld [vmem:[%s200 + $0x330] sm:$0xff]
        %v3321 = vld [vmem:[%s200 + $0x338] sm:$0xf]
        %v3322 = vld [vmem:[%s200 + $0x33c] sm:$0xff]
        %v3323 = vld [vmem:[%s200 + $0x344] sm:$0xf]
        %v3324 = vld [vmem:[%s200 + $0x348] sm:$0xff]
        %v3325 = vld [vmem:[%s200 + $0x350] sm:$0xf]
        %v3326 = vld [vmem:[%s200 + $0x354] sm:$0xff]
        %v3327 = vld [vmem:[%s200 + $0x35c] sm:$0xf]
        %s3328 = scalar_lea.vmem %s2, 384
        %v3329 = vld [vmem:[%s3328] sm:$0xf]
        %v3330 = vld [vmem:[%s3328 + $0x4] sm:$0xf]
        %v3331 = vld [vmem:[%s3328 + $0x8] sm:$0xf]
        %v3332 = vld [vmem:[%s3328 + $0xc] sm:$0xf]
        %v3333 = vld [vmem:[%s3328 + $0x10] sm:$0xf]
        %v3334 = vld [vmem:[%s3328 + $0x14] sm:$0xf]
        %v3335 = vld [vmem:[%s3328 + $0x18] sm:$0xf]
        %v3336 = vld [vmem:[%s3328 + $0x1c] sm:$0xf]
        %v3337 = vld [vmem:[%s3328 + $0x20] sm:$0xf]
        %v3338 = vld [vmem:[%s3328 + $0x24] sm:$0xf]
        %v3339 = vld [vmem:[%s3328 + $0x28] sm:$0xf]
        %v3340 = vld [vmem:[%s3328 + $0x2c] sm:$0xf]
        %v3341 = vld [vmem:[%s3328 + $0x30] sm:$0xf]
        %v3342 = vld [vmem:[%s3328 + $0x34] sm:$0xf]
        %v3343 = vld [vmem:[%s3328 + $0x38] sm:$0xf]
        %v3344 = vld [vmem:[%s3328 + $0x3c] sm:$0xf]
        %v3345 = vld [vmem:[%s3328 + $0x40] sm:$0xf]
        %v3346 = vld [vmem:[%s3328 + $0x44] sm:$0xf]
        %v3347 = vld [vmem:[%s3328 + $0x48] sm:$0xf]
        %v3348 = vld [vmem:[%s3328 + $0x4c] sm:$0xf]
        %v3349 = vld [vmem:[%s3328 + $0x50] sm:$0xf]
        %v3350 = vld [vmem:[%s3328 + $0x54] sm:$0xf]
        %v3351 = vld [vmem:[%s3328 + $0x58] sm:$0xf]
        %v3352 = vld [vmem:[%s3328 + $0x5c] sm:$0xf]
        %v3353 = vld [vmem:[%s3328 + $0x60] sm:$0xf]
        %v3354 = vld [vmem:[%s3328 + $0x64] sm:$0xf]
        %v3355 = vld [vmem:[%s3328 + $0x68] sm:$0xf]
        %v3356 = vld [vmem:[%s3328 + $0x6c] sm:$0xf]
        %v3357 = vld [vmem:[%s3328 + $0x70] sm:$0xf]
        %v3358 = vld [vmem:[%s3328 + $0x74] sm:$0xf]
        %v3359 = vld [vmem:[%s3328 + $0x78] sm:$0xf]
        %v3360 = vld [vmem:[%s3328 + $0x7c] sm:$0xf]
        %v3361 = vld [vmem:[%s3328 + $0x80] sm:$0xf]
        %v3362 = vld [vmem:[%s3328 + $0x84] sm:$0xf]
        %v3363 = vld [vmem:[%s3328 + $0x88] sm:$0xf]
        %v3364 = vld [vmem:[%s3328 + $0x8c] sm:$0xf]
        %v3365 = vld [vmem:[%s3328 + $0x90] sm:$0xf]
        %v3366 = vld [vmem:[%s3328 + $0x94] sm:$0xf]
        %v3367 = vld [vmem:[%s3328 + $0x98] sm:$0xf]
        %v3368 = vld [vmem:[%s3328 + $0x9c] sm:$0xf]
        %v3369 = vld [vmem:[%s3328 + $0xa0] sm:$0xf]
        %v3370 = vld [vmem:[%s3328 + $0xa4] sm:$0xf]
        %v3371 = vld [vmem:[%s3328 + $0xa8] sm:$0xf]
        %v3372 = vld [vmem:[%s3328 + $0xac] sm:$0xf]
        %v3373 = vld [vmem:[%s3328 + $0xb0] sm:$0xf]
        %v3374 = vld [vmem:[%s3328 + $0xb4] sm:$0xf]
        %v3375 = vld [vmem:[%s3328 + $0xb8] sm:$0xf]
        %v3376 = vld [vmem:[%s3328 + $0xbc] sm:$0xf]
        %v3505 = vunpack.c.l.b16 %v3200
        %v3506 = vunpack.c.h.b16 %v3200
        %v3507 = vunpack.c.l.b16 %v3201
        %v3508 = vunpack.c.l.b16 %v3202
        %v3509 = vunpack.c.h.b16 %v3202
        %v3510 = vunpack.c.l.b16 %v3203
        %v3511 = vunpack.c.l.b16 %v3204
        %v3512 = vunpack.c.h.b16 %v3204
        %v3513 = vunpack.c.l.b16 %v3205
        %v3514 = vunpack.c.l.b16 %v3206
        %v3515 = vunpack.c.h.b16 %v3206
        %v3516 = vunpack.c.l.b16 %v3207
        %v3517 = vunpack.c.l.b16 %v3208
        %v3518 = vunpack.c.h.b16 %v3208
        %v3519 = vunpack.c.l.b16 %v3209
        %v3520 = vunpack.c.l.b16 %v3210
        %v3521 = vunpack.c.h.b16 %v3210
        %v3522 = vunpack.c.l.b16 %v3211
        %v3523 = vunpack.c.l.b16 %v3212
        %v3524 = vunpack.c.h.b16 %v3212
        %v3525 = vunpack.c.l.b16 %v3213
        %v3526 = vunpack.c.l.b16 %v3214
        %v3527 = vunpack.c.h.b16 %v3214
        %v3528 = vunpack.c.l.b16 %v3215
        %v3529 = vunpack.c.l.b16 %v3216
        %v3530 = vunpack.c.h.b16 %v3216
        %v3531 = vunpack.c.l.b16 %v3217
        %v3532 = vunpack.c.l.b16 %v3218
        %v3533 = vunpack.c.h.b16 %v3218
        %v3534 = vunpack.c.l.b16 %v3219
        %v3535 = vunpack.c.l.b16 %v3220
        %v3536 = vunpack.c.h.b16 %v3220
        %v3537 = vunpack.c.l.b16 %v3221
        %v3538 = vunpack.c.l.b16 %v3222
        %v3539 = vunpack.c.h.b16 %v3222
        %v3540 = vunpack.c.l.b16 %v3223
        %v3541 = vunpack.c.l.b16 %v3224
        %v3542 = vunpack.c.h.b16 %v3224
        %v3543 = vunpack.c.l.b16 %v3225
        %v3544 = vunpack.c.l.b16 %v3226
        %v3545 = vunpack.c.h.b16 %v3226
        %v3546 = vunpack.c.l.b16 %v3227
        %v3547 = vunpack.c.l.b16 %v3228
        %v3548 = vunpack.c.h.b16 %v3228
        %v3549 = vunpack.c.l.b16 %v3229
        %v3550 = vunpack.c.l.b16 %v3230
        %v3551 = vunpack.c.h.b16 %v3230
        %v3552 = vunpack.c.l.b16 %v3231
        %v3553 = vunpack.c.l.b16 %v3232
        %v3554 = vunpack.c.h.b16 %v3232
        %v3555 = vunpack.c.l.b16 %v3233
        %v3556 = vunpack.c.l.b16 %v3234
        %v3557 = vunpack.c.h.b16 %v3234
        %v3558 = vunpack.c.l.b16 %v3235
        %v3559 = vunpack.c.l.b16 %v3236
        %v3560 = vunpack.c.h.b16 %v3236
        %v3561 = vunpack.c.l.b16 %v3237
        %v3562 = vunpack.c.l.b16 %v3238
        %v3563 = vunpack.c.h.b16 %v3238
        %v3564 = vunpack.c.l.b16 %v3239
        %v3565 = vunpack.c.l.b16 %v3240
        %v3566 = vunpack.c.h.b16 %v3240
        %v3567 = vunpack.c.l.b16 %v3241
        %v3568 = vunpack.c.l.b16 %v3242
        %v3569 = vunpack.c.h.b16 %v3242
        %v3570 = vunpack.c.l.b16 %v3243
        %v3571 = vunpack.c.l.b16 %v3244
        %v3572 = vunpack.c.h.b16 %v3244
        %v3573 = vunpack.c.l.b16 %v3245
        %v3574 = vunpack.c.l.b16 %v3246
        %v3575 = vunpack.c.h.b16 %v3246
        %v3576 = vunpack.c.l.b16 %v3247
        %v3577 = vunpack.c.l.b16 %v3248
        %v3578 = vunpack.c.h.b16 %v3248
        %v3579 = vunpack.c.l.b16 %v3249
        %v3580 = vunpack.c.l.b16 %v3250
        %v3581 = vunpack.c.h.b16 %v3250
        %v3582 = vunpack.c.l.b16 %v3251
        %v3583 = vunpack.c.l.b16 %v3252
        %v3584 = vunpack.c.h.b16 %v3252
        %v3585 = vunpack.c.l.b16 %v3253
        %v3586 = vunpack.c.l.b16 %v3254
        %v3587 = vunpack.c.h.b16 %v3254
        %v3588 = vunpack.c.l.b16 %v3255
        %v3589 = vunpack.c.l.b16 %v3256
        %v3590 = vunpack.c.h.b16 %v3256
        %v3591 = vunpack.c.l.b16 %v3257
        %v3592 = vunpack.c.l.b16 %v3258
        %v3593 = vunpack.c.h.b16 %v3258
        %v3594 = vunpack.c.l.b16 %v3259
        %v3595 = vunpack.c.l.b16 %v3260
        %v3596 = vunpack.c.h.b16 %v3260
        %v3597 = vunpack.c.l.b16 %v3261
        %v3598 = vunpack.c.l.b16 %v3262
        %v3599 = vunpack.c.h.b16 %v3262
        %v3600 = vunpack.c.l.b16 %v3263
        %v3601 = vunpack.c.l.b16 %v3264
        %v3602 = vunpack.c.h.b16 %v3264
        %v3603 = vunpack.c.l.b16 %v3265
        %v3604 = vunpack.c.l.b16 %v3266
        %v3605 = vunpack.c.h.b16 %v3266
        %v3606 = vunpack.c.l.b16 %v3267
        %v3607 = vunpack.c.l.b16 %v3268
        %v3608 = vunpack.c.h.b16 %v3268
        %v3609 = vunpack.c.l.b16 %v3269
        %v3610 = vunpack.c.l.b16 %v3270
        %v3611 = vunpack.c.h.b16 %v3270
        %v3612 = vunpack.c.l.b16 %v3271
        %v3613 = vunpack.c.l.b16 %v3272
        %v3614 = vunpack.c.h.b16 %v3272
        %v3615 = vunpack.c.l.b16 %v3273
        %v3616 = vunpack.c.l.b16 %v3274
        %v3617 = vunpack.c.h.b16 %v3274
        %v3618 = vunpack.c.l.b16 %v3275
        %v3619 = vunpack.c.l.b16 %v3276
        %v3620 = vunpack.c.h.b16 %v3276
        %v3621 = vunpack.c.l.b16 %v3277
        %v3622 = vunpack.c.l.b16 %v3278
        %v3623 = vunpack.c.h.b16 %v3278
        %v3624 = vunpack.c.l.b16 %v3279
        %v3625 = vunpack.c.l.b16 %v3280
        %v3626 = vunpack.c.h.b16 %v3280
        %v3627 = vunpack.c.l.b16 %v3281
        %v3628 = vunpack.c.l.b16 %v3282
        %v3629 = vunpack.c.h.b16 %v3282
        %v3630 = vunpack.c.l.b16 %v3283
        %v3631 = vunpack.c.l.b16 %v3284
        %v3632 = vunpack.c.h.b16 %v3284
        %v3633 = vunpack.c.l.b16 %v3285
        %v3634 = vunpack.c.l.b16 %v3286
        %v3635 = vunpack.c.h.b16 %v3286
        %v3636 = vunpack.c.l.b16 %v3287
        %v3637 = vunpack.c.l.b16 %v3288
        %v3638 = vunpack.c.h.b16 %v3288
        %v3639 = vunpack.c.l.b16 %v3289
        %v3640 = vunpack.c.l.b16 %v3290
        %v3641 = vunpack.c.h.b16 %v3290
        %v3642 = vunpack.c.l.b16 %v3291
        %v3643 = vunpack.c.l.b16 %v3292
        %v3644 = vunpack.c.h.b16 %v3292
        %v3645 = vunpack.c.l.b16 %v3293
        %v3646 = vunpack.c.l.b16 %v3294
        %v3647 = vunpack.c.h.b16 %v3294
        %v3648 = vunpack.c.l.b16 %v3295
        %v3649 = vunpack.c.l.b16 %v3296
        %v3650 = vunpack.c.h.b16 %v3296
        %v3651 = vunpack.c.l.b16 %v3297
        %v3652 = vunpack.c.l.b16 %v3298
        %v3653 = vunpack.c.h.b16 %v3298
        %v3654 = vunpack.c.l.b16 %v3299
        %v3655 = vunpack.c.l.b16 %v3300
        %v3656 = vunpack.c.h.b16 %v3300
        %v3657 = vunpack.c.l.b16 %v3301
        %v3658 = vunpack.c.l.b16 %v3302
        %v3659 = vunpack.c.h.b16 %v3302
        %v3660 = vunpack.c.l.b16 %v3303
        %v3661 = vunpack.c.l.b16 %v3304
        %v3662 = vunpack.c.h.b16 %v3304
        %v3663 = vunpack.c.l.b16 %v3305
        %v3664 = vunpack.c.l.b16 %v3306
        %v3665 = vunpack.c.h.b16 %v3306
        %v3666 = vunpack.c.l.b16 %v3307
        %v3667 = vunpack.c.l.b16 %v3308
        %v3668 = vunpack.c.h.b16 %v3308
        %v3669 = vunpack.c.l.b16 %v3309
        %v3670 = vunpack.c.l.b16 %v3310
        %v3671 = vunpack.c.h.b16 %v3310
        %v3672 = vunpack.c.l.b16 %v3311
        %v3673 = vunpack.c.l.b16 %v3312
        %v3674 = vunpack.c.h.b16 %v3312
        %v3675 = vunpack.c.l.b16 %v3313
        %v3676 = vunpack.c.l.b16 %v3314
        %v3677 = vunpack.c.h.b16 %v3314
        %v3678 = vunpack.c.l.b16 %v3315
        %v3679 = vunpack.c.l.b16 %v3316
        %v3680 = vunpack.c.h.b16 %v3316
        %v3681 = vunpack.c.l.b16 %v3317
        %v3682 = vunpack.c.l.b16 %v3318
        %v3683 = vunpack.c.h.b16 %v3318
        %v3684 = vunpack.c.l.b16 %v3319
        %v3685 = vunpack.c.l.b16 %v3320
        %v3686 = vunpack.c.h.b16 %v3320
        %v3687 = vunpack.c.l.b16 %v3321
        %v3688 = vunpack.c.l.b16 %v3322
        %v3689 = vunpack.c.h.b16 %v3322
        %v3690 = vunpack.c.l.b16 %v3323
        %v3691 = vunpack.c.l.b16 %v3324
        %v3692 = vunpack.c.h.b16 %v3324
        %v3693 = vunpack.c.l.b16 %v3325
        %v3694 = vunpack.c.l.b16 %v3326
        %v3695 = vunpack.c.h.b16 %v3326
        %v3696 = vunpack.c.l.b16 %v3327
        %v3697 = vpack.c.b16 %v3508, %v3505
        %v3698 = vpack.c.b16 %v3509, %v3506
        %v3699 = vpack.c.b16 %v3510, %v3507
        %v3700 = vpack.c.b16 %v3514, %v3511
        %v3701 = vpack.c.b16 %v3515, %v3512
        %v3702 = vpack.c.b16 %v3516, %v3513
        %v3703 = vpack.c.b16 %v3520, %v3517
        %v3704 = vpack.c.b16 %v3521, %v3518
        %v3705 = vpack.c.b16 %v3522, %v3519
        %v3706 = vpack.c.b16 %v3526, %v3523
        %v3707 = vpack.c.b16 %v3527, %v3524
        %v3708 = vpack.c.b16 %v3528, %v3525
        %v3709 = vpack.c.b16 %v3532, %v3529
        %v3710 = vpack.c.b16 %v3533, %v3530
        %v3711 = vpack.c.b16 %v3534, %v3531
        %v3712 = vpack.c.b16 %v3538, %v3535
        %v3713 = vpack.c.b16 %v3539, %v3536
        %v3714 = vpack.c.b16 %v3540, %v3537
        %v3715 = vpack.c.b16 %v3544, %v3541
        %v3716 = vpack.c.b16 %v3545, %v3542
        %v3717 = vpack.c.b16 %v3546, %v3543
        %v3718 = vpack.c.b16 %v3550, %v3547
        %v3719 = vpack.c.b16 %v3551, %v3548
        %v3720 = vpack.c.b16 %v3552, %v3549
        %v3721 = vpack.c.b16 %v3556, %v3553
        %v3722 = vpack.c.b16 %v3557, %v3554
        %v3723 = vpack.c.b16 %v3558, %v3555
        %v3724 = vpack.c.b16 %v3562, %v3559
        %v3725 = vpack.c.b16 %v3563, %v3560
        %v3726 = vpack.c.b16 %v3564, %v3561
        %v3727 = vpack.c.b16 %v3568, %v3565
        %v3728 = vpack.c.b16 %v3569, %v3566
        %v3729 = vpack.c.b16 %v3570, %v3567
        %v3730 = vpack.c.b16 %v3574, %v3571
        %v3731 = vpack.c.b16 %v3575, %v3572
        %v3732 = vpack.c.b16 %v3576, %v3573
        %v3733 = vpack.c.b16 %v3580, %v3577
        %v3734 = vpack.c.b16 %v3581, %v3578
        %v3735 = vpack.c.b16 %v3582, %v3579
        %v3736 = vpack.c.b16 %v3586, %v3583
        %v3737 = vpack.c.b16 %v3587, %v3584
        %v3738 = vpack.c.b16 %v3588, %v3585
        %v3739 = vpack.c.b16 %v3592, %v3589
        %v3740 = vpack.c.b16 %v3593, %v3590
        %v3741 = vpack.c.b16 %v3594, %v3591
        %v3742 = vpack.c.b16 %v3598, %v3595
        %v3743 = vpack.c.b16 %v3599, %v3596
        %v3744 = vpack.c.b16 %v3600, %v3597
        %v3745 = vpack.c.b16 %v3604, %v3601
        %v3746 = vpack.c.b16 %v3605, %v3602
        %v3747 = vpack.c.b16 %v3606, %v3603
        %v3748 = vpack.c.b16 %v3610, %v3607
        %v3749 = vpack.c.b16 %v3611, %v3608
        %v3750 = vpack.c.b16 %v3612, %v3609
        %v3751 = vpack.c.b16 %v3616, %v3613
        %v3752 = vpack.c.b16 %v3617, %v3614
        %v3753 = vpack.c.b16 %v3618, %v3615
        %v3754 = vpack.c.b16 %v3622, %v3619
        %v3755 = vpack.c.b16 %v3623, %v3620
        %v3756 = vpack.c.b16 %v3624, %v3621
        %v3757 = vpack.c.b16 %v3628, %v3625
        %v3758 = vpack.c.b16 %v3629, %v3626
        %v3759 = vpack.c.b16 %v3630, %v3627
        %v3760 = vpack.c.b16 %v3634, %v3631
        %v3761 = vpack.c.b16 %v3635, %v3632
        %v3762 = vpack.c.b16 %v3636, %v3633
        %v3763 = vpack.c.b16 %v3640, %v3637
        %v3764 = vpack.c.b16 %v3641, %v3638
        %v3765 = vpack.c.b16 %v3642, %v3639
        %v3766 = vpack.c.b16 %v3646, %v3643
        %v3767 = vpack.c.b16 %v3647, %v3644
        %v3768 = vpack.c.b16 %v3648, %v3645
        %v3769 = vpack.c.b16 %v3652, %v3649
        %v3770 = vpack.c.b16 %v3653, %v3650
        %v3771 = vpack.c.b16 %v3654, %v3651
        %v3772 = vpack.c.b16 %v3658, %v3655
        %v3773 = vpack.c.b16 %v3659, %v3656
        %v3774 = vpack.c.b16 %v3660, %v3657
        %v3775 = vpack.c.b16 %v3664, %v3661
        %v3776 = vpack.c.b16 %v3665, %v3662
        %v3777 = vpack.c.b16 %v3666, %v3663
        %v3778 = vpack.c.b16 %v3670, %v3667
        %v3779 = vpack.c.b16 %v3671, %v3668
        %v3780 = vpack.c.b16 %v3672, %v3669
        %v3781 = vpack.c.b16 %v3676, %v3673
        %v3782 = vpack.c.b16 %v3677, %v3674
        %v3783 = vpack.c.b16 %v3678, %v3675
        %v3784 = vpack.c.b16 %v3682, %v3679
        %v3785 = vpack.c.b16 %v3683, %v3680
        %v3786 = vpack.c.b16 %v3684, %v3681
        %v3787 = vpack.c.b16 %v3688, %v3685
        %v3788 = vpack.c.b16 %v3689, %v3686
        %v3789 = vpack.c.b16 %v3690, %v3687
        %v3790 = vpack.c.b16 %v3694, %v3691
        %v3791 = vpack.c.b16 %v3695, %v3692
        %v3792 = vpack.c.b16 %v3696, %v3693
        %v3937 = vunpack.c.l.b16 %v3329
        %v3938 = vunpack.c.l.b16 %v3330
        %v3939 = vunpack.c.l.b16 %v3331
        %v3940 = vunpack.c.l.b16 %v3332
        %v3941 = vunpack.c.l.b16 %v3333
        %v3942 = vunpack.c.l.b16 %v3334
        %v3943 = vunpack.c.l.b16 %v3335
        %v3944 = vunpack.c.l.b16 %v3336
        %v3945 = vunpack.c.l.b16 %v3337
        %v3946 = vunpack.c.l.b16 %v3338
        %v3947 = vunpack.c.l.b16 %v3339
        %v3948 = vunpack.c.l.b16 %v3340
        %v3949 = vunpack.c.l.b16 %v3341
        %v3950 = vunpack.c.l.b16 %v3342
        %v3951 = vunpack.c.l.b16 %v3343
        %v3952 = vunpack.c.l.b16 %v3344
        %v3953 = vunpack.c.l.b16 %v3345
        %v3954 = vunpack.c.l.b16 %v3346
        %v3955 = vunpack.c.l.b16 %v3347
        %v3956 = vunpack.c.l.b16 %v3348
        %v3957 = vunpack.c.l.b16 %v3349
        %v3958 = vunpack.c.l.b16 %v3350
        %v3959 = vunpack.c.l.b16 %v3351
        %v3960 = vunpack.c.l.b16 %v3352
        %v3961 = vunpack.c.l.b16 %v3353
        %v3962 = vunpack.c.l.b16 %v3354
        %v3963 = vunpack.c.l.b16 %v3355
        %v3964 = vunpack.c.l.b16 %v3356
        %v3965 = vunpack.c.l.b16 %v3357
        %v3966 = vunpack.c.l.b16 %v3358
        %v3967 = vunpack.c.l.b16 %v3359
        %v3968 = vunpack.c.l.b16 %v3360
        %v3969 = vunpack.c.l.b16 %v3361
        %v3970 = vunpack.c.l.b16 %v3362
        %v3971 = vunpack.c.l.b16 %v3363
        %v3972 = vunpack.c.l.b16 %v3364
        %v3973 = vunpack.c.l.b16 %v3365
        %v3974 = vunpack.c.l.b16 %v3366
        %v3975 = vunpack.c.l.b16 %v3367
        %v3976 = vunpack.c.l.b16 %v3368
        %v3977 = vunpack.c.l.b16 %v3369
        %v3978 = vunpack.c.l.b16 %v3370
        %v3979 = vunpack.c.l.b16 %v3371
        %v3980 = vunpack.c.l.b16 %v3372
        %v3981 = vunpack.c.l.b16 %v3373
        %v3982 = vunpack.c.l.b16 %v3374
        %v3983 = vunpack.c.l.b16 %v3375
        %v3984 = vunpack.c.l.b16 %v3376
        %v3985 = vpack.c.b16 %v3938, %v3937
        %v3986 = vpack.c.b16 %v3940, %v3939
        %v3987 = vpack.c.b16 %v3942, %v3941
        %v3988 = vpack.c.b16 %v3944, %v3943
        %v3989 = vpack.c.b16 %v3946, %v3945
        %v3990 = vpack.c.b16 %v3948, %v3947
        %v3991 = vpack.c.b16 %v3950, %v3949
        %v3992 = vpack.c.b16 %v3952, %v3951
        %v3993 = vpack.c.b16 %v3954, %v3953
        %v3994 = vpack.c.b16 %v3956, %v3955
        %v3995 = vpack.c.b16 %v3958, %v3957
        %v3996 = vpack.c.b16 %v3960, %v3959
        %v3997 = vpack.c.b16 %v3962, %v3961
        %v3998 = vpack.c.b16 %v3964, %v3963
        %v3999 = vpack.c.b16 %v3966, %v3965
        %v4000 = vpack.c.b16 %v3968, %v3967
        %v4001 = vpack.c.b16 %v3970, %v3969
        %v4002 = vpack.c.b16 %v3972, %v3971
        %v4003 = vpack.c.b16 %v3974, %v3973
        %v4004 = vpack.c.b16 %v3976, %v3975
        %v4005 = vpack.c.b16 %v3978, %v3977
        %v4006 = vpack.c.b16 %v3980, %v3979
        %v4007 = vpack.c.b16 %v3982, %v3981
        %v4008 = vpack.c.b16 %v3984, %v3983
        %4033 = vmatprep.subr.bf16.mxu0 0
        %4034 = vmatpush1.bf16.msra.mxu0 %v3992
        %4035 = vmatprep.subr.bf16.mxu0 0
        %4036 = vmatpush1.bf16.msra.mxu0 %v3991
        %4037 = vmatprep.subr.bf16.mxu0 0
        %4038 = vmatpush1.bf16.msra.mxu0 %v3990
        %4039 = vmatprep.subr.bf16.mxu0 0
        %4040 = vmatpush1.bf16.msra.mxu0 %v3989
        %4041 = vmatprep.subr.bf16.mxu0 0
        %4042 = vmatpush1.bf16.msra.mxu0 %v3988
        %4043 = vmatprep.subr.bf16.mxu0 0
        %4044 = vmatpush1.bf16.msra.mxu0 %v3987
        %4045 = vmatprep.subr.bf16.mxu0 0
        %4046 = vmatpush1.bf16.msra.mxu0 %v3986
        %4047 = vmatprep.subr.bf16.mxu0 0
        %4048 = vmatpush1.bf16.msra.mxu0 %v3985
        %4049 = vmatprep.subr.bf16.mxu0 0
        %4050 = vmatpush2.bf16.msra.mxu0 %v4000
        %4051 = vmatprep.subr.bf16.mxu0 0
        %4052 = vmatpush2.bf16.msra.mxu0 %v3999
        %4053 = vmatprep.subr.bf16.mxu0 0
        %4054 = vmatpush2.bf16.msra.mxu0 %v3998
        %4055 = vmatprep.subr.bf16.mxu0 0
        %4056 = vmatpush2.bf16.msra.mxu0 %v3997
        %4057 = vmatprep.subr.bf16.mxu0 0
        %4058 = vmatpush2.bf16.msra.mxu0 %v3996
        %4059 = vmatprep.subr.bf16.mxu0 0
        %4060 = vmatpush2.bf16.msra.mxu0 %v3995
        %4061 = vmatprep.subr.bf16.mxu0 0
        %4062 = vmatpush2.bf16.msra.mxu0 %v3994
        %4063 = vmatprep.subr.bf16.mxu0 0
        %4064 = vmatpush2.bf16.msra.mxu0 %v3993
        %4065 = vmatprep.mubr.bf16.mxu0 %v3698
        %4066 = vmatmul.mubr.bf16.gmra.mxu0 %v3697
        %v4067 = vpop.f32.mrf.mxu0
        %v4068 = vadd.f32 0.0, %v4067
        %v4069 = vpop.f32.mrf.mxu0
        %v4070 = vpop.f32.mrf.mxu0
        %v4071 = vadd.f32 0.0, %v4070
        %v4072 = vpop.f32.mrf.mxu0
        %4073 = vmatprep.mubr.bf16.mxu0 %v3701
        %4074 = vmatmul.mubr.bf16.gmra.mxu0 %v3700
        %v4075 = vpop.f32.mrf.mxu0
        %v4076 = vadd.f32 0.0, %v4075
        %v4077 = vpop.f32.mrf.mxu0
        %v4078 = vpop.f32.mrf.mxu0
        %v4079 = vadd.f32 0.0, %v4078
        %v4080 = vpop.f32.mrf.mxu0
        %4081 = vmatprep.mubr.bf16.mxu0 %v3704
        %4082 = vmatmul.mubr.bf16.gmra.mxu0 %v3703
        %v4083 = vpop.f32.mrf.mxu0
        %v4084 = vadd.f32 0.0, %v4083
        %v4085 = vpop.f32.mrf.mxu0
        %v4086 = vpop.f32.mrf.mxu0
        %v4087 = vadd.f32 0.0, %v4086
        %v4088 = vpop.f32.mrf.mxu0
        %4089 = vmatprep.mubr.bf16.mxu0 %v3707
        %4090 = vmatmul.mubr.bf16.gmra.mxu0 %v3706
        %v4091 = vpop.f32.mrf.mxu0
        %v4092 = vadd.f32 0.0, %v4091
        %v4093 = vpop.f32.mrf.mxu0
        %v4094 = vpop.f32.mrf.mxu0
        %v4095 = vadd.f32 0.0, %v4094
        %v4096 = vpop.f32.mrf.mxu0
        %4097 = vmatprep.mubr.bf16.mxu0 %v3710
        %4098 = vmatmul.mubr.bf16.gmra.mxu0 %v3709
        %v4099 = vpop.f32.mrf.mxu0
        %v4100 = vadd.f32 0.0, %v4099
        %v4101 = vpop.f32.mrf.mxu0
        %v4102 = vpop.f32.mrf.mxu0
        %v4103 = vadd.f32 0.0, %v4102
        %v4104 = vpop.f32.mrf.mxu0
        %4105 = vmatprep.mubr.bf16.mxu0 %v3713
        %4106 = vmatmul.mubr.bf16.gmra.mxu0 %v3712
        %v4107 = vpop.f32.mrf.mxu0
        %v4108 = vadd.f32 0.0, %v4107
        %v4109 = vpop.f32.mrf.mxu0
        %v4110 = vpop.f32.mrf.mxu0
        %v4111 = vadd.f32 0.0, %v4110
        %v4112 = vpop.f32.mrf.mxu0
        %4113 = vmatprep.mubr.bf16.mxu0 %v3716
        %4114 = vmatmul.mubr.bf16.gmra.mxu0 %v3715
        %v4115 = vpop.f32.mrf.mxu0
        %v4116 = vadd.f32 0.0, %v4115
        %v4117 = vpop.f32.mrf.mxu0
        %v4118 = vpop.f32.mrf.mxu0
        %v4119 = vadd.f32 0.0, %v4118
        %v4120 = vpop.f32.mrf.mxu0
        %4121 = vmatprep.mubr.bf16.mxu0 %v3719
        %4122 = vmatmul.mubr.bf16.gmra.mxu0 %v3718
        %v4123 = vpop.f32.mrf.mxu0
        %v4124 = vadd.f32 0.0, %v4123
        %v4125 = vpop.f32.mrf.mxu0
        %v4126 = vpop.f32.mrf.mxu0
        %v4127 = vadd.f32 0.0, %v4126
        %v4128 = vpop.f32.mrf.mxu0
        %4129 = vmatprep.mubr.bf16.mxu0 %v3722
        %4130 = vmatmul.mubr.bf16.gmra.mxu0 %v3721
        %v4131 = vpop.f32.mrf.mxu0
        %v4132 = vadd.f32 0.0, %v4131
        %v4133 = vpop.f32.mrf.mxu0
        %v4134 = vpop.f32.mrf.mxu0
        %v4135 = vadd.f32 0.0, %v4134
        %v4136 = vpop.f32.mrf.mxu0
        %4137 = vmatprep.mubr.bf16.mxu0 %v3725
        %4138 = vmatmul.mubr.bf16.gmra.mxu0 %v3724
        %v4139 = vpop.f32.mrf.mxu0
        %v4140 = vadd.f32 0.0, %v4139
        %v4141 = vpop.f32.mrf.mxu0
        %v4142 = vpop.f32.mrf.mxu0
        %v4143 = vadd.f32 0.0, %v4142
        %v4144 = vpop.f32.mrf.mxu0
        %4145 = vmatprep.mubr.bf16.mxu0 %v3728
        %4146 = vmatmul.mubr.bf16.gmra.mxu0 %v3727
        %v4147 = vpop.f32.mrf.mxu0
        %v4148 = vadd.f32 0.0, %v4147
        %v4149 = vpop.f32.mrf.mxu0
        %v4150 = vpop.f32.mrf.mxu0
        %v4151 = vadd.f32 0.0, %v4150
        %v4152 = vpop.f32.mrf.mxu0
        %4153 = vmatprep.mubr.bf16.mxu0 %v3731
        %4154 = vmatmul.mubr.bf16.gmra.mxu0 %v3730
        %v4155 = vpop.f32.mrf.mxu0
        %v4156 = vadd.f32 0.0, %v4155
        %v4157 = vpop.f32.mrf.mxu0
        %v4158 = vpop.f32.mrf.mxu0
        %v4159 = vadd.f32 0.0, %v4158
        %v4160 = vpop.f32.mrf.mxu0
        %4161 = vmatprep.mubr.bf16.mxu0 %v3734
        %4162 = vmatmul.mubr.bf16.gmra.mxu0 %v3733
        %v4163 = vpop.f32.mrf.mxu0
        %v4164 = vadd.f32 0.0, %v4163
        %v4165 = vpop.f32.mrf.mxu0
        %v4166 = vpop.f32.mrf.mxu0
        %v4167 = vadd.f32 0.0, %v4166
        %v4168 = vpop.f32.mrf.mxu0
        %4169 = vmatprep.mubr.bf16.mxu0 %v3737
        %4170 = vmatmul.mubr.bf16.gmra.mxu0 %v3736
        %v4171 = vpop.f32.mrf.mxu0
        %v4172 = vadd.f32 0.0, %v4171
        %v4173 = vpop.f32.mrf.mxu0
        %v4174 = vpop.f32.mrf.mxu0
        %v4175 = vadd.f32 0.0, %v4174
        %v4176 = vpop.f32.mrf.mxu0
        %4177 = vmatprep.mubr.bf16.mxu0 %v3740
        %4178 = vmatmul.mubr.bf16.gmra.mxu0 %v3739
        %v4179 = vpop.f32.mrf.mxu0
        %v4180 = vadd.f32 0.0, %v4179
        %v4181 = vpop.f32.mrf.mxu0
        %v4182 = vpop.f32.mrf.mxu0
        %v4183 = vadd.f32 0.0, %v4182
        %v4184 = vpop.f32.mrf.mxu0
        %4185 = vmatprep.mubr.bf16.mxu0 %v3743
        %4186 = vmatmul.mubr.bf16.gmra.mxu0 %v3742
        %v4187 = vpop.f32.mrf.mxu0
        %v4188 = vadd.f32 0.0, %v4187
        %v4189 = vpop.f32.mrf.mxu0
        %v4190 = vpop.f32.mrf.mxu0
        %v4191 = vadd.f32 0.0, %v4190
        %v4192 = vpop.f32.mrf.mxu0
        %4193 = vmatprep.mubr.bf16.mxu0 %v3746
        %4194 = vmatmul.mubr.bf16.gmra.mxu0 %v3745
        %v4195 = vpop.f32.mrf.mxu0
        %v4196 = vadd.f32 0.0, %v4195
        %v4197 = vpop.f32.mrf.mxu0
        %v4198 = vpop.f32.mrf.mxu0
        %v4199 = vadd.f32 0.0, %v4198
        %v4200 = vpop.f32.mrf.mxu0
        %4201 = vmatprep.mubr.bf16.mxu0 %v3749
        %4202 = vmatmul.mubr.bf16.gmra.mxu0 %v3748
        %v4203 = vpop.f32.mrf.mxu0
        %v4204 = vadd.f32 0.0, %v4203
        %v4205 = vpop.f32.mrf.mxu0
        %v4206 = vpop.f32.mrf.mxu0
        %v4207 = vadd.f32 0.0, %v4206
        %v4208 = vpop.f32.mrf.mxu0
        %4209 = vmatprep.mubr.bf16.mxu0 %v3752
        %4210 = vmatmul.mubr.bf16.gmra.mxu0 %v3751
        %v4211 = vpop.f32.mrf.mxu0
        %v4212 = vadd.f32 0.0, %v4211
        %v4213 = vpop.f32.mrf.mxu0
        %v4214 = vpop.f32.mrf.mxu0
        %v4215 = vadd.f32 0.0, %v4214
        %v4216 = vpop.f32.mrf.mxu0
        %4217 = vmatprep.mubr.bf16.mxu0 %v3755
        %4218 = vmatmul.mubr.bf16.gmra.mxu0 %v3754
        %v4219 = vpop.f32.mrf.mxu0
        %v4220 = vadd.f32 0.0, %v4219
        %v4221 = vpop.f32.mrf.mxu0
        %v4222 = vpop.f32.mrf.mxu0
        %v4223 = vadd.f32 0.0, %v4222
        %v4224 = vpop.f32.mrf.mxu0
        %4225 = vmatprep.mubr.bf16.mxu0 %v3758
        %4226 = vmatmul.mubr.bf16.gmra.mxu0 %v3757
        %v4227 = vpop.f32.mrf.mxu0
        %v4228 = vadd.f32 0.0, %v4227
        %v4229 = vpop.f32.mrf.mxu0
        %v4230 = vpop.f32.mrf.mxu0
        %v4231 = vadd.f32 0.0, %v4230
        %v4232 = vpop.f32.mrf.mxu0
        %4233 = vmatprep.mubr.bf16.mxu0 %v3761
        %4234 = vmatmul.mubr.bf16.gmra.mxu0 %v3760
        %v4235 = vpop.f32.mrf.mxu0
        %v4236 = vadd.f32 0.0, %v4235
        %v4237 = vpop.f32.mrf.mxu0
        %v4238 = vpop.f32.mrf.mxu0
        %v4239 = vadd.f32 0.0, %v4238
        %v4240 = vpop.f32.mrf.mxu0
        %4241 = vmatprep.mubr.bf16.mxu0 %v3764
        %4242 = vmatmul.mubr.bf16.gmra.mxu0 %v3763
        %v4243 = vpop.f32.mrf.mxu0
        %v4244 = vadd.f32 0.0, %v4243
        %v4245 = vpop.f32.mrf.mxu0
        %v4246 = vpop.f32.mrf.mxu0
        %v4247 = vadd.f32 0.0, %v4246
        %v4248 = vpop.f32.mrf.mxu0
        %4249 = vmatprep.mubr.bf16.mxu0 %v3767
        %4250 = vmatmul.mubr.bf16.gmra.mxu0 %v3766
        %v4251 = vpop.f32.mrf.mxu0
        %v4252 = vadd.f32 0.0, %v4251
        %v4253 = vpop.f32.mrf.mxu0
        %v4254 = vpop.f32.mrf.mxu0
        %v4255 = vadd.f32 0.0, %v4254
        %v4256 = vpop.f32.mrf.mxu0
        %4257 = vmatprep.mubr.bf16.mxu0 %v3770
        %4258 = vmatmul.mubr.bf16.gmra.mxu0 %v3769
        %v4259 = vpop.f32.mrf.mxu0
        %v4260 = vadd.f32 0.0, %v4259
        %v4261 = vpop.f32.mrf.mxu0
        %v4262 = vpop.f32.mrf.mxu0
        %v4263 = vadd.f32 0.0, %v4262
        %v4264 = vpop.f32.mrf.mxu0
        %4265 = vmatprep.mubr.bf16.mxu0 %v3773
        %4266 = vmatmul.mubr.bf16.gmra.mxu0 %v3772
        %v4267 = vpop.f32.mrf.mxu0
        %v4268 = vadd.f32 0.0, %v4267
        %v4269 = vpop.f32.mrf.mxu0
        %v4270 = vpop.f32.mrf.mxu0
        %v4271 = vadd.f32 0.0, %v4270
        %v4272 = vpop.f32.mrf.mxu0
        %4273 = vmatprep.mubr.bf16.mxu0 %v3776
        %4274 = vmatmul.mubr.bf16.gmra.mxu0 %v3775
        %v4275 = vpop.f32.mrf.mxu0
        %v4276 = vadd.f32 0.0, %v4275
        %v4277 = vpop.f32.mrf.mxu0
        %v4278 = vpop.f32.mrf.mxu0
        %v4279 = vadd.f32 0.0, %v4278
        %v4280 = vpop.f32.mrf.mxu0
        %4281 = vmatprep.mubr.bf16.mxu0 %v3779
        %4282 = vmatmul.mubr.bf16.gmra.mxu0 %v3778
        %v4283 = vpop.f32.mrf.mxu0
        %v4284 = vadd.f32 0.0, %v4283
        %v4285 = vpop.f32.mrf.mxu0
        %v4286 = vpop.f32.mrf.mxu0
        %v4287 = vadd.f32 0.0, %v4286
        %v4288 = vpop.f32.mrf.mxu0
        %4289 = vmatprep.mubr.bf16.mxu0 %v3782
        %4290 = vmatmul.mubr.bf16.gmra.mxu0 %v3781
        %v4291 = vpop.f32.mrf.mxu0
        %v4292 = vadd.f32 0.0, %v4291
        %v4293 = vpop.f32.mrf.mxu0
        %v4294 = vpop.f32.mrf.mxu0
        %v4295 = vadd.f32 0.0, %v4294
        %v4296 = vpop.f32.mrf.mxu0
        %4297 = vmatprep.mubr.bf16.mxu0 %v3785
        %4298 = vmatmul.mubr.bf16.gmra.mxu0 %v3784
        %v4299 = vpop.f32.mrf.mxu0
        %v4300 = vadd.f32 0.0, %v4299
        %v4301 = vpop.f32.mrf.mxu0
        %v4302 = vpop.f32.mrf.mxu0
        %v4303 = vadd.f32 0.0, %v4302
        %v4304 = vpop.f32.mrf.mxu0
        %4305 = vmatprep.mubr.bf16.mxu0 %v3788
        %4306 = vmatmul.mubr.bf16.gmra.mxu0 %v3787
        %v4307 = vpop.f32.mrf.mxu0
        %v4308 = vadd.f32 0.0, %v4307
        %v4309 = vpop.f32.mrf.mxu0
        %v4310 = vpop.f32.mrf.mxu0
        %v4311 = vadd.f32 0.0, %v4310
        %v4312 = vpop.f32.mrf.mxu0
        %4313 = vmatprep.mubr.bf16.mxu0 %v3791
        %4314 = vmatmul.mubr.bf16.gmra.mxu0 %v3790
        %v4315 = vpop.f32.mrf.mxu0
        %v4316 = vadd.f32 0.0, %v4315
        %v4317 = vpop.f32.mrf.mxu0
        %v4318 = vpop.f32.mrf.mxu0
        %v4319 = vadd.f32 0.0, %v4318
        %v4320 = vpop.f32.mrf.mxu0
        %4321 = vdwg.mxu0
        %4322 = vmatprep.subr.bf16.mxu0 0
        %4323 = vmatpush1.bf16.msra.mxu0 %v4008
        %4324 = vmatprep.subr.bf16.mxu0 0
        %4325 = vmatpush1.bf16.msra.mxu0 %v4007
        %4326 = vmatprep.subr.bf16.mxu0 0
        %4327 = vmatpush1.bf16.msra.mxu0 %v4006
        %4328 = vmatprep.subr.bf16.mxu0 0
        %4329 = vmatpush1.bf16.msra.mxu0 %v4005
        %4330 = vmatprep.subr.bf16.mxu0 0
        %4331 = vmatpush1.bf16.msra.mxu0 %v4004
        %4332 = vmatprep.subr.bf16.mxu0 0
        %4333 = vmatpush1.bf16.msra.mxu0 %v4003
        %4334 = vmatprep.subr.bf16.mxu0 0
        %4335 = vmatpush1.bf16.msra.mxu0 %v4002
        %4336 = vmatprep.subr.bf16.mxu0 0
        %4337 = vmatpush1.bf16.msra.mxu0 %v4001
        %4338 = vmatprep.subr.bf16.mxu0 0
        %4339 = vmatpush2.bf16.msra.mxu0 0
        %4340 = vmatprep.subr.bf16.mxu0 0
        %4341 = vmatpush2.bf16.msra.mxu0 0
        %4342 = vmatprep.subr.bf16.mxu0 0
        %4343 = vmatpush2.bf16.msra.mxu0 0
        %4344 = vmatprep.subr.bf16.mxu0 0
        %4345 = vmatpush2.bf16.msra.mxu0 0
        %4346 = vmatprep.subr.bf16.mxu0 0
        %4347 = vmatpush2.bf16.msra.mxu0 0
        %4348 = vmatprep.subr.bf16.mxu0 0
        %4349 = vmatpush2.bf16.msra.mxu0 0
        %4350 = vmatprep.subr.bf16.mxu0 0
        %4351 = vmatpush2.bf16.msra.mxu0 0
        %4352 = vmatprep.subr.bf16.mxu0 0
        %4353 = vmatpush2.bf16.msra.mxu0 0
        %4354 = vmatprep.mubr.bf16.mxu0 0
        %4355 = vmatmul.mubr.bf16.gmra.mxu0 %v3699
        %v4356 = vpop.f32.mrf.mxu0
        %v4357 = vadd.f32 %v4068, %v4356
        %v4358 = vpop.f32.mrf.mxu0
        %v4359 = vpop.f32.mrf.mxu0
        %v4360 = vadd.f32 %v4071, %v4359
        %v4361 = vpop.f32.mrf.mxu0
        %4362 = vmatprep.mubr.bf16.mxu0 0
        %4363 = vmatmul.mubr.bf16.gmra.mxu0 %v3702
        %v4364 = vpop.f32.mrf.mxu0
        %v4365 = vadd.f32 %v4076, %v4364
        %v4366 = vpop.f32.mrf.mxu0
        %v4367 = vpop.f32.mrf.mxu0
        %v4368 = vadd.f32 %v4079, %v4367
        %v4369 = vpop.f32.mrf.mxu0
        %4370 = vmatprep.mubr.bf16.mxu0 0
        %4371 = vmatmul.mubr.bf16.gmra.mxu0 %v3705
        %v4372 = vpop.f32.mrf.mxu0
        %v4373 = vadd.f32 %v4084, %v4372
        %v4374 = vpop.f32.mrf.mxu0
        %v4375 = vpop.f32.mrf.mxu0
        %v4376 = vadd.f32 %v4087, %v4375
        %v4377 = vpop.f32.mrf.mxu0
        %4378 = vmatprep.mubr.bf16.mxu0 0
        %4379 = vmatmul.mubr.bf16.gmra.mxu0 %v3708
        %v4380 = vpop.f32.mrf.mxu0
        %v4381 = vadd.f32 %v4092, %v4380
        %v4382 = vpop.f32.mrf.mxu0
        %v4383 = vpop.f32.mrf.mxu0
        %v4384 = vadd.f32 %v4095, %v4383
        %v4385 = vpop.f32.mrf.mxu0
        %4386 = vmatprep.mubr.bf16.mxu0 0
        %4387 = vmatmul.mubr.bf16.gmra.mxu0 %v3711
        %v4388 = vpop.f32.mrf.mxu0
        %v4389 = vadd.f32 %v4100, %v4388
        %v4390 = vpop.f32.mrf.mxu0
        %v4391 = vpop.f32.mrf.mxu0
        %v4392 = vadd.f32 %v4103, %v4391
        %v4393 = vpop.f32.mrf.mxu0
        %4394 = vmatprep.mubr.bf16.mxu0 0
        %4395 = vmatmul.mubr.bf16.gmra.mxu0 %v3714
        %v4396 = vpop.f32.mrf.mxu0
        %v4397 = vadd.f32 %v4108, %v4396
        %v4398 = vpop.f32.mrf.mxu0
        %v4399 = vpop.f32.mrf.mxu0
        %v4400 = vadd.f32 %v4111, %v4399
        %v4401 = vpop.f32.mrf.mxu0
        %4402 = vmatprep.mubr.bf16.mxu0 0
        %4403 = vmatmul.mubr.bf16.gmra.mxu0 %v3717
        %v4404 = vpop.f32.mrf.mxu0
        %v4405 = vadd.f32 %v4116, %v4404
        %v4406 = vpop.f32.mrf.mxu0
        %v4407 = vpop.f32.mrf.mxu0
        %v4408 = vadd.f32 %v4119, %v4407
        %v4409 = vpop.f32.mrf.mxu0
        %4410 = vmatprep.mubr.bf16.mxu0 0
        %4411 = vmatmul.mubr.bf16.gmra.mxu0 %v3720
        %v4412 = vpop.f32.mrf.mxu0
        %v4413 = vadd.f32 %v4124, %v4412
        %v4414 = vpop.f32.mrf.mxu0
        %v4415 = vpop.f32.mrf.mxu0
        %v4416 = vadd.f32 %v4127, %v4415
        %v4417 = vpop.f32.mrf.mxu0
        %4418 = vmatprep.mubr.bf16.mxu0 0
        %4419 = vmatmul.mubr.bf16.gmra.mxu0 %v3723
        %v4420 = vpop.f32.mrf.mxu0
        %v4421 = vadd.f32 %v4132, %v4420
        %v4422 = vpop.f32.mrf.mxu0
        %v4423 = vpop.f32.mrf.mxu0
        %v4424 = vadd.f32 %v4135, %v4423
        %v4425 = vpop.f32.mrf.mxu0
        %4426 = vmatprep.mubr.bf16.mxu0 0
        %4427 = vmatmul.mubr.bf16.gmra.mxu0 %v3726
        %v4428 = vpop.f32.mrf.mxu0
        %v4429 = vadd.f32 %v4140, %v4428
        %v4430 = vpop.f32.mrf.mxu0
        %v4431 = vpop.f32.mrf.mxu0
        %v4432 = vadd.f32 %v4143, %v4431
        %v4433 = vpop.f32.mrf.mxu0
        %4434 = vmatprep.mubr.bf16.mxu0 0
        %4435 = vmatmul.mubr.bf16.gmra.mxu0 %v3729
        %v4436 = vpop.f32.mrf.mxu0
        %v4437 = vadd.f32 %v4148, %v4436
        %v4438 = vpop.f32.mrf.mxu0
        %v4439 = vpop.f32.mrf.mxu0
        %v4440 = vadd.f32 %v4151, %v4439
        %v4441 = vpop.f32.mrf.mxu0
        %4442 = vmatprep.mubr.bf16.mxu0 0
        %4443 = vmatmul.mubr.bf16.gmra.mxu0 %v3732
        %v4444 = vpop.f32.mrf.mxu0
        %v4445 = vadd.f32 %v4156, %v4444
        %v4446 = vpop.f32.mrf.mxu0
        %v4447 = vpop.f32.mrf.mxu0
        %v4448 = vadd.f32 %v4159, %v4447
        %v4449 = vpop.f32.mrf.mxu0
        %4450 = vmatprep.mubr.bf16.mxu0 0
        %4451 = vmatmul.mubr.bf16.gmra.mxu0 %v3735
        %v4452 = vpop.f32.mrf.mxu0
        %v4453 = vadd.f32 %v4164, %v4452
        %v4454 = vpop.f32.mrf.mxu0
        %v4455 = vpop.f32.mrf.mxu0
        %v4456 = vadd.f32 %v4167, %v4455
        %v4457 = vpop.f32.mrf.mxu0
        %4458 = vmatprep.mubr.bf16.mxu0 0
        %4459 = vmatmul.mubr.bf16.gmra.mxu0 %v3738
        %v4460 = vpop.f32.mrf.mxu0
        %v4461 = vadd.f32 %v4172, %v4460
        %v4462 = vpop.f32.mrf.mxu0
        %v4463 = vpop.f32.mrf.mxu0
        %v4464 = vadd.f32 %v4175, %v4463
        %v4465 = vpop.f32.mrf.mxu0
        %4466 = vmatprep.mubr.bf16.mxu0 0
        %4467 = vmatmul.mubr.bf16.gmra.mxu0 %v3741
        %v4468 = vpop.f32.mrf.mxu0
        %v4469 = vadd.f32 %v4180, %v4468
        %v4470 = vpop.f32.mrf.mxu0
        %v4471 = vpop.f32.mrf.mxu0
        %v4472 = vadd.f32 %v4183, %v4471
        %v4473 = vpop.f32.mrf.mxu0
        %4474 = vmatprep.mubr.bf16.mxu0 0
        %4475 = vmatmul.mubr.bf16.gmra.mxu0 %v3744
        %v4476 = vpop.f32.mrf.mxu0
        %v4477 = vadd.f32 %v4188, %v4476
        %v4478 = vpop.f32.mrf.mxu0
        %v4479 = vpop.f32.mrf.mxu0
        %v4480 = vadd.f32 %v4191, %v4479
        %v4481 = vpop.f32.mrf.mxu0
        %4482 = vmatprep.mubr.bf16.mxu0 0
        %4483 = vmatmul.mubr.bf16.gmra.mxu0 %v3747
        %v4484 = vpop.f32.mrf.mxu0
        %v4485 = vadd.f32 %v4196, %v4484
        %v4486 = vpop.f32.mrf.mxu0
        %v4487 = vpop.f32.mrf.mxu0
        %v4488 = vadd.f32 %v4199, %v4487
        %v4489 = vpop.f32.mrf.mxu0
        %4490 = vmatprep.mubr.bf16.mxu0 0
        %4491 = vmatmul.mubr.bf16.gmra.mxu0 %v3750
        %v4492 = vpop.f32.mrf.mxu0
        %v4493 = vadd.f32 %v4204, %v4492
        %v4494 = vpop.f32.mrf.mxu0
        %v4495 = vpop.f32.mrf.mxu0
        %v4496 = vadd.f32 %v4207, %v4495
        %v4497 = vpop.f32.mrf.mxu0
        %4498 = vmatprep.mubr.bf16.mxu0 0
        %4499 = vmatmul.mubr.bf16.gmra.mxu0 %v3753
        %v4500 = vpop.f32.mrf.mxu0
        %v4501 = vadd.f32 %v4212, %v4500
        %v4502 = vpop.f32.mrf.mxu0
        %v4503 = vpop.f32.mrf.mxu0
        %v4504 = vadd.f32 %v4215, %v4503
        %v4505 = vpop.f32.mrf.mxu0
        %4506 = vmatprep.mubr.bf16.mxu0 0
        %4507 = vmatmul.mubr.bf16.gmra.mxu0 %v3756
        %v4508 = vpop.f32.mrf.mxu0
        %v4509 = vadd.f32 %v4220, %v4508
        %v4510 = vpop.f32.mrf.mxu0
        %v4511 = vpop.f32.mrf.mxu0
        %v4512 = vadd.f32 %v4223, %v4511
        %v4513 = vpop.f32.mrf.mxu0
        %4514 = vmatprep.mubr.bf16.mxu0 0
        %4515 = vmatmul.mubr.bf16.gmra.mxu0 %v3759
        %v4516 = vpop.f32.mrf.mxu0
        %v4517 = vadd.f32 %v4228, %v4516
        %v4518 = vpop.f32.mrf.mxu0
        %v4519 = vpop.f32.mrf.mxu0
        %v4520 = vadd.f32 %v4231, %v4519
        %v4521 = vpop.f32.mrf.mxu0
        %4522 = vmatprep.mubr.bf16.mxu0 0
        %4523 = vmatmul.mubr.bf16.gmra.mxu0 %v3762
        %v4524 = vpop.f32.mrf.mxu0
        %v4525 = vadd.f32 %v4236, %v4524
        %v4526 = vpop.f32.mrf.mxu0
        %v4527 = vpop.f32.mrf.mxu0
        %v4528 = vadd.f32 %v4239, %v4527
        %v4529 = vpop.f32.mrf.mxu0
        %4530 = vmatprep.mubr.bf16.mxu0 0
        %4531 = vmatmul.mubr.bf16.gmra.mxu0 %v3765
        %v4532 = vpop.f32.mrf.mxu0
        %v4533 = vadd.f32 %v4244, %v4532
        %v4534 = vpop.f32.mrf.mxu0
        %v4535 = vpop.f32.mrf.mxu0
        %v4536 = vadd.f32 %v4247, %v4535
        %v4537 = vpop.f32.mrf.mxu0
        %4538 = vmatprep.mubr.bf16.mxu0 0
        %4539 = vmatmul.mubr.bf16.gmra.mxu0 %v3768
        %v4540 = vpop.f32.mrf.mxu0
        %v4541 = vadd.f32 %v4252, %v4540
        %v4542 = vpop.f32.mrf.mxu0
        %v4543 = vpop.f32.mrf.mxu0
        %v4544 = vadd.f32 %v4255, %v4543
        %v4545 = vpop.f32.mrf.mxu0
        %4546 = vmatprep.mubr.bf16.mxu0 0
        %4547 = vmatmul.mubr.bf16.gmra.mxu0 %v3771
        %v4548 = vpop.f32.mrf.mxu0
        %v4549 = vadd.f32 %v4260, %v4548
        %v4550 = vpop.f32.mrf.mxu0
        %v4551 = vpop.f32.mrf.mxu0
        %v4552 = vadd.f32 %v4263, %v4551
        %v4553 = vpop.f32.mrf.mxu0
        %4554 = vmatprep.mubr.bf16.mxu0 0
        %4555 = vmatmul.mubr.bf16.gmra.mxu0 %v3774
        %v4556 = vpop.f32.mrf.mxu0
        %v4557 = vadd.f32 %v4268, %v4556
        %v4558 = vpop.f32.mrf.mxu0
        %v4559 = vpop.f32.mrf.mxu0
        %v4560 = vadd.f32 %v4271, %v4559
        %v4561 = vpop.f32.mrf.mxu0
        %4562 = vmatprep.mubr.bf16.mxu0 0
        %4563 = vmatmul.mubr.bf16.gmra.mxu0 %v3777
        %v4564 = vpop.f32.mrf.mxu0
        %v4565 = vadd.f32 %v4276, %v4564
        %v4566 = vpop.f32.mrf.mxu0
        %v4567 = vpop.f32.mrf.mxu0
        %v4568 = vadd.f32 %v4279, %v4567
        %v4569 = vpop.f32.mrf.mxu0
        %4570 = vmatprep.mubr.bf16.mxu0 0
        %4571 = vmatmul.mubr.bf16.gmra.mxu0 %v3780
        %v4572 = vpop.f32.mrf.mxu0
        %v4573 = vadd.f32 %v4284, %v4572
        %v4574 = vpop.f32.mrf.mxu0
        %v4575 = vpop.f32.mrf.mxu0
        %v4576 = vadd.f32 %v4287, %v4575
        %v4577 = vpop.f32.mrf.mxu0
        %4578 = vmatprep.mubr.bf16.mxu0 0
        %4579 = vmatmul.mubr.bf16.gmra.mxu0 %v3783
        %v4580 = vpop.f32.mrf.mxu0
        %v4581 = vadd.f32 %v4292, %v4580
        %v4582 = vpop.f32.mrf.mxu0
        %v4583 = vpop.f32.mrf.mxu0
        %v4584 = vadd.f32 %v4295, %v4583
        %v4585 = vpop.f32.mrf.mxu0
        %4586 = vmatprep.mubr.bf16.mxu0 0
        %4587 = vmatmul.mubr.bf16.gmra.mxu0 %v3786
        %v4588 = vpop.f32.mrf.mxu0
        %v4589 = vadd.f32 %v4300, %v4588
        %v4590 = vpop.f32.mrf.mxu0
        %v4591 = vpop.f32.mrf.mxu0
        %v4592 = vadd.f32 %v4303, %v4591
        %v4593 = vpop.f32.mrf.mxu0
        %4594 = vmatprep.mubr.bf16.mxu0 0
        %4595 = vmatmul.mubr.bf16.gmra.mxu0 %v3789
        %v4596 = vpop.f32.mrf.mxu0
        %v4597 = vadd.f32 %v4308, %v4596
        %v4598 = vpop.f32.mrf.mxu0
        %v4599 = vpop.f32.mrf.mxu0
        %v4600 = vadd.f32 %v4311, %v4599
        %v4601 = vpop.f32.mrf.mxu0
        %4602 = vmatprep.mubr.bf16.mxu0 0
        %4603 = vmatmul.mubr.bf16.gmra.mxu0 %v3792
        %v4604 = vpop.f32.mrf.mxu0
        %v4605 = vadd.f32 %v4316, %v4604
        %v4606 = vpop.f32.mrf.mxu0
        %v4607 = vpop.f32.mrf.mxu0
        %v4608 = vadd.f32 %v4319, %v4607
        %v4609 = vpop.f32.mrf.mxu0
        %4610 = vdwg.mxu0
        %v4611 = vadd.f32 %v3136, %v4357
        %v4612 = vadd.f32 %v3137, %v4360
        %v4613 = vadd.f32 %v3138, %v4365
        %v4614 = vadd.f32 %v3139, %v4368
        %v4615 = vadd.f32 %v3140, %v4373
        %v4616 = vadd.f32 %v3141, %v4376
        %v4617 = vadd.f32 %v3142, %v4381
        %v4618 = vadd.f32 %v3143, %v4384
        %v4619 = vadd.f32 %v3144, %v4389
        %v4620 = vadd.f32 %v3145, %v4392
        %v4621 = vadd.f32 %v3146, %v4397
        %v4622 = vadd.f32 %v3147, %v4400
        %v4623 = vadd.f32 %v3148, %v4405
        %v4624 = vadd.f32 %v3149, %v4408
        %v4625 = vadd.f32 %v3150, %v4413
        %v4626 = vadd.f32 %v3151, %v4416
        %v4627 = vadd.f32 %v3152, %v4421
        %v4628 = vadd.f32 %v3153, %v4424
        %v4629 = vadd.f32 %v3154, %v4429
        %v4630 = vadd.f32 %v3155, %v4432
        %v4631 = vadd.f32 %v3156, %v4437
        %v4632 = vadd.f32 %v3157, %v4440
        %v4633 = vadd.f32 %v3158, %v4445
        %v4634 = vadd.f32 %v3159, %v4448
        %v4635 = vadd.f32 %v3160, %v4453
        %v4636 = vadd.f32 %v3161, %v4456
        %v4637 = vadd.f32 %v3162, %v4461
        %v4638 = vadd.f32 %v3163, %v4464
        %v4639 = vadd.f32 %v3164, %v4469
        %v4640 = vadd.f32 %v3165, %v4472
        %v4641 = vadd.f32 %v3166, %v4477
        %v4642 = vadd.f32 %v3167, %v4480
        %v4643 = vadd.f32 %v3168, %v4485
        %v4644 = vadd.f32 %v3169, %v4488
        %v4645 = vadd.f32 %v3170, %v4493
        %v4646 = vadd.f32 %v3171, %v4496
        %v4647 = vadd.f32 %v3172, %v4501
        %v4648 = vadd.f32 %v3173, %v4504
        %v4649 = vadd.f32 %v3174, %v4509
        %v4650 = vadd.f32 %v3175, %v4512
        %v4651 = vadd.f32 %v3176, %v4517
        %v4652 = vadd.f32 %v3177, %v4520
        %v4653 = vadd.f32 %v3178, %v4525
        %v4654 = vadd.f32 %v3179, %v4528
        %v4655 = vadd.f32 %v3180, %v4533
        %v4656 = vadd.f32 %v3181, %v4536
        %v4657 = vadd.f32 %v3182, %v4541
        %v4658 = vadd.f32 %v3183, %v4544
        %v4659 = vadd.f32 %v3184, %v4549
        %v4660 = vadd.f32 %v3185, %v4552
        %v4661 = vadd.f32 %v3186, %v4557
        %v4662 = vadd.f32 %v3187, %v4560
        %v4663 = vadd.f32 %v3188, %v4565
        %v4664 = vadd.f32 %v3189, %v4568
        %v4665 = vadd.f32 %v3190, %v4573
        %v4666 = vadd.f32 %v3191, %v4576
        %v4667 = vadd.f32 %v3192, %v4581
        %v4668 = vadd.f32 %v3193, %v4584
        %v4669 = vadd.f32 %v3194, %v4589
        %v4670 = vadd.f32 %v3195, %v4592
        %v4671 = vadd.f32 %v3196, %v4597
        %v4672 = vadd.f32 %v3197, %v4600
        %v4673 = vadd.f32 %v3198, %v4605
        %v4674 = vadd.f32 %v3199, %v4608
        %v4675 = vxor.u32 %v4611, 2147483648
        %v4676 = vxor.u32 %v4612, 2147483648
        %v4677 = vxor.u32 %v4613, 2147483648
        %v4678 = vxor.u32 %v4614, 2147483648
        %v4679 = vxor.u32 %v4615, 2147483648
        %v4680 = vxor.u32 %v4616, 2147483648
        %v4681 = vxor.u32 %v4617, 2147483648
        %v4682 = vxor.u32 %v4618, 2147483648
        %v4683 = vxor.u32 %v4619, 2147483648
        %v4684 = vxor.u32 %v4620, 2147483648
        %v4685 = vxor.u32 %v4621, 2147483648
        %v4686 = vxor.u32 %v4622, 2147483648
        %v4687 = vxor.u32 %v4623, 2147483648
        %v4688 = vxor.u32 %v4624, 2147483648
        %v4689 = vxor.u32 %v4625, 2147483648
        %v4690 = vxor.u32 %v4626, 2147483648
        %v4691 = vxor.u32 %v4627, 2147483648
        %v4692 = vxor.u32 %v4628, 2147483648
        %v4693 = vxor.u32 %v4629, 2147483648
        %v4694 = vxor.u32 %v4630, 2147483648
        %v4695 = vxor.u32 %v4631, 2147483648
        %v4696 = vxor.u32 %v4632, 2147483648
        %v4697 = vxor.u32 %v4633, 2147483648
        %v4698 = vxor.u32 %v4634, 2147483648
        %v4699 = vxor.u32 %v4635, 2147483648
        %v4700 = vxor.u32 %v4636, 2147483648
        %v4701 = vxor.u32 %v4637, 2147483648
        %v4702 = vxor.u32 %v4638, 2147483648
        %v4703 = vxor.u32 %v4639, 2147483648
        %v4704 = vxor.u32 %v4640, 2147483648
        %v4705 = vxor.u32 %v4641, 2147483648
        %v4706 = vxor.u32 %v4642, 2147483648
        %v4707 = vxor.u32 %v4643, 2147483648
        %v4708 = vxor.u32 %v4644, 2147483648
        %v4709 = vxor.u32 %v4645, 2147483648
        %v4710 = vxor.u32 %v4646, 2147483648
        %v4711 = vxor.u32 %v4647, 2147483648
        %v4712 = vxor.u32 %v4648, 2147483648
        %v4713 = vxor.u32 %v4649, 2147483648
        %v4714 = vxor.u32 %v4650, 2147483648
        %v4715 = vxor.u32 %v4651, 2147483648
        %v4716 = vxor.u32 %v4652, 2147483648
        %v4717 = vxor.u32 %v4653, 2147483648
        %v4718 = vxor.u32 %v4654, 2147483648
        %v4719 = vxor.u32 %v4655, 2147483648
        %v4720 = vxor.u32 %v4656, 2147483648
        %v4721 = vxor.u32 %v4657, 2147483648
        %v4722 = vxor.u32 %v4658, 2147483648
        %v4723 = vxor.u32 %v4659, 2147483648
        %v4724 = vxor.u32 %v4660, 2147483648
        %v4725 = vxor.u32 %v4661, 2147483648
        %v4726 = vxor.u32 %v4662, 2147483648
        %v4727 = vxor.u32 %v4663, 2147483648
        %v4728 = vxor.u32 %v4664, 2147483648
        %v4729 = vxor.u32 %v4665, 2147483648
        %v4730 = vxor.u32 %v4666, 2147483648
        %v4731 = vxor.u32 %v4667, 2147483648
        %v4732 = vxor.u32 %v4668, 2147483648
        %v4733 = vxor.u32 %v4669, 2147483648
        %v4734 = vxor.u32 %v4670, 2147483648
        %v4735 = vxor.u32 %v4671, 2147483648
        %v4736 = vxor.u32 %v4672, 2147483648
        %v4737 = vxor.u32 %v4673, 2147483648
        %v4738 = vxor.u32 %v4674, 2147483648
        %v4739 = vmul.f32 %v4675, 1.442695
        %v4740 = vpow.pop %v4739
        %v4741 = vmul.f32 %v4676, 1.442695
        %v4742 = vpow.pop %v4741
        %v4743 = vmul.f32 %v4677, 1.442695
        %v4744 = vpow.pop %v4743
        %v4745 = vmul.f32 %v4678, 1.442695
        %v4746 = vpow.pop %v4745
        %v4747 = vmul.f32 %v4679, 1.442695
        %v4748 = vpow.pop %v4747
        %v4749 = vmul.f32 %v4680, 1.442695
        %v4750 = vpow.pop %v4749
        %v4751 = vmul.f32 %v4681, 1.442695
        %v4752 = vpow.pop %v4751
        %v4753 = vmul.f32 %v4682, 1.442695
        %v4754 = vpow.pop %v4753
        %v4755 = vmul.f32 %v4683, 1.442695
        %v4756 = vpow.pop %v4755
        %v4757 = vmul.f32 %v4684, 1.442695
        %v4758 = vpow.pop %v4757
        %v4759 = vmul.f32 %v4685, 1.442695
        %v4760 = vpow.pop %v4759
        %v4761 = vmul.f32 %v4686, 1.442695
        %v4762 = vpow.pop %v4761
        %v4763 = vmul.f32 %v4687, 1.442695
        %v4764 = vpow.pop %v4763
        %v4765 = vmul.f32 %v4688, 1.442695
        %v4766 = vpow.pop %v4765
        %v4767 = vmul.f32 %v4689, 1.442695
        %v4768 = vpow.pop %v4767
        %v4769 = vmul.f32 %v4690, 1.442695
        %v4770 = vpow.pop %v4769
        %v4771 = vmul.f32 %v4691, 1.442695
        %v4772 = vpow.pop %v4771
        %v4773 = vmul.f32 %v4692, 1.442695
        %v4774 = vpow.pop %v4773
        %v4775 = vmul.f32 %v4693, 1.442695
        %v4776 = vpow.pop %v4775
        %v4777 = vmul.f32 %v4694, 1.442695
        %v4778 = vpow.pop %v4777
        %v4779 = vmul.f32 %v4695, 1.442695
        %v4780 = vpow.pop %v4779
        %v4781 = vmul.f32 %v4696, 1.442695
        %v4782 = vpow.pop %v4781
        %v4783 = vmul.f32 %v4697, 1.442695
        %v4784 = vpow.pop %v4783
        %v4785 = vmul.f32 %v4698, 1.442695
        %v4786 = vpow.pop %v4785
        %v4787 = vmul.f32 %v4699, 1.442695
        %v4788 = vpow.pop %v4787
        %v4789 = vmul.f32 %v4700, 1.442695
        %v4790 = vpow.pop %v4789
        %v4791 = vmul.f32 %v4701, 1.442695
        %v4792 = vpow.pop %v4791
        %v4793 = vmul.f32 %v4702, 1.442695
        %v4794 = vpow.pop %v4793
        %v4795 = vmul.f32 %v4703, 1.442695
        %v4796 = vpow.pop %v4795
        %v4797 = vmul.f32 %v4704, 1.442695
        %v4798 = vpow.pop %v4797
        %v4799 = vmul.f32 %v4705, 1.442695
        %v4800 = vpow.pop %v4799
        %v4801 = vmul.f32 %v4706, 1.442695
        %v4802 = vpow.pop %v4801
        %v4803 = vmul.f32 %v4707, 1.442695
        %v4804 = vpow.pop %v4803
        %v4805 = vmul.f32 %v4708, 1.442695
        %v4806 = vpow.pop %v4805
        %v4807 = vmul.f32 %v4709, 1.442695
        %v4808 = vpow.pop %v4807
        %v4809 = vmul.f32 %v4710, 1.442695
        %v4810 = vpow.pop %v4809
        %v4811 = vmul.f32 %v4711, 1.442695
        %v4812 = vpow.pop %v4811
        %v4813 = vmul.f32 %v4712, 1.442695
        %v4814 = vpow.pop %v4813
        %v4815 = vmul.f32 %v4713, 1.442695
        %v4816 = vpow.pop %v4815
        %v4817 = vmul.f32 %v4714, 1.442695
        %v4818 = vpow.pop %v4817
        %v4819 = vmul.f32 %v4715, 1.442695
        %v4820 = vpow.pop %v4819
        %v4821 = vmul.f32 %v4716, 1.442695
        %v4822 = vpow.pop %v4821
        %v4823 = vmul.f32 %v4717, 1.442695
        %v4824 = vpow.pop %v4823
        %v4825 = vmul.f32 %v4718, 1.442695
        %v4826 = vpow.pop %v4825
        %v4827 = vmul.f32 %v4719, 1.442695
        %v4828 = vpow.pop %v4827
        %v4829 = vmul.f32 %v4720, 1.442695
        %v4830 = vpow.pop %v4829
        %v4831 = vmul.f32 %v4721, 1.442695
        %v4832 = vpow.pop %v4831
        %v4833 = vmul.f32 %v4722, 1.442695
        %v4834 = vpow.pop %v4833
        %v4835 = vmul.f32 %v4723, 1.442695
        %v4836 = vpow.pop %v4835
        %v4837 = vmul.f32 %v4724, 1.442695
        %v4838 = vpow.pop %v4837
        %v4839 = vmul.f32 %v4725, 1.442695
        %v4840 = vpow.pop %v4839
        %v4841 = vmul.f32 %v4726, 1.442695
        %v4842 = vpow.pop %v4841
        %v4843 = vmul.f32 %v4727, 1.442695
        %v4844 = vpow.pop %v4843
        %v4845 = vmul.f32 %v4728, 1.442695
        %v4846 = vpow.pop %v4845
        %v4847 = vmul.f32 %v4729, 1.442695
        %v4848 = vpow.pop %v4847
        %v4849 = vmul.f32 %v4730, 1.442695
        %v4850 = vpow.pop %v4849
        %v4851 = vmul.f32 %v4731, 1.442695
        %v4852 = vpow.pop %v4851
        %v4853 = vmul.f32 %v4732, 1.442695
        %v4854 = vpow.pop %v4853
        %v4855 = vmul.f32 %v4733, 1.442695
        %v4856 = vpow.pop %v4855
        %v4857 = vmul.f32 %v4734, 1.442695
        %v4858 = vpow.pop %v4857
        %v4859 = vmul.f32 %v4735, 1.442695
        %v4860 = vpow.pop %v4859
        %v4861 = vmul.f32 %v4736, 1.442695
        %v4862 = vpow.pop %v4861
        %v4863 = vmul.f32 %v4737, 1.442695
        %v4864 = vpow.pop %v4863
        %v4865 = vmul.f32 %v4738, 1.442695
        %v4866 = vpow.pop %v4865
        %v4867 = vadd.f32 %v4740, 1.0
        %v4868 = vadd.f32 %v4742, 1.0
        %v4869 = vadd.f32 %v4744, 1.0
        %v4870 = vadd.f32 %v4746, 1.0
        %v4871 = vadd.f32 %v4748, 1.0
        %v4872 = vadd.f32 %v4750, 1.0
        %v4873 = vadd.f32 %v4752, 1.0
        %v4874 = vadd.f32 %v4754, 1.0
        %v4875 = vadd.f32 %v4756, 1.0
        %v4876 = vadd.f32 %v4758, 1.0
        %v4877 = vadd.f32 %v4760, 1.0
        %v4878 = vadd.f32 %v4762, 1.0
        %v4879 = vadd.f32 %v4764, 1.0
        %v4880 = vadd.f32 %v4766, 1.0
        %v4881 = vadd.f32 %v4768, 1.0
        %v4882 = vadd.f32 %v4770, 1.0
        %v4883 = vadd.f32 %v4772, 1.0
        %v4884 = vadd.f32 %v4774, 1.0
        %v4885 = vadd.f32 %v4776, 1.0
        %v4886 = vadd.f32 %v4778, 1.0
        %v4887 = vadd.f32 %v4780, 1.0
        %v4888 = vadd.f32 %v4782, 1.0
        %v4889 = vadd.f32 %v4784, 1.0
        %v4890 = vadd.f32 %v4786, 1.0
        %v4891 = vadd.f32 %v4788, 1.0
        %v4892 = vadd.f32 %v4790, 1.0
        %v4893 = vadd.f32 %v4792, 1.0
        %v4894 = vadd.f32 %v4794, 1.0
        %v4895 = vadd.f32 %v4796, 1.0
        %v4896 = vadd.f32 %v4798, 1.0
        %v4897 = vadd.f32 %v4800, 1.0
        %v4898 = vadd.f32 %v4802, 1.0
        %v4899 = vadd.f32 %v4804, 1.0
        %v4900 = vadd.f32 %v4806, 1.0
        %v4901 = vadd.f32 %v4808, 1.0
        %v4902 = vadd.f32 %v4810, 1.0
        %v4903 = vadd.f32 %v4812, 1.0
        %v4904 = vadd.f32 %v4814, 1.0
        %v4905 = vadd.f32 %v4816, 1.0
        %v4906 = vadd.f32 %v4818, 1.0
        %v4907 = vadd.f32 %v4820, 1.0
        %v4908 = vadd.f32 %v4822, 1.0
        %v4909 = vadd.f32 %v4824, 1.0
        %v4910 = vadd.f32 %v4826, 1.0
        %v4911 = vadd.f32 %v4828, 1.0
        %v4912 = vadd.f32 %v4830, 1.0
        %v4913 = vadd.f32 %v4832, 1.0
        %v4914 = vadd.f32 %v4834, 1.0
        %v4915 = vadd.f32 %v4836, 1.0
        %v4916 = vadd.f32 %v4838, 1.0
        %v4917 = vadd.f32 %v4840, 1.0
        %v4918 = vadd.f32 %v4842, 1.0
        %v4919 = vadd.f32 %v4844, 1.0
        %v4920 = vadd.f32 %v4846, 1.0
        %v4921 = vadd.f32 %v4848, 1.0
        %v4922 = vadd.f32 %v4850, 1.0
        %v4923 = vadd.f32 %v4852, 1.0
        %v4924 = vadd.f32 %v4854, 1.0
        %v4925 = vadd.f32 %v4856, 1.0
        %v4926 = vadd.f32 %v4858, 1.0
        %v4927 = vadd.f32 %v4860, 1.0
        %v4928 = vadd.f32 %v4862, 1.0
        %v4929 = vadd.f32 %v4864, 1.0
        %v4930 = vadd.f32 %v4866, 1.0
        %v4931 = vrcp.pop %v4867
        %v4932 = vmul.f32 1.0, %v4931
        %v4933 = vrcp.pop %v4868
        %v4934 = vmul.f32 1.0, %v4933
        %v4935 = vrcp.pop %v4869
        %v4936 = vmul.f32 1.0, %v4935
        %v4937 = vrcp.pop %v4870
        %v4938 = vmul.f32 1.0, %v4937
        %v4939 = vrcp.pop %v4871
        %v4940 = vmul.f32 1.0, %v4939
        %v4941 = vrcp.pop %v4872
        %v4942 = vmul.f32 1.0, %v4941
        %v4943 = vrcp.pop %v4873
        %v4944 = vmul.f32 1.0, %v4943
        %v4945 = vrcp.pop %v4874
        %v4946 = vmul.f32 1.0, %v4945
        %v4947 = vrcp.pop %v4875
        %v4948 = vmul.f32 1.0, %v4947
        %v4949 = vrcp.pop %v4876
        %v4950 = vmul.f32 1.0, %v4949
        %v4951 = vrcp.pop %v4877
        %v4952 = vmul.f32 1.0, %v4951
        %v4953 = vrcp.pop %v4878
        %v4954 = vmul.f32 1.0, %v4953
        %v4955 = vrcp.pop %v4879
        %v4956 = vmul.f32 1.0, %v4955
        %v4957 = vrcp.pop %v4880
        %v4958 = vmul.f32 1.0, %v4957
        %v4959 = vrcp.pop %v4881
        %v4960 = vmul.f32 1.0, %v4959
        %v4961 = vrcp.pop %v4882
        %v4962 = vmul.f32 1.0, %v4961
        %v4963 = vrcp.pop %v4883
        %v4964 = vmul.f32 1.0, %v4963
        %v4965 = vrcp.pop %v4884
        %v4966 = vmul.f32 1.0, %v4965
        %v4967 = vrcp.pop %v4885
        %v4968 = vmul.f32 1.0, %v4967
        %v4969 = vrcp.pop %v4886
        %v4970 = vmul.f32 1.0, %v4969
        %v4971 = vrcp.pop %v4887
        %v4972 = vmul.f32 1.0, %v4971
        %v4973 = vrcp.pop %v4888
        %v4974 = vmul.f32 1.0, %v4973
        %v4975 = vrcp.pop %v4889
        %v4976 = vmul.f32 1.0, %v4975
        %v4977 = vrcp.pop %v4890
        %v4978 = vmul.f32 1.0, %v4977
        %v4979 = vrcp.pop %v4891
        %v4980 = vmul.f32 1.0, %v4979
        %v4981 = vrcp.pop %v4892
        %v4982 = vmul.f32 1.0, %v4981
        %v4983 = vrcp.pop %v4893
        %v4984 = vmul.f32 1.0, %v4983
        %v4985 = vrcp.pop %v4894
        %v4986 = vmul.f32 1.0, %v4985
        %v4987 = vrcp.pop %v4895
        %v4988 = vmul.f32 1.0, %v4987
        %v4989 = vrcp.pop %v4896
        %v4990 = vmul.f32 1.0, %v4989
        %v4991 = vrcp.pop %v4897
        %v4992 = vmul.f32 1.0, %v4991
        %v4993 = vrcp.pop %v4898
        %v4994 = vmul.f32 1.0, %v4993
        %v4995 = vrcp.pop %v4899
        %v4996 = vmul.f32 1.0, %v4995
        %v4997 = vrcp.pop %v4900
        %v4998 = vmul.f32 1.0, %v4997
        %v4999 = vrcp.pop %v4901
        %v5000 = vmul.f32 1.0, %v4999
        %v5001 = vrcp.pop %v4902
        %v5002 = vmul.f32 1.0, %v5001
        %v5003 = vrcp.pop %v4903
        %v5004 = vmul.f32 1.0, %v5003
        %v5005 = vrcp.pop %v4904
        %v5006 = vmul.f32 1.0, %v5005
        %v5007 = vrcp.pop %v4905
        %v5008 = vmul.f32 1.0, %v5007
        %v5009 = vrcp.pop %v4906
        %v5010 = vmul.f32 1.0, %v5009
        %v5011 = vrcp.pop %v4907
        %v5012 = vmul.f32 1.0, %v5011
        %v5013 = vrcp.pop %v4908
        %v5014 = vmul.f32 1.0, %v5013
        %v5015 = vrcp.pop %v4909
        %v5016 = vmul.f32 1.0, %v5015
        %v5017 = vrcp.pop %v4910
        %v5018 = vmul.f32 1.0, %v5017
        %v5019 = vrcp.pop %v4911
        %v5020 = vmul.f32 1.0, %v5019
        %v5021 = vrcp.pop %v4912
        %v5022 = vmul.f32 1.0, %v5021
        %v5023 = vrcp.pop %v4913
        %v5024 = vmul.f32 1.0, %v5023
        %v5025 = vrcp.pop %v4914
        %v5026 = vmul.f32 1.0, %v5025
        %v5027 = vrcp.pop %v4915
        %v5028 = vmul.f32 1.0, %v5027
        %v5029 = vrcp.pop %v4916
        %v5030 = vmul.f32 1.0, %v5029
        %v5031 = vrcp.pop %v4917
        %v5032 = vmul.f32 1.0, %v5031
        %v5033 = vrcp.pop %v4918
        %v5034 = vmul.f32 1.0, %v5033
        %v5035 = vrcp.pop %v4919
        %v5036 = vmul.f32 1.0, %v5035
        %v5037 = vrcp.pop %v4920
        %v5038 = vmul.f32 1.0, %v5037
        %v5039 = vrcp.pop %v4921
        %v5040 = vmul.f32 1.0, %v5039
        %v5041 = vrcp.pop %v4922
        %v5042 = vmul.f32 1.0, %v5041
        %v5043 = vrcp.pop %v4923
        %v5044 = vmul.f32 1.0, %v5043
        %v5045 = vrcp.pop %v4924
        %v5046 = vmul.f32 1.0, %v5045
        %v5047 = vrcp.pop %v4925
        %v5048 = vmul.f32 1.0, %v5047
        %v5049 = vrcp.pop %v4926
        %v5050 = vmul.f32 1.0, %v5049
        %v5051 = vrcp.pop %v4927
        %v5052 = vmul.f32 1.0, %v5051
        %v5053 = vrcp.pop %v4928
        %v5054 = vmul.f32 1.0, %v5053
        %v5055 = vrcp.pop %v4929
        %v5056 = vmul.f32 1.0, %v5055
        %v5057 = vrcp.pop %v4930
        %v5058 = vmul.f32 1.0, %v5057
        %v5059 = vtanh.pop %v4611
        %v5060 = vtanh.pop %v4612
        %v5061 = vtanh.pop %v4613
        %v5062 = vtanh.pop %v4614
        %v5063 = vtanh.pop %v4615
        %v5064 = vtanh.pop %v4616
        %v5065 = vtanh.pop %v4617
        %v5066 = vtanh.pop %v4618
        %v5067 = vtanh.pop %v4619
        %v5068 = vtanh.pop %v4620
        %v5069 = vtanh.pop %v4621
        %v5070 = vtanh.pop %v4622
        %v5071 = vtanh.pop %v4623
        %v5072 = vtanh.pop %v4624
        %v5073 = vtanh.pop %v4625
        %v5074 = vtanh.pop %v4626
        %v5075 = vtanh.pop %v4627
        %v5076 = vtanh.pop %v4628
        %v5077 = vtanh.pop %v4629
        %v5078 = vtanh.pop %v4630
        %v5079 = vtanh.pop %v4631
        %v5080 = vtanh.pop %v4632
        %v5081 = vtanh.pop %v4633
        %v5082 = vtanh.pop %v4634
        %v5083 = vtanh.pop %v4635
        %v5084 = vtanh.pop %v4636
        %v5085 = vtanh.pop %v4637
        %v5086 = vtanh.pop %v4638
        %v5087 = vtanh.pop %v4639
        %v5088 = vtanh.pop %v4640
        %v5089 = vtanh.pop %v4641
        %v5090 = vtanh.pop %v4642
        %v5091 = vtanh.pop %v4643
        %v5092 = vtanh.pop %v4644
        %v5093 = vtanh.pop %v4645
        %v5094 = vtanh.pop %v4646
        %v5095 = vtanh.pop %v4647
        %v5096 = vtanh.pop %v4648
        %v5097 = vtanh.pop %v4649
        %v5098 = vtanh.pop %v4650
        %v5099 = vtanh.pop %v4651
        %v5100 = vtanh.pop %v4652
        %v5101 = vtanh.pop %v4653
        %v5102 = vtanh.pop %v4654
        %v5103 = vtanh.pop %v4655
        %v5104 = vtanh.pop %v4656
        %v5105 = vtanh.pop %v4657
        %v5106 = vtanh.pop %v4658
        %v5107 = vtanh.pop %v4659
        %v5108 = vtanh.pop %v4660
        %v5109 = vtanh.pop %v4661
        %v5110 = vtanh.pop %v4662
        %v5111 = vtanh.pop %v4663
        %v5112 = vtanh.pop %v4664
        %v5113 = vtanh.pop %v4665
        %v5114 = vtanh.pop %v4666
        %v5115 = vtanh.pop %v4667
        %v5116 = vtanh.pop %v4668
        %v5117 = vtanh.pop %v4669
        %v5118 = vtanh.pop %v4670
        %v5119 = vtanh.pop %v4671
        %v5120 = vtanh.pop %v4672
        %v5121 = vtanh.pop %v4673
        %v5122 = vtanh.pop %v4674
        %v5123 = vld [vmem:[%s235] sm:$0xff]
        %v5124 = vld [vmem:[%s235 + $0x8] sm:$0xff]
        %v5125 = vld [vmem:[%s235 + $0x10] sm:$0xff]
        %v5126 = vld [vmem:[%s235 + $0x18] sm:$0xff]
        %v5127 = vld [vmem:[%s235 + $0x20] sm:$0xff]
        %v5128 = vld [vmem:[%s235 + $0x28] sm:$0xff]
        %v5129 = vld [vmem:[%s235 + $0x30] sm:$0xff]
        %v5130 = vld [vmem:[%s235 + $0x38] sm:$0xff]
        %v5131 = vld [vmem:[%s235 + $0x40] sm:$0xff]
        %v5132 = vld [vmem:[%s235 + $0x48] sm:$0xff]
        %v5133 = vld [vmem:[%s235 + $0x50] sm:$0xff]
        %v5134 = vld [vmem:[%s235 + $0x58] sm:$0xff]
        %v5135 = vld [vmem:[%s235 + $0x60] sm:$0xff]
        %v5136 = vld [vmem:[%s235 + $0x68] sm:$0xff]
        %v5137 = vld [vmem:[%s235 + $0x70] sm:$0xff]
        %v5138 = vld [vmem:[%s235 + $0x78] sm:$0xff]
        %v5139 = vld [vmem:[%s235 + $0x80] sm:$0xff]
        %v5140 = vld [vmem:[%s235 + $0x88] sm:$0xff]
        %v5141 = vld [vmem:[%s235 + $0x90] sm:$0xff]
        %v5142 = vld [vmem:[%s235 + $0x98] sm:$0xff]
        %v5143 = vld [vmem:[%s235 + $0xa0] sm:$0xff]
        %v5144 = vld [vmem:[%s235 + $0xa8] sm:$0xff]
        %v5145 = vld [vmem:[%s235 + $0xb0] sm:$0xff]
        %v5146 = vld [vmem:[%s235 + $0xb8] sm:$0xff]
        %v5147 = vld [vmem:[%s235 + $0xc0] sm:$0xff]
        %v5148 = vld [vmem:[%s235 + $0xc8] sm:$0xff]
        %v5149 = vld [vmem:[%s235 + $0xd0] sm:$0xff]
        %v5150 = vld [vmem:[%s235 + $0xd8] sm:$0xff]
        %v5151 = vld [vmem:[%s235 + $0xe0] sm:$0xff]
        %v5152 = vld [vmem:[%s235 + $0xe8] sm:$0xff]
        %v5153 = vld [vmem:[%s235 + $0xf0] sm:$0xff]
        %v5154 = vld [vmem:[%s235 + $0xf8] sm:$0xff]
        %v5155 = vld [vmem:[%s235 + $0x100] sm:$0xff]
        %v5156 = vld [vmem:[%s235 + $0x108] sm:$0xff]
        %v5157 = vld [vmem:[%s235 + $0x110] sm:$0xff]
        %v5158 = vld [vmem:[%s235 + $0x118] sm:$0xff]
        %v5159 = vld [vmem:[%s235 + $0x120] sm:$0xff]
        %v5160 = vld [vmem:[%s235 + $0x128] sm:$0xff]
        %v5161 = vld [vmem:[%s235 + $0x130] sm:$0xff]
        %v5162 = vld [vmem:[%s235 + $0x138] sm:$0xff]
        %v5163 = vld [vmem:[%s235 + $0x140] sm:$0xff]
        %v5164 = vld [vmem:[%s235 + $0x148] sm:$0xff]
        %v5165 = vld [vmem:[%s235 + $0x150] sm:$0xff]
        %v5166 = vld [vmem:[%s235 + $0x158] sm:$0xff]
        %v5167 = vld [vmem:[%s235 + $0x160] sm:$0xff]
        %v5168 = vld [vmem:[%s235 + $0x168] sm:$0xff]
        %v5169 = vld [vmem:[%s235 + $0x170] sm:$0xff]
        %v5170 = vld [vmem:[%s235 + $0x178] sm:$0xff]
        %v5171 = vld [vmem:[%s235 + $0x180] sm:$0xff]
        %v5172 = vld [vmem:[%s235 + $0x188] sm:$0xff]
        %v5173 = vld [vmem:[%s235 + $0x190] sm:$0xff]
        %v5174 = vld [vmem:[%s235 + $0x198] sm:$0xff]
        %v5175 = vld [vmem:[%s235 + $0x1a0] sm:$0xff]
        %v5176 = vld [vmem:[%s235 + $0x1a8] sm:$0xff]
        %v5177 = vld [vmem:[%s235 + $0x1b0] sm:$0xff]
        %v5178 = vld [vmem:[%s235 + $0x1b8] sm:$0xff]
        %v5179 = vld [vmem:[%s235 + $0x1c0] sm:$0xff]
        %v5180 = vld [vmem:[%s235 + $0x1c8] sm:$0xff]
        %v5181 = vld [vmem:[%s235 + $0x1d0] sm:$0xff]
        %v5182 = vld [vmem:[%s235 + $0x1d8] sm:$0xff]
        %v5183 = vld [vmem:[%s235 + $0x1e0] sm:$0xff]
        %v5184 = vld [vmem:[%s235 + $0x1e8] sm:$0xff]
        %v5185 = vld [vmem:[%s235 + $0x1f0] sm:$0xff]
        %v5186 = vld [vmem:[%s235 + $0x1f8] sm:$0xff]
        %v5187 = vmul.f32 %v4932, %v5123
        %v5188 = vmul.f32 %v4934, %v5124
        %v5189 = vmul.f32 %v4936, %v5125
        %v5190 = vmul.f32 %v4938, %v5126
        %v5191 = vmul.f32 %v4940, %v5127
        %v5192 = vmul.f32 %v4942, %v5128
        %v5193 = vmul.f32 %v4944, %v5129
        %v5194 = vmul.f32 %v4946, %v5130
        %v5195 = vmul.f32 %v4948, %v5131
        %v5196 = vmul.f32 %v4950, %v5132
        %v5197 = vmul.f32 %v4952, %v5133
        %v5198 = vmul.f32 %v4954, %v5134
        %v5199 = vmul.f32 %v4956, %v5135
        %v5200 = vmul.f32 %v4958, %v5136
        %v5201 = vmul.f32 %v4960, %v5137
        %v5202 = vmul.f32 %v4962, %v5138
        %v5203 = vmul.f32 %v4964, %v5139
        %v5204 = vmul.f32 %v4966, %v5140
        %v5205 = vmul.f32 %v4968, %v5141
        %v5206 = vmul.f32 %v4970, %v5142
        %v5207 = vmul.f32 %v4972, %v5143
        %v5208 = vmul.f32 %v4974, %v5144
        %v5209 = vmul.f32 %v4976, %v5145
        %v5210 = vmul.f32 %v4978, %v5146
        %v5211 = vmul.f32 %v4980, %v5147
        %v5212 = vmul.f32 %v4982, %v5148
        %v5213 = vmul.f32 %v4984, %v5149
        %v5214 = vmul.f32 %v4986, %v5150
        %v5215 = vmul.f32 %v4988, %v5151
        %v5216 = vmul.f32 %v4990, %v5152
        %v5217 = vmul.f32 %v4992, %v5153
        %v5218 = vmul.f32 %v4994, %v5154
        %v5219 = vmul.f32 %v4996, %v5155
        %v5220 = vmul.f32 %v4998, %v5156
        %v5221 = vmul.f32 %v5000, %v5157
        %v5222 = vmul.f32 %v5002, %v5158
        %v5223 = vmul.f32 %v5004, %v5159
        %v5224 = vmul.f32 %v5006, %v5160
        %v5225 = vmul.f32 %v5008, %v5161
        %v5226 = vmul.f32 %v5010, %v5162
        %v5227 = vmul.f32 %v5012, %v5163
        %v5228 = vmul.f32 %v5014, %v5164
        %v5229 = vmul.f32 %v5016, %v5165
        %v5230 = vmul.f32 %v5018, %v5166
        %v5231 = vmul.f32 %v5020, %v5167
        %v5232 = vmul.f32 %v5022, %v5168
        %v5233 = vmul.f32 %v5024, %v5169
        %v5234 = vmul.f32 %v5026, %v5170
        %v5235 = vmul.f32 %v5028, %v5171
        %v5236 = vmul.f32 %v5030, %v5172
        %v5237 = vmul.f32 %v5032, %v5173
        %v5238 = vmul.f32 %v5034, %v5174
        %v5239 = vmul.f32 %v5036, %v5175
        %v5240 = vmul.f32 %v5038, %v5176
        %v5241 = vmul.f32 %v5040, %v5177
        %v5242 = vmul.f32 %v5042, %v5178
        %v5243 = vmul.f32 %v5044, %v5179
        %v5244 = vmul.f32 %v5046, %v5180
        %v5245 = vmul.f32 %v5048, %v5181
        %v5246 = vmul.f32 %v5050, %v5182
        %v5247 = vmul.f32 %v5052, %v5183
        %v5248 = vmul.f32 %v5054, %v5184
        %v5249 = vmul.f32 %v5056, %v5185
        %v5250 = vmul.f32 %v5058, %v5186
        %v5251 = vsub.f32 1.0, %v4932
        %v5252 = vsub.f32 1.0, %v4934
        %v5253 = vsub.f32 1.0, %v4936
        %v5254 = vsub.f32 1.0, %v4938
        %v5255 = vsub.f32 1.0, %v4940
        %v5256 = vsub.f32 1.0, %v4942
        %v5257 = vsub.f32 1.0, %v4944
        %v5258 = vsub.f32 1.0, %v4946
        %v5259 = vsub.f32 1.0, %v4948
        %v5260 = vsub.f32 1.0, %v4950
        %v5261 = vsub.f32 1.0, %v4952
        %v5262 = vsub.f32 1.0, %v4954
        %v5263 = vsub.f32 1.0, %v4956
        %v5264 = vsub.f32 1.0, %v4958
        %v5265 = vsub.f32 1.0, %v4960
        %v5266 = vsub.f32 1.0, %v4962
        %v5267 = vsub.f32 1.0, %v4964
        %v5268 = vsub.f32 1.0, %v4966
        %v5269 = vsub.f32 1.0, %v4968
        %v5270 = vsub.f32 1.0, %v4970
        %v5271 = vsub.f32 1.0, %v4972
        %v5272 = vsub.f32 1.0, %v4974
        %v5273 = vsub.f32 1.0, %v4976
        %v5274 = vsub.f32 1.0, %v4978
        %v5275 = vsub.f32 1.0, %v4980
        %v5276 = vsub.f32 1.0, %v4982
        %v5277 = vsub.f32 1.0, %v4984
        %v5278 = vsub.f32 1.0, %v4986
        %v5279 = vsub.f32 1.0, %v4988
        %v5280 = vsub.f32 1.0, %v4990
        %v5281 = vsub.f32 1.0, %v4992
        %v5282 = vsub.f32 1.0, %v4994
        %v5283 = vsub.f32 1.0, %v4996
        %v5284 = vsub.f32 1.0, %v4998
        %v5285 = vsub.f32 1.0, %v5000
        %v5286 = vsub.f32 1.0, %v5002
        %v5287 = vsub.f32 1.0, %v5004
        %v5288 = vsub.f32 1.0, %v5006
        %v5289 = vsub.f32 1.0, %v5008
        %v5290 = vsub.f32 1.0, %v5010
        %v5291 = vsub.f32 1.0, %v5012
        %v5292 = vsub.f32 1.0, %v5014
        %v5293 = vsub.f32 1.0, %v5016
        %v5294 = vsub.f32 1.0, %v5018
        %v5295 = vsub.f32 1.0, %v5020
        %v5296 = vsub.f32 1.0, %v5022
        %v5297 = vsub.f32 1.0, %v5024
        %v5298 = vsub.f32 1.0, %v5026
        %v5299 = vsub.f32 1.0, %v5028
        %v5300 = vsub.f32 1.0, %v5030
        %v5301 = vsub.f32 1.0, %v5032
        %v5302 = vsub.f32 1.0, %v5034
        %v5303 = vsub.f32 1.0, %v5036
        %v5304 = vsub.f32 1.0, %v5038
        %v5305 = vsub.f32 1.0, %v5040
        %v5306 = vsub.f32 1.0, %v5042
        %v5307 = vsub.f32 1.0, %v5044
        %v5308 = vsub.f32 1.0, %v5046
        %v5309 = vsub.f32 1.0, %v5048
        %v5310 = vsub.f32 1.0, %v5050
        %v5311 = vsub.f32 1.0, %v5052
        %v5312 = vsub.f32 1.0, %v5054
        %v5313 = vsub.f32 1.0, %v5056
        %v5314 = vsub.f32 1.0, %v5058
        %5379 = vrot.lane.b32.xlu0 %v5251, 96
        %v5380 = vpop.permute.xlu0 %5379
        %5381 = vrot.lane.b32.xlu0 %v5252, 96
        %v5382 = vpop.permute.xlu0 %5381
        %5383 = vrot.lane.b32.xlu0 %v5253, 96
        %v5384 = vpop.permute.xlu0 %5383
        %5385 = vrot.lane.b32.xlu0 %v5254, 96
        %v5386 = vpop.permute.xlu0 %5385
        %5387 = vrot.lane.b32.xlu0 %v5255, 96
        %v5388 = vpop.permute.xlu0 %5387
        %5389 = vrot.lane.b32.xlu0 %v5256, 96
        %v5390 = vpop.permute.xlu0 %5389
        %5391 = vrot.lane.b32.xlu0 %v5257, 96
        %v5392 = vpop.permute.xlu0 %5391
        %5393 = vrot.lane.b32.xlu0 %v5258, 96
        %v5394 = vpop.permute.xlu0 %5393
        %5395 = vrot.lane.b32.xlu0 %v5259, 96
        %v5396 = vpop.permute.xlu0 %5395
        %5397 = vrot.lane.b32.xlu0 %v5260, 96
        %v5398 = vpop.permute.xlu0 %5397
        %5399 = vrot.lane.b32.xlu0 %v5261, 96
        %v5400 = vpop.permute.xlu0 %5399
        %5401 = vrot.lane.b32.xlu0 %v5262, 96
        %v5402 = vpop.permute.xlu0 %5401
        %5403 = vrot.lane.b32.xlu0 %v5263, 96
        %v5404 = vpop.permute.xlu0 %5403
        %5405 = vrot.lane.b32.xlu0 %v5264, 96
        %v5406 = vpop.permute.xlu0 %5405
        %5407 = vrot.lane.b32.xlu0 %v5265, 96
        %v5408 = vpop.permute.xlu0 %5407
        %5409 = vrot.lane.b32.xlu0 %v5266, 96
        %v5410 = vpop.permute.xlu0 %5409
        %5411 = vrot.lane.b32.xlu0 %v5267, 96
        %v5412 = vpop.permute.xlu0 %5411
        %5413 = vrot.lane.b32.xlu0 %v5268, 96
        %v5414 = vpop.permute.xlu0 %5413
        %5415 = vrot.lane.b32.xlu0 %v5269, 96
        %v5416 = vpop.permute.xlu0 %5415
        %5417 = vrot.lane.b32.xlu0 %v5270, 96
        %v5418 = vpop.permute.xlu0 %5417
        %5419 = vrot.lane.b32.xlu0 %v5271, 96
        %v5420 = vpop.permute.xlu0 %5419
        %5421 = vrot.lane.b32.xlu0 %v5272, 96
        %v5422 = vpop.permute.xlu0 %5421
        %5423 = vrot.lane.b32.xlu0 %v5273, 96
        %v5424 = vpop.permute.xlu0 %5423
        %5425 = vrot.lane.b32.xlu0 %v5274, 96
        %v5426 = vpop.permute.xlu0 %5425
        %5427 = vrot.lane.b32.xlu0 %v5275, 96
        %v5428 = vpop.permute.xlu0 %5427
        %5429 = vrot.lane.b32.xlu0 %v5276, 96
        %v5430 = vpop.permute.xlu0 %5429
        %5431 = vrot.lane.b32.xlu0 %v5277, 96
        %v5432 = vpop.permute.xlu0 %5431
        %5433 = vrot.lane.b32.xlu0 %v5278, 96
        %v5434 = vpop.permute.xlu0 %5433
        %5435 = vrot.lane.b32.xlu0 %v5279, 96
        %v5436 = vpop.permute.xlu0 %5435
        %5437 = vrot.lane.b32.xlu0 %v5280, 96
        %v5438 = vpop.permute.xlu0 %5437
        %5439 = vrot.lane.b32.xlu0 %v5281, 96
        %v5440 = vpop.permute.xlu0 %5439
        %5441 = vrot.lane.b32.xlu0 %v5282, 96
        %v5442 = vpop.permute.xlu0 %5441
        %5443 = vrot.lane.b32.xlu0 %v5283, 96
        %v5444 = vpop.permute.xlu0 %5443
        %5445 = vrot.lane.b32.xlu0 %v5284, 96
        %v5446 = vpop.permute.xlu0 %5445
        %5447 = vrot.lane.b32.xlu0 %v5285, 96
        %v5448 = vpop.permute.xlu0 %5447
        %5449 = vrot.lane.b32.xlu0 %v5286, 96
        %v5450 = vpop.permute.xlu0 %5449
        %5451 = vrot.lane.b32.xlu0 %v5287, 96
        %v5452 = vpop.permute.xlu0 %5451
        %5453 = vrot.lane.b32.xlu0 %v5288, 96
        %v5454 = vpop.permute.xlu0 %5453
        %5455 = vrot.lane.b32.xlu0 %v5289, 96
        %v5456 = vpop.permute.xlu0 %5455
        %5457 = vrot.lane.b32.xlu0 %v5290, 96
        %v5458 = vpop.permute.xlu0 %5457
        %5459 = vrot.lane.b32.xlu0 %v5291, 96
        %v5460 = vpop.permute.xlu0 %5459
        %5461 = vrot.lane.b32.xlu0 %v5292, 96
        %v5462 = vpop.permute.xlu0 %5461
        %5463 = vrot.lane.b32.xlu0 %v5293, 96
        %v5464 = vpop.permute.xlu0 %5463
        %5465 = vrot.lane.b32.xlu0 %v5294, 96
        %v5466 = vpop.permute.xlu0 %5465
        %5467 = vrot.lane.b32.xlu0 %v5295, 96
        %v5468 = vpop.permute.xlu0 %5467
        %5469 = vrot.lane.b32.xlu0 %v5296, 96
        %v5470 = vpop.permute.xlu0 %5469
        %5471 = vrot.lane.b32.xlu0 %v5297, 96
        %v5472 = vpop.permute.xlu0 %5471
        %5473 = vrot.lane.b32.xlu0 %v5298, 96
        %v5474 = vpop.permute.xlu0 %5473
        %5475 = vrot.lane.b32.xlu0 %v5299, 96
        %v5476 = vpop.permute.xlu0 %5475
        %5477 = vrot.lane.b32.xlu0 %v5300, 96
        %v5478 = vpop.permute.xlu0 %5477
        %5479 = vrot.lane.b32.xlu0 %v5301, 96
        %v5480 = vpop.permute.xlu0 %5479
        %5481 = vrot.lane.b32.xlu0 %v5302, 96
        %v5482 = vpop.permute.xlu0 %5481
        %5483 = vrot.lane.b32.xlu0 %v5303, 96
        %v5484 = vpop.permute.xlu0 %5483
        %5485 = vrot.lane.b32.xlu0 %v5304, 96
        %v5486 = vpop.permute.xlu0 %5485
        %5487 = vrot.lane.b32.xlu0 %v5305, 96
        %v5488 = vpop.permute.xlu0 %5487
        %5489 = vrot.lane.b32.xlu0 %v5306, 96
        %v5490 = vpop.permute.xlu0 %5489
        %5491 = vrot.lane.b32.xlu0 %v5307, 96
        %v5492 = vpop.permute.xlu0 %5491
        %5493 = vrot.lane.b32.xlu0 %v5308, 96
        %v5494 = vpop.permute.xlu0 %5493
        %5495 = vrot.lane.b32.xlu0 %v5309, 96
        %v5496 = vpop.permute.xlu0 %5495
        %5497 = vrot.lane.b32.xlu0 %v5310, 96
        %v5498 = vpop.permute.xlu0 %5497
        %5499 = vrot.lane.b32.xlu0 %v5311, 96
        %v5500 = vpop.permute.xlu0 %5499
        %5501 = vrot.lane.b32.xlu0 %v5312, 96
        %v5502 = vpop.permute.xlu0 %5501
        %5503 = vrot.lane.b32.xlu0 %v5313, 96
        %v5504 = vpop.permute.xlu0 %5503
        %5505 = vrot.lane.b32.xlu0 %v5314, 96
        %v5506 = vpop.permute.xlu0 %5505
        %v5571 = vmul.f32 %v5187, %v5380
        %v5572 = vmul.f32 %v5188, %v5382
        %v5573 = vmul.f32 %v5189, %v5384
        %v5574 = vmul.f32 %v5190, %v5386
        %v5575 = vmul.f32 %v5191, %v5388
        %v5576 = vmul.f32 %v5192, %v5390
        %v5577 = vmul.f32 %v5193, %v5392
        %v5578 = vmul.f32 %v5194, %v5394
        %v5579 = vmul.f32 %v5195, %v5396
        %v5580 = vmul.f32 %v5196, %v5398
        %v5581 = vmul.f32 %v5197, %v5400
        %v5582 = vmul.f32 %v5198, %v5402
        %v5583 = vmul.f32 %v5199, %v5404
        %v5584 = vmul.f32 %v5200, %v5406
        %v5585 = vmul.f32 %v5201, %v5408
        %v5586 = vmul.f32 %v5202, %v5410
        %v5587 = vmul.f32 %v5203, %v5412
        %v5588 = vmul.f32 %v5204, %v5414
        %v5589 = vmul.f32 %v5205, %v5416
        %v5590 = vmul.f32 %v5206, %v5418
        %v5591 = vmul.f32 %v5207, %v5420
        %v5592 = vmul.f32 %v5208, %v5422
        %v5593 = vmul.f32 %v5209, %v5424
        %v5594 = vmul.f32 %v5210, %v5426
        %v5595 = vmul.f32 %v5211, %v5428
        %v5596 = vmul.f32 %v5212, %v5430
        %v5597 = vmul.f32 %v5213, %v5432
        %v5598 = vmul.f32 %v5214, %v5434
        %v5599 = vmul.f32 %v5215, %v5436
        %v5600 = vmul.f32 %v5216, %v5438
        %v5601 = vmul.f32 %v5217, %v5440
        %v5602 = vmul.f32 %v5218, %v5442
        %v5603 = vmul.f32 %v5219, %v5444
        %v5604 = vmul.f32 %v5220, %v5446
        %v5605 = vmul.f32 %v5221, %v5448
        %v5606 = vmul.f32 %v5222, %v5450
        %v5607 = vmul.f32 %v5223, %v5452
        %v5608 = vmul.f32 %v5224, %v5454
        %v5609 = vmul.f32 %v5225, %v5456
        %v5610 = vmul.f32 %v5226, %v5458
        %v5611 = vmul.f32 %v5227, %v5460
        %v5612 = vmul.f32 %v5228, %v5462
        %v5613 = vmul.f32 %v5229, %v5464
        %v5614 = vmul.f32 %v5230, %v5466
        %v5615 = vmul.f32 %v5231, %v5468
        %v5616 = vmul.f32 %v5232, %v5470
        %v5617 = vmul.f32 %v5233, %v5472
        %v5618 = vmul.f32 %v5234, %v5474
        %v5619 = vmul.f32 %v5235, %v5476
        %v5620 = vmul.f32 %v5236, %v5478
        %v5621 = vmul.f32 %v5237, %v5480
        %v5622 = vmul.f32 %v5238, %v5482
        %v5623 = vmul.f32 %v5239, %v5484
        %v5624 = vmul.f32 %v5240, %v5486
        %v5625 = vmul.f32 %v5241, %v5488
        %v5626 = vmul.f32 %v5242, %v5490
        %v5627 = vmul.f32 %v5243, %v5492
        %v5628 = vmul.f32 %v5244, %v5494
        %v5629 = vmul.f32 %v5245, %v5496
        %v5630 = vmul.f32 %v5246, %v5498
        %v5631 = vmul.f32 %v5247, %v5500
        %v5632 = vmul.f32 %v5248, %v5502
        %v5633 = vmul.f32 %v5249, %v5504
        %v5634 = vmul.f32 %v5250, %v5506
        %5699 = vrot.lane.b32.xlu0 %v5059, 96
        %v5700 = vpop.permute.xlu0 %5699
        %5701 = vrot.lane.b32.xlu0 %v5060, 96
        %v5702 = vpop.permute.xlu0 %5701
        %5703 = vrot.lane.b32.xlu0 %v5061, 96
        %v5704 = vpop.permute.xlu0 %5703
        %5705 = vrot.lane.b32.xlu0 %v5062, 96
        %v5706 = vpop.permute.xlu0 %5705
        %5707 = vrot.lane.b32.xlu0 %v5063, 96
        %v5708 = vpop.permute.xlu0 %5707
        %5709 = vrot.lane.b32.xlu0 %v5064, 96
        %v5710 = vpop.permute.xlu0 %5709
        %5711 = vrot.lane.b32.xlu0 %v5065, 96
        %v5712 = vpop.permute.xlu0 %5711
        %5713 = vrot.lane.b32.xlu0 %v5066, 96
        %v5714 = vpop.permute.xlu0 %5713
        %5715 = vrot.lane.b32.xlu0 %v5067, 96
        %v5716 = vpop.permute.xlu0 %5715
        %5717 = vrot.lane.b32.xlu0 %v5068, 96
        %v5718 = vpop.permute.xlu0 %5717
        %5719 = vrot.lane.b32.xlu0 %v5069, 96
        %v5720 = vpop.permute.xlu0 %5719
        %5721 = vrot.lane.b32.xlu0 %v5070, 96
        %v5722 = vpop.permute.xlu0 %5721
        %5723 = vrot.lane.b32.xlu0 %v5071, 96
        %v5724 = vpop.permute.xlu0 %5723
        %5725 = vrot.lane.b32.xlu0 %v5072, 96
        %v5726 = vpop.permute.xlu0 %5725
        %5727 = vrot.lane.b32.xlu0 %v5073, 96
        %v5728 = vpop.permute.xlu0 %5727
        %5729 = vrot.lane.b32.xlu0 %v5074, 96
        %v5730 = vpop.permute.xlu0 %5729
        %5731 = vrot.lane.b32.xlu0 %v5075, 96
        %v5732 = vpop.permute.xlu0 %5731
        %5733 = vrot.lane.b32.xlu0 %v5076, 96
        %v5734 = vpop.permute.xlu0 %5733
        %5735 = vrot.lane.b32.xlu0 %v5077, 96
        %v5736 = vpop.permute.xlu0 %5735
        %5737 = vrot.lane.b32.xlu0 %v5078, 96
        %v5738 = vpop.permute.xlu0 %5737
        %5739 = vrot.lane.b32.xlu0 %v5079, 96
        %v5740 = vpop.permute.xlu0 %5739
        %5741 = vrot.lane.b32.xlu0 %v5080, 96
        %v5742 = vpop.permute.xlu0 %5741
        %5743 = vrot.lane.b32.xlu0 %v5081, 96
        %v5744 = vpop.permute.xlu0 %5743
        %5745 = vrot.lane.b32.xlu0 %v5082, 96
        %v5746 = vpop.permute.xlu0 %5745
        %5747 = vrot.lane.b32.xlu0 %v5083, 96
        %v5748 = vpop.permute.xlu0 %5747
        %5749 = vrot.lane.b32.xlu0 %v5084, 96
        %v5750 = vpop.permute.xlu0 %5749
        %5751 = vrot.lane.b32.xlu0 %v5085, 96
        %v5752 = vpop.permute.xlu0 %5751
        %5753 = vrot.lane.b32.xlu0 %v5086, 96
        %v5754 = vpop.permute.xlu0 %5753
        %5755 = vrot.lane.b32.xlu0 %v5087, 96
        %v5756 = vpop.permute.xlu0 %5755
        %5757 = vrot.lane.b32.xlu0 %v5088, 96
        %v5758 = vpop.permute.xlu0 %5757
        %5759 = vrot.lane.b32.xlu0 %v5089, 96
        %v5760 = vpop.permute.xlu0 %5759
        %5761 = vrot.lane.b32.xlu0 %v5090, 96
        %v5762 = vpop.permute.xlu0 %5761
        %5763 = vrot.lane.b32.xlu0 %v5091, 96
        %v5764 = vpop.permute.xlu0 %5763
        %5765 = vrot.lane.b32.xlu0 %v5092, 96
        %v5766 = vpop.permute.xlu0 %5765
        %5767 = vrot.lane.b32.xlu0 %v5093, 96
        %v5768 = vpop.permute.xlu0 %5767
        %5769 = vrot.lane.b32.xlu0 %v5094, 96
        %v5770 = vpop.permute.xlu0 %5769
        %5771 = vrot.lane.b32.xlu0 %v5095, 96
        %v5772 = vpop.permute.xlu0 %5771
        %5773 = vrot.lane.b32.xlu0 %v5096, 96
        %v5774 = vpop.permute.xlu0 %5773
        %5775 = vrot.lane.b32.xlu0 %v5097, 96
        %v5776 = vpop.permute.xlu0 %5775
        %5777 = vrot.lane.b32.xlu0 %v5098, 96
        %v5778 = vpop.permute.xlu0 %5777
        %5779 = vrot.lane.b32.xlu0 %v5099, 96
        %v5780 = vpop.permute.xlu0 %5779
        %5781 = vrot.lane.b32.xlu0 %v5100, 96
        %v5782 = vpop.permute.xlu0 %5781
        %5783 = vrot.lane.b32.xlu0 %v5101, 96
        %v5784 = vpop.permute.xlu0 %5783
        %5785 = vrot.lane.b32.xlu0 %v5102, 96
        %v5786 = vpop.permute.xlu0 %5785
        %5787 = vrot.lane.b32.xlu0 %v5103, 96
        %v5788 = vpop.permute.xlu0 %5787
        %5789 = vrot.lane.b32.xlu0 %v5104, 96
        %v5790 = vpop.permute.xlu0 %5789
        %5791 = vrot.lane.b32.xlu0 %v5105, 96
        %v5792 = vpop.permute.xlu0 %5791
        %5793 = vrot.lane.b32.xlu0 %v5106, 96
        %v5794 = vpop.permute.xlu0 %5793
        %5795 = vrot.lane.b32.xlu0 %v5107, 96
        %v5796 = vpop.permute.xlu0 %5795
        %5797 = vrot.lane.b32.xlu0 %v5108, 96
        %v5798 = vpop.permute.xlu0 %5797
        %5799 = vrot.lane.b32.xlu0 %v5109, 96
        %v5800 = vpop.permute.xlu0 %5799
        %5801 = vrot.lane.b32.xlu0 %v5110, 96
        %v5802 = vpop.permute.xlu0 %5801
        %5803 = vrot.lane.b32.xlu0 %v5111, 96
        %v5804 = vpop.permute.xlu0 %5803
        %5805 = vrot.lane.b32.xlu0 %v5112, 96
        %v5806 = vpop.permute.xlu0 %5805
        %5807 = vrot.lane.b32.xlu0 %v5113, 96
        %v5808 = vpop.permute.xlu0 %5807
        %5809 = vrot.lane.b32.xlu0 %v5114, 96
        %v5810 = vpop.permute.xlu0 %5809
        %5811 = vrot.lane.b32.xlu0 %v5115, 96
        %v5812 = vpop.permute.xlu0 %5811
        %5813 = vrot.lane.b32.xlu0 %v5116, 96
        %v5814 = vpop.permute.xlu0 %5813
        %5815 = vrot.lane.b32.xlu0 %v5117, 96
        %v5816 = vpop.permute.xlu0 %5815
        %5817 = vrot.lane.b32.xlu0 %v5118, 96
        %v5818 = vpop.permute.xlu0 %5817
        %5819 = vrot.lane.b32.xlu0 %v5119, 96
        %v5820 = vpop.permute.xlu0 %5819
        %5821 = vrot.lane.b32.xlu0 %v5120, 96
        %v5822 = vpop.permute.xlu0 %5821
        %5823 = vrot.lane.b32.xlu0 %v5121, 96
        %v5824 = vpop.permute.xlu0 %5823
        %5825 = vrot.lane.b32.xlu0 %v5122, 96
        %v5826 = vpop.permute.xlu0 %5825
        %v5891 = vmul.f32 %v4932, %v5700
        %v5892 = vmul.f32 %v4934, %v5702
        %v5893 = vmul.f32 %v4936, %v5704
        %v5894 = vmul.f32 %v4938, %v5706
        %v5895 = vmul.f32 %v4940, %v5708
        %v5896 = vmul.f32 %v4942, %v5710
        %v5897 = vmul.f32 %v4944, %v5712
        %v5898 = vmul.f32 %v4946, %v5714
        %v5899 = vmul.f32 %v4948, %v5716
        %v5900 = vmul.f32 %v4950, %v5718
        %v5901 = vmul.f32 %v4952, %v5720
        %v5902 = vmul.f32 %v4954, %v5722
        %v5903 = vmul.f32 %v4956, %v5724
        %v5904 = vmul.f32 %v4958, %v5726
        %v5905 = vmul.f32 %v4960, %v5728
        %v5906 = vmul.f32 %v4962, %v5730
        %v5907 = vmul.f32 %v4964, %v5732
        %v5908 = vmul.f32 %v4966, %v5734
        %v5909 = vmul.f32 %v4968, %v5736
        %v5910 = vmul.f32 %v4970, %v5738
        %v5911 = vmul.f32 %v4972, %v5740
        %v5912 = vmul.f32 %v4974, %v5742
        %v5913 = vmul.f32 %v4976, %v5744
        %v5914 = vmul.f32 %v4978, %v5746
        %v5915 = vmul.f32 %v4980, %v5748
        %v5916 = vmul.f32 %v4982, %v5750
        %v5917 = vmul.f32 %v4984, %v5752
        %v5918 = vmul.f32 %v4986, %v5754
        %v5919 = vmul.f32 %v4988, %v5756
        %v5920 = vmul.f32 %v4990, %v5758
        %v5921 = vmul.f32 %v4992, %v5760
        %v5922 = vmul.f32 %v4994, %v5762
        %v5923 = vmul.f32 %v4996, %v5764
        %v5924 = vmul.f32 %v4998, %v5766
        %v5925 = vmul.f32 %v5000, %v5768
        %v5926 = vmul.f32 %v5002, %v5770
        %v5927 = vmul.f32 %v5004, %v5772
        %v5928 = vmul.f32 %v5006, %v5774
        %v5929 = vmul.f32 %v5008, %v5776
        %v5930 = vmul.f32 %v5010, %v5778
        %v5931 = vmul.f32 %v5012, %v5780
        %v5932 = vmul.f32 %v5014, %v5782
        %v5933 = vmul.f32 %v5016, %v5784
        %v5934 = vmul.f32 %v5018, %v5786
        %v5935 = vmul.f32 %v5020, %v5788
        %v5936 = vmul.f32 %v5022, %v5790
        %v5937 = vmul.f32 %v5024, %v5792
        %v5938 = vmul.f32 %v5026, %v5794
        %v5939 = vmul.f32 %v5028, %v5796
        %v5940 = vmul.f32 %v5030, %v5798
        %v5941 = vmul.f32 %v5032, %v5800
        %v5942 = vmul.f32 %v5034, %v5802
        %v5943 = vmul.f32 %v5036, %v5804
        %v5944 = vmul.f32 %v5038, %v5806
        %v5945 = vmul.f32 %v5040, %v5808
        %v5946 = vmul.f32 %v5042, %v5810
        %v5947 = vmul.f32 %v5044, %v5812
        %v5948 = vmul.f32 %v5046, %v5814
        %v5949 = vmul.f32 %v5048, %v5816
        %v5950 = vmul.f32 %v5050, %v5818
        %v5951 = vmul.f32 %v5052, %v5820
        %v5952 = vmul.f32 %v5054, %v5822
        %v5953 = vmul.f32 %v5056, %v5824
        %v5954 = vmul.f32 %v5058, %v5826
        %6019 = vrot.lane.b32.xlu0 %v5891, 96
        %v6020 = vpop.permute.xlu0 %6019
        %6021 = vrot.lane.b32.xlu0 %v5892, 96
        %v6022 = vpop.permute.xlu0 %6021
        %6023 = vrot.lane.b32.xlu0 %v5893, 96
        %v6024 = vpop.permute.xlu0 %6023
        %6025 = vrot.lane.b32.xlu0 %v5894, 96
        %v6026 = vpop.permute.xlu0 %6025
        %6027 = vrot.lane.b32.xlu0 %v5895, 96
        %v6028 = vpop.permute.xlu0 %6027
        %6029 = vrot.lane.b32.xlu0 %v5896, 96
        %v6030 = vpop.permute.xlu0 %6029
        %6031 = vrot.lane.b32.xlu0 %v5897, 96
        %v6032 = vpop.permute.xlu0 %6031
        %6033 = vrot.lane.b32.xlu0 %v5898, 96
        %v6034 = vpop.permute.xlu0 %6033
        %6035 = vrot.lane.b32.xlu0 %v5899, 96
        %v6036 = vpop.permute.xlu0 %6035
        %6037 = vrot.lane.b32.xlu0 %v5900, 96
        %v6038 = vpop.permute.xlu0 %6037
        %6039 = vrot.lane.b32.xlu0 %v5901, 96
        %v6040 = vpop.permute.xlu0 %6039
        %6041 = vrot.lane.b32.xlu0 %v5902, 96
        %v6042 = vpop.permute.xlu0 %6041
        %6043 = vrot.lane.b32.xlu0 %v5903, 96
        %v6044 = vpop.permute.xlu0 %6043
        %6045 = vrot.lane.b32.xlu0 %v5904, 96
        %v6046 = vpop.permute.xlu0 %6045
        %6047 = vrot.lane.b32.xlu0 %v5905, 96
        %v6048 = vpop.permute.xlu0 %6047
        %6049 = vrot.lane.b32.xlu0 %v5906, 96
        %v6050 = vpop.permute.xlu0 %6049
        %6051 = vrot.lane.b32.xlu0 %v5907, 96
        %v6052 = vpop.permute.xlu0 %6051
        %6053 = vrot.lane.b32.xlu0 %v5908, 96
        %v6054 = vpop.permute.xlu0 %6053
        %6055 = vrot.lane.b32.xlu0 %v5909, 96
        %v6056 = vpop.permute.xlu0 %6055
        %6057 = vrot.lane.b32.xlu0 %v5910, 96
        %v6058 = vpop.permute.xlu0 %6057
        %6059 = vrot.lane.b32.xlu0 %v5911, 96
        %v6060 = vpop.permute.xlu0 %6059
        %6061 = vrot.lane.b32.xlu0 %v5912, 96
        %v6062 = vpop.permute.xlu0 %6061
        %6063 = vrot.lane.b32.xlu0 %v5913, 96
        %v6064 = vpop.permute.xlu0 %6063
        %6065 = vrot.lane.b32.xlu0 %v5914, 96
        %v6066 = vpop.permute.xlu0 %6065
        %6067 = vrot.lane.b32.xlu0 %v5915, 96
        %v6068 = vpop.permute.xlu0 %6067
        %6069 = vrot.lane.b32.xlu0 %v5916, 96
        %v6070 = vpop.permute.xlu0 %6069
        %6071 = vrot.lane.b32.xlu0 %v5917, 96
        %v6072 = vpop.permute.xlu0 %6071
        %6073 = vrot.lane.b32.xlu0 %v5918, 96
        %v6074 = vpop.permute.xlu0 %6073
        %6075 = vrot.lane.b32.xlu0 %v5919, 96
        %v6076 = vpop.permute.xlu0 %6075
        %6077 = vrot.lane.b32.xlu0 %v5920, 96
        %v6078 = vpop.permute.xlu0 %6077
        %6079 = vrot.lane.b32.xlu0 %v5921, 96
        %v6080 = vpop.permute.xlu0 %6079
        %6081 = vrot.lane.b32.xlu0 %v5922, 96
        %v6082 = vpop.permute.xlu0 %6081
        %6083 = vrot.lane.b32.xlu0 %v5923, 96
        %v6084 = vpop.permute.xlu0 %6083
        %6085 = vrot.lane.b32.xlu0 %v5924, 96
        %v6086 = vpop.permute.xlu0 %6085
        %6087 = vrot.lane.b32.xlu0 %v5925, 96
        %v6088 = vpop.permute.xlu0 %6087
        %6089 = vrot.lane.b32.xlu0 %v5926, 96
        %v6090 = vpop.permute.xlu0 %6089
        %6091 = vrot.lane.b32.xlu0 %v5927, 96
        %v6092 = vpop.permute.xlu0 %6091
        %6093 = vrot.lane.b32.xlu0 %v5928, 96
        %v6094 = vpop.permute.xlu0 %6093
        %6095 = vrot.lane.b32.xlu0 %v5929, 96
        %v6096 = vpop.permute.xlu0 %6095
        %6097 = vrot.lane.b32.xlu0 %v5930, 96
        %v6098 = vpop.permute.xlu0 %6097
        %6099 = vrot.lane.b32.xlu0 %v5931, 96
        %v6100 = vpop.permute.xlu0 %6099
        %6101 = vrot.lane.b32.xlu0 %v5932, 96
        %v6102 = vpop.permute.xlu0 %6101
        %6103 = vrot.lane.b32.xlu0 %v5933, 96
        %v6104 = vpop.permute.xlu0 %6103
        %6105 = vrot.lane.b32.xlu0 %v5934, 96
        %v6106 = vpop.permute.xlu0 %6105
        %6107 = vrot.lane.b32.xlu0 %v5935, 96
        %v6108 = vpop.permute.xlu0 %6107
        %6109 = vrot.lane.b32.xlu0 %v5936, 96
        %v6110 = vpop.permute.xlu0 %6109
        %6111 = vrot.lane.b32.xlu0 %v5937, 96
        %v6112 = vpop.permute.xlu0 %6111
        %6113 = vrot.lane.b32.xlu0 %v5938, 96
        %v6114 = vpop.permute.xlu0 %6113
        %6115 = vrot.lane.b32.xlu0 %v5939, 96
        %v6116 = vpop.permute.xlu0 %6115
        %6117 = vrot.lane.b32.xlu0 %v5940, 96
        %v6118 = vpop.permute.xlu0 %6117
        %6119 = vrot.lane.b32.xlu0 %v5941, 96
        %v6120 = vpop.permute.xlu0 %6119
        %6121 = vrot.lane.b32.xlu0 %v5942, 96
        %v6122 = vpop.permute.xlu0 %6121
        %6123 = vrot.lane.b32.xlu0 %v5943, 96
        %v6124 = vpop.permute.xlu0 %6123
        %6125 = vrot.lane.b32.xlu0 %v5944, 96
        %v6126 = vpop.permute.xlu0 %6125
        %6127 = vrot.lane.b32.xlu0 %v5945, 96
        %v6128 = vpop.permute.xlu0 %6127
        %6129 = vrot.lane.b32.xlu0 %v5946, 96
        %v6130 = vpop.permute.xlu0 %6129
        %6131 = vrot.lane.b32.xlu0 %v5947, 96
        %v6132 = vpop.permute.xlu0 %6131
        %6133 = vrot.lane.b32.xlu0 %v5948, 96
        %v6134 = vpop.permute.xlu0 %6133
        %6135 = vrot.lane.b32.xlu0 %v5949, 96
        %v6136 = vpop.permute.xlu0 %6135
        %6137 = vrot.lane.b32.xlu0 %v5950, 96
        %v6138 = vpop.permute.xlu0 %6137
        %6139 = vrot.lane.b32.xlu0 %v5951, 96
        %v6140 = vpop.permute.xlu0 %6139
        %6141 = vrot.lane.b32.xlu0 %v5952, 96
        %v6142 = vpop.permute.xlu0 %6141
        %6143 = vrot.lane.b32.xlu0 %v5953, 96
        %v6144 = vpop.permute.xlu0 %6143
        %6145 = vrot.lane.b32.xlu0 %v5954, 96
        %v6146 = vpop.permute.xlu0 %6145
        %v6211 = vadd.f32 %v5571, %v6020
        %v6212 = vadd.f32 %v5572, %v6022
        %v6213 = vadd.f32 %v5573, %v6024
        %v6214 = vadd.f32 %v5574, %v6026
        %v6215 = vadd.f32 %v5575, %v6028
        %v6216 = vadd.f32 %v5576, %v6030
        %v6217 = vadd.f32 %v5577, %v6032
        %v6218 = vadd.f32 %v5578, %v6034
        %v6219 = vadd.f32 %v5579, %v6036
        %v6220 = vadd.f32 %v5580, %v6038
        %v6221 = vadd.f32 %v5581, %v6040
        %v6222 = vadd.f32 %v5582, %v6042
        %v6223 = vadd.f32 %v5583, %v6044
        %v6224 = vadd.f32 %v5584, %v6046
        %v6225 = vadd.f32 %v5585, %v6048
        %v6226 = vadd.f32 %v5586, %v6050
        %v6227 = vadd.f32 %v5587, %v6052
        %v6228 = vadd.f32 %v5588, %v6054
        %v6229 = vadd.f32 %v5589, %v6056
        %v6230 = vadd.f32 %v5590, %v6058
        %v6231 = vadd.f32 %v5591, %v6060
        %v6232 = vadd.f32 %v5592, %v6062
        %v6233 = vadd.f32 %v5593, %v6064
        %v6234 = vadd.f32 %v5594, %v6066
        %v6235 = vadd.f32 %v5595, %v6068
        %v6236 = vadd.f32 %v5596, %v6070
        %v6237 = vadd.f32 %v5597, %v6072
        %v6238 = vadd.f32 %v5598, %v6074
        %v6239 = vadd.f32 %v5599, %v6076
        %v6240 = vadd.f32 %v5600, %v6078
        %v6241 = vadd.f32 %v5601, %v6080
        %v6242 = vadd.f32 %v5602, %v6082
        %v6243 = vadd.f32 %v5603, %v6084
        %v6244 = vadd.f32 %v5604, %v6086
        %v6245 = vadd.f32 %v5605, %v6088
        %v6246 = vadd.f32 %v5606, %v6090
        %v6247 = vadd.f32 %v5607, %v6092
        %v6248 = vadd.f32 %v5608, %v6094
        %v6249 = vadd.f32 %v5609, %v6096
        %v6250 = vadd.f32 %v5610, %v6098
        %v6251 = vadd.f32 %v5611, %v6100
        %v6252 = vadd.f32 %v5612, %v6102
        %v6253 = vadd.f32 %v5613, %v6104
        %v6254 = vadd.f32 %v5614, %v6106
        %v6255 = vadd.f32 %v5615, %v6108
        %v6256 = vadd.f32 %v5616, %v6110
        %v6257 = vadd.f32 %v5617, %v6112
        %v6258 = vadd.f32 %v5618, %v6114
        %v6259 = vadd.f32 %v5619, %v6116
        %v6260 = vadd.f32 %v5620, %v6118
        %v6261 = vadd.f32 %v5621, %v6120
        %v6262 = vadd.f32 %v5622, %v6122
        %v6263 = vadd.f32 %v5623, %v6124
        %v6264 = vadd.f32 %v5624, %v6126
        %v6265 = vadd.f32 %v5625, %v6128
        %v6266 = vadd.f32 %v5626, %v6130
        %v6267 = vadd.f32 %v5627, %v6132
        %v6268 = vadd.f32 %v5628, %v6134
        %v6269 = vadd.f32 %v5629, %v6136
        %v6270 = vadd.f32 %v5630, %v6138
        %v6271 = vadd.f32 %v5631, %v6140
        %v6272 = vadd.f32 %v5632, %v6142
        %v6273 = vadd.f32 %v5633, %v6144
        %v6274 = vadd.f32 %v5634, %v6146
        %vm6275 = vcmask 261120
        %6276 = vst.msk [vmem:[%s241] sm:$0xff] %vm6275, %v6211
        %6277 = vst.msk [vmem:[%s241 + $0x8] sm:$0xff] %vm6275, %v6212
        %6278 = vst.msk [vmem:[%s241 + $0x10] sm:$0xff] %vm6275, %v6213
        %6279 = vst.msk [vmem:[%s241 + $0x18] sm:$0xff] %vm6275, %v6214
        %6280 = vst.msk [vmem:[%s241 + $0x20] sm:$0xff] %vm6275, %v6215
        %6281 = vst.msk [vmem:[%s241 + $0x28] sm:$0xff] %vm6275, %v6216
        %6282 = vst.msk [vmem:[%s241 + $0x30] sm:$0xff] %vm6275, %v6217
        %6283 = vst.msk [vmem:[%s241 + $0x38] sm:$0xff] %vm6275, %v6218
        %6284 = vst.msk [vmem:[%s241 + $0x40] sm:$0xff] %vm6275, %v6219
        %6285 = vst.msk [vmem:[%s241 + $0x48] sm:$0xff] %vm6275, %v6220
        %6286 = vst.msk [vmem:[%s241 + $0x50] sm:$0xff] %vm6275, %v6221
        %6287 = vst.msk [vmem:[%s241 + $0x58] sm:$0xff] %vm6275, %v6222
        %6288 = vst.msk [vmem:[%s241 + $0x60] sm:$0xff] %vm6275, %v6223
        %6289 = vst.msk [vmem:[%s241 + $0x68] sm:$0xff] %vm6275, %v6224
        %6290 = vst.msk [vmem:[%s241 + $0x70] sm:$0xff] %vm6275, %v6225
        %6291 = vst.msk [vmem:[%s241 + $0x78] sm:$0xff] %vm6275, %v6226
        %6292 = vst.msk [vmem:[%s241 + $0x80] sm:$0xff] %vm6275, %v6227
        %6293 = vst.msk [vmem:[%s241 + $0x88] sm:$0xff] %vm6275, %v6228
        %6294 = vst.msk [vmem:[%s241 + $0x90] sm:$0xff] %vm6275, %v6229
        %6295 = vst.msk [vmem:[%s241 + $0x98] sm:$0xff] %vm6275, %v6230
        %6296 = vst.msk [vmem:[%s241 + $0xa0] sm:$0xff] %vm6275, %v6231
        %6297 = vst.msk [vmem:[%s241 + $0xa8] sm:$0xff] %vm6275, %v6232
        %6298 = vst.msk [vmem:[%s241 + $0xb0] sm:$0xff] %vm6275, %v6233
        %6299 = vst.msk [vmem:[%s241 + $0xb8] sm:$0xff] %vm6275, %v6234
        %6300 = vst.msk [vmem:[%s241 + $0xc0] sm:$0xff] %vm6275, %v6235
        %6301 = vst.msk [vmem:[%s241 + $0xc8] sm:$0xff] %vm6275, %v6236
        %6302 = vst.msk [vmem:[%s241 + $0xd0] sm:$0xff] %vm6275, %v6237
        %6303 = vst.msk [vmem:[%s241 + $0xd8] sm:$0xff] %vm6275, %v6238
        %6304 = vst.msk [vmem:[%s241 + $0xe0] sm:$0xff] %vm6275, %v6239
        %6305 = vst.msk [vmem:[%s241 + $0xe8] sm:$0xff] %vm6275, %v6240
        %6306 = vst.msk [vmem:[%s241 + $0xf0] sm:$0xff] %vm6275, %v6241
        %6307 = vst.msk [vmem:[%s241 + $0xf8] sm:$0xff] %vm6275, %v6242
        %6308 = vst.msk [vmem:[%s241 + $0x100] sm:$0xff] %vm6275, %v6243
        %6309 = vst.msk [vmem:[%s241 + $0x108] sm:$0xff] %vm6275, %v6244
        %6310 = vst.msk [vmem:[%s241 + $0x110] sm:$0xff] %vm6275, %v6245
        %6311 = vst.msk [vmem:[%s241 + $0x118] sm:$0xff] %vm6275, %v6246
        %6312 = vst.msk [vmem:[%s241 + $0x120] sm:$0xff] %vm6275, %v6247
        %6313 = vst.msk [vmem:[%s241 + $0x128] sm:$0xff] %vm6275, %v6248
        %6314 = vst.msk [vmem:[%s241 + $0x130] sm:$0xff] %vm6275, %v6249
        %6315 = vst.msk [vmem:[%s241 + $0x138] sm:$0xff] %vm6275, %v6250
        %6316 = vst.msk [vmem:[%s241 + $0x140] sm:$0xff] %vm6275, %v6251
        %6317 = vst.msk [vmem:[%s241 + $0x148] sm:$0xff] %vm6275, %v6252
        %6318 = vst.msk [vmem:[%s241 + $0x150] sm:$0xff] %vm6275, %v6253
        %6319 = vst.msk [vmem:[%s241 + $0x158] sm:$0xff] %vm6275, %v6254
        %6320 = vst.msk [vmem:[%s241 + $0x160] sm:$0xff] %vm6275, %v6255
        %6321 = vst.msk [vmem:[%s241 + $0x168] sm:$0xff] %vm6275, %v6256
        %6322 = vst.msk [vmem:[%s241 + $0x170] sm:$0xff] %vm6275, %v6257
        %6323 = vst.msk [vmem:[%s241 + $0x178] sm:$0xff] %vm6275, %v6258
        %6324 = vst.msk [vmem:[%s241 + $0x180] sm:$0xff] %vm6275, %v6259
        %6325 = vst.msk [vmem:[%s241 + $0x188] sm:$0xff] %vm6275, %v6260
        %6326 = vst.msk [vmem:[%s241 + $0x190] sm:$0xff] %vm6275, %v6261
        %6327 = vst.msk [vmem:[%s241 + $0x198] sm:$0xff] %vm6275, %v6262
        %6328 = vst.msk [vmem:[%s241 + $0x1a0] sm:$0xff] %vm6275, %v6263
        %6329 = vst.msk [vmem:[%s241 + $0x1a8] sm:$0xff] %vm6275, %v6264
        %6330 = vst.msk [vmem:[%s241 + $0x1b0] sm:$0xff] %vm6275, %v6265
        %6331 = vst.msk [vmem:[%s241 + $0x1b8] sm:$0xff] %vm6275, %v6266
        %6332 = vst.msk [vmem:[%s241 + $0x1c0] sm:$0xff] %vm6275, %v6267
        %6333 = vst.msk [vmem:[%s241 + $0x1c8] sm:$0xff] %vm6275, %v6268
        %6334 = vst.msk [vmem:[%s241 + $0x1d0] sm:$0xff] %vm6275, %v6269
        %6335 = vst.msk [vmem:[%s241 + $0x1d8] sm:$0xff] %vm6275, %v6270
        %6336 = vst.msk [vmem:[%s241 + $0x1e0] sm:$0xff] %vm6275, %v6271
        %6337 = vst.msk [vmem:[%s241 + $0x1e8] sm:$0xff] %vm6275, %v6272
        %6338 = vst.msk [vmem:[%s241 + $0x1f0] sm:$0xff] %vm6275, %v6273
        %6339 = vst.msk [vmem:[%s241 + $0x1f8] sm:$0xff] %vm6275, %v6274
        %s6340 = smul.u32 64, %s18
        %p6341 = scmp.lt.s32.totalorder %s6340, 127
        %s6342 = scalar_select %p6341, %s6340, 127
        %s6343 = smul.addr %s6342, 8
        %s6344 = scalar_lea.vmem %s4, %s6343
        // Predicated region
        $region41: #{tpu_custom_call.1} parent=35 // pred_check
          %p6345 = pneg %p130
        $region42: #{tpu_custom_call.1} parent=35 // pred_check_branch
          %6347 = sbr.rel (%p6345) target = $region44
        $region43: #{tpu_custom_call.1} parent=35 // pred_region
          %s6348 = smul.u32 64, %s18
        $region44: #{tpu_custom_call.1} parent=35 // pred_fallthru
          _
      $region36: #{tpu_custom_call.1} parent=5 // pred_fallthru
        _
      %p6349 = scmp.le.s32.totalorder 2, %s13
      // Predicated region
      $region45: #{tpu_custom_call.1} parent=5 // pred_check
        %p6350 = pneg %p6349
      $region46: #{tpu_custom_call.1} parent=5 // pred_check_branch
        %6352 = sbr.rel (%p6350) target = $region48
      $region47: #{tpu_custom_call.1} parent=5 // pred_region
        %s6353 = ssub.s32 %s13, 2
        // Predicated region
        $region49: #{tpu_custom_call.1} parent=47 // pred_check
          %p6354 = pneg %p136
        $region50: #{tpu_custom_call.1} parent=47 // pred_check_branch
          %6356 = sbr.rel (%p6354) target = $region52
        $region51: #{tpu_custom_call.1} parent=47 // pred_region
          %s6357 = smul.u32 64, %s19
          %p6358 = scmp.lt.s32.totalorder %s6357, 127
          %s6359 = scalar_select %p6358, %s6357, 127
          %s6360 = smul.addr %s6359, 8
          %s6361 = scalar_lea.vmem %s4, %s6360
        $region52: #{tpu_custom_call.1} parent=47 // pred_fallthru
          _
      $region48: #{tpu_custom_call.1} parent=5 // pred_fallthru
        _
    $region6: #{tpu_custom_call.1} parent=1 // loop_footer
      %s17 = sadd.s32 1, %s13
    $region7: #{tpu_custom_call.1} parent=1 // loop_footer_branch
      %12 = sbr.rel target = $region3
    $region8: #{tpu_custom_call.1} parent=1 // loop_exit
      _
    %6362 = vsyncpa [#allocation3], 1
    %s6363 = scalar_lea.sflag [#allocation3], 1
    %6364 = vsyncpa %s6363, 1

</llo_original>
